<compile_context>
chip_gen: v7x
topology: tpu7x:2x2x1
jax: 0.10.0
libtpu: 0.0.40
codegen_flags: <defaults>
</compile_context>

<pallas_src>
import functools

import jax
import jax.numpy as jnp
from jax import lax
from jax.experimental import pallas as pl
from jax.experimental.pallas import tpu as pltpu


def _round_up(x, m):
    return (x + m - 1) // m * m


# ---------------------------------------------------------------------------
# Kernel: full-sequence GRU with hoisted input projection + hoisted decoder.
# ---------------------------------------------------------------------------
def gru_seq_kernel(x_ref,        # VMEM (Tp, Hp)      gathered+padded embeddings
                   h0_ref,       # VMEM (1, Hp)       initial hidden state (pad lanes 0)
                   w_ih_ref,     # VMEM (Hp, 3Hp)     input->gates weights  [r | z | n]
                   w_hh_ref,     # VMEM (Hp, 3Hp)     hidden->gates weights [r | z | n]
                   b_gi_ref,     # VMEM (1, 3Hp)      bias for gi: [b_ir+b_hr | b_iz+b_hz | b_in]
                   b_gh_ref,     # VMEM (1, 3Hp)      bias for gh: [0 | 0 | b_hn]
                   w_dec_ref,    # VMEM (Hp, Op)      decoder weights (transposed)
                   b_dec_ref,    # VMEM (1, Op)       decoder bias
                   out_ref,      # VMEM out (Tp, Op)  per-step logits
                   h_out_ref,    # VMEM out (1, Hp)   final hidden state
                   gi_scratch,   # VMEM scratch (Tp, 3Hp)
                   hseq_scratch, # VMEM scratch (Tp, Hp)
                   *, T, Hp):
    # ---- Prologue: one M=Tp MXU matmul for all input projections (non-recurrent). ----
    gi_scratch[...] = (
        jnp.dot(x_ref[...], w_ih_ref[...], preferred_element_type=jnp.float32)
        + b_gi_ref[...])

    # Zero the h-sequence scratch so pad rows are deterministic (sliced off by caller).
    hseq_scratch[...] = jnp.zeros_like(hseq_scratch)

    w_hh = w_hh_ref[...]
    b_gh = b_gh_ref[...]

    # ---- Serial recurrence: only gh = h @ W_hh stays on the critical path. ----
    def step(t, h):
        gi_t = gi_scratch[pl.ds(t, 1), :]                                   # (1, 3Hp)
        gh = jnp.dot(h, w_hh, preferred_element_type=jnp.float32) + b_gh    # (1, 3Hp)
        # PyTorch GRU gate order: reset | update | new.
        r = jax.nn.sigmoid(gi_t[:, 0:Hp] + gh[:, 0:Hp])
        z = jax.nn.sigmoid(gi_t[:, Hp:2 * Hp] + gh[:, Hp:2 * Hp])
        n = jnp.tanh(gi_t[:, 2 * Hp:3 * Hp] + r * gh[:, 2 * Hp:3 * Hp])
        h_new = (1.0 - z) * n + z * h
        hseq_scratch[pl.ds(t, 1), :] = h_new
        return h_new

    h_final = lax.fori_loop(0, T, step, h0_ref[...], unroll=True)
    h_out_ref[...] = h_final

    # ---- Epilogue: one M=Tp decoder matmul, dense (Tp, Op) store. ----
    out_ref[...] = (
        jnp.dot(hseq_scratch[...], w_dec_ref[...], preferred_element_type=jnp.float32)
        + b_dec_ref[...])


# ---------------------------------------------------------------------------
# Parameter packing (layout plumbing done once, outside the kernel).
# ---------------------------------------------------------------------------
def pack_params(params):
    emb = params["embedding"]                       # (V, H)
    V, H = emb.shape
    O = params["w_dec_t"].shape[1]
    Hp = _round_up(H, 128)
    Op = _round_up(O, 128)

    w_ih_t = params["w_ih_t"]                       # (H, 3H)  cols = r|z|n
    w_hh_t = params["w_hh_t"]                       # (H, 3H)
    b_ih = params["b_ih"].reshape(-1)               # (3H,)
    b_hh = params["b_hh"].reshape(-1)               # (3H,)

    # Embedding kept 2-D, padded on the lane dim; rows are gathered OUTSIDE the kernel.
    emb_pad = jnp.zeros((V, Hp), jnp.float32).at[:, :H].set(emb)

    # Gate weights, each gate block placed at a 128-aligned column offset; all pad
    # rows/cols are exactly zero (required for the h-pad-stays-zero invariant).
    w_ih_pad = jnp.zeros((Hp, 3 * Hp), jnp.float32)
    w_hh_pad = jnp.zeros((Hp, 3 * Hp), jnp.float32)
    for g in range(3):
        w_ih_pad = w_ih_pad.at[:H, g * Hp:g * Hp + H].set(w_ih_t[:, g * H:(g + 1) * H])
        w_hh_pad = w_hh_pad.at[:H, g * Hp:g * Hp + H].set(w_hh_t[:, g * H:(g + 1) * H])

    # gi bias: r/z slots carry (b_ih + b_hh) pre-summed; n slot carries b_in only.
    b_gi = jnp.zeros((1, 3 * Hp), jnp.float32)
    b_gi = b_gi.at[0, 0:H].set(b_ih[0:H] + b_hh[0:H])
    b_gi = b_gi.at[0, Hp:Hp + H].set(b_ih[H:2 * H] + b_hh[H:2 * H])
    b_gi = b_gi.at[0, 2 * Hp:2 * Hp + H].set(b_ih[2 * H:3 * H])

    # gh bias: only the n slot (b_hn) — needed inside r * (gh_n + b_hn).
    b_gh = jnp.zeros((1, 3 * Hp), jnp.float32)
    b_gh = b_gh.at[0, 2 * Hp:2 * Hp + H].set(b_hh[2 * H:3 * H])

    w_dec_pad = jnp.zeros((Hp, Op), jnp.float32).at[:H, :O].set(params["w_dec_t"])
    b_dec_pad = jnp.zeros((1, Op), jnp.float32).at[0, :O].set(params["b_dec"].reshape(-1))

    return {
        "emb": emb_pad, "w_ih": w_ih_pad, "w_hh": w_hh_pad,
        "b_gi": b_gi, "b_gh": b_gh, "w_dec": w_dec_pad, "b_dec": b_dec_pad,
        "V": V, "H": H, "O": O, "Hp": Hp, "Op": Op,
    }


# ---------------------------------------------------------------------------
# Wrappers.
# ---------------------------------------------------------------------------
def rnn_forward_sequence(tokens, hidden, packed):
    """Decode a whole token sequence with a single (gridless) pallas_call.

    tokens: int (T,)      hidden: float32 (n_layers=1, 1, H)
    returns (logits (T, O), hidden (1, 1, H))
    """
    T = int(tokens.shape[0])
    V, H, O = packed["V"], packed["H"], packed["O"]
    Hp, Op = packed["Hp"], packed["Op"]
    Tp = _round_up(max(T, 1), 8)

    # Embedding gather outside the kernel (clamp ids: VMEM refs have no bounds check).
    toks = jnp.clip(tokens.astype(jnp.int32), 0, V - 1)
    x = packed["emb"][toks]                                          # (T, Hp)
    x_pad = jnp.zeros((Tp, Hp), jnp.float32).at[:T].set(x)

    h0 = jnp.zeros((1, Hp), jnp.float32).at[0, :H].set(hidden.reshape(-1))

    kernel = functools.partial(gru_seq_kernel, T=T, Hp=Hp)
    vmem_spec = pl.BlockSpec(memory_space=pltpu.MemorySpace.VMEM)

    out, h_out = pl.pallas_call(
        kernel,
        out_shape=(jax.ShapeDtypeStruct((Tp, Op), jnp.float32),
                   jax.ShapeDtypeStruct((1, Hp), jnp.float32)),
        in_specs=[vmem_spec] * 8,
        out_specs=(vmem_spec, vmem_spec),
        scratch_shapes=[
            pltpu.VMEM((Tp, 3 * Hp), jnp.float32),   # gi (hoisted input projection)
            pltpu.VMEM((Tp, Hp), jnp.float32),       # per-step hidden states
        ],
    )(x_pad, h0, packed["w_ih"], packed["w_hh"], packed["b_gi"], packed["b_gh"],
      packed["w_dec"], packed["b_dec"])

    logits = out[:T, :O]
    h_new = h_out[:, :H].reshape(1, 1, H)
    return logits, h_new


def rnn_forward(token_idx, hidden, packed):
    """Mirrors RNN.forward(input, hidden) -> (output, hidden) for a single token."""
    # TODO(synk): if this is ever called in a host-side decode loop, keep weights
    # resident across calls (cross-pallas_call prefetch) or batch into the sequence path.
    logits, h_new = rnn_forward_sequence(token_idx.reshape(1), hidden, packed)
    return logits, h_new


# ---------------------------------------------------------------------------
# Parameter init (shapes match the PyTorch module) and pure-JAX reference.
# ---------------------------------------------------------------------------
def init_params(key, vocab, hidden, output):
    ks = jax.random.split(key, 7)
    s = 1.0 / jnp.sqrt(hidden)
    embedding = jax.random.normal(ks[0], (vocab, hidden), jnp.float32)
    # PyTorch stores weight_ih_l0 / weight_hh_l0 as (3H, H); pre-transpose here.
    w_ih = jax.random.uniform(ks[1], (3 * hidden, hidden), jnp.float32, -s, s)
    w_hh = jax.random.uniform(ks[2], (3 * hidden, hidden), jnp.float32, -s, s)
    b_ih = jax.random.uniform(ks[3], (3 * hidden,), jnp.float32, -s, s)
    b_hh = jax.random.uniform(ks[4], (3 * hidden,), jnp.float32, -s, s)
    w_dec = jax.random.uniform(ks[5], (output, hidden), jnp.float32, -s, s)
    b_dec = jax.random.uniform(ks[6], (output,), jnp.float32, -s, s)
    return {
        "embedding": embedding,
        "w_ih_t": w_ih.T, "w_hh_t": w_hh.T,
        "b_ih": b_ih.reshape(1, -1), "b_hh": b_hh.reshape(1, -1),
        "w_dec_t": w_dec.T, "b_dec": b_dec.reshape(1, -1),
    }


def rnn_sequence_ref(tokens, hidden, params):
    """Pure-JAX reference: repeated application of the PyTorch forward."""
    H = params["embedding"].shape[1]
    h = hidden.reshape(1, H)
    outs = []
    for i in range(tokens.shape[0]):
        x = params["embedding"][tokens[i]][None, :]
        gi = x @ params["w_ih_t"] + params["b_ih"]
        gh = h @ params["w_hh_t"] + params["b_hh"]
        r = jax.nn.sigmoid(gi[:, 0:H] + gh[:, 0:H])
        z = jax.nn.sigmoid(gi[:, H:2 * H] + gh[:, H:2 * H])
        n = jnp.tanh(gi[:, 2 * H:3 * H] + r * gh[:, 2 * H:3 * H])
        h = (1.0 - z) * n + z * h
        outs.append(h @ params["w_dec_t"] + params["b_dec"])
    return jnp.concatenate(outs, axis=0), h.reshape(1, 1, H)


if __name__ == "__main__":
    VOCAB = 100      # input_size  (len(string.printable) in the exercise)
    HIDDEN = 100     # hidden_size (module spec)
    OUTPUT = 100     # output_size
    N_LAYERS = 1
    SEQ = 16         # decode 16 tokens in one kernel launch

    key = jax.random.PRNGKey(0)
    pkey, ikey = jax.random.split(key)
    params = init_params(pkey, VOCAB, HIDDEN, OUTPUT)
    packed = pack_params(params)

    tokens = jax.random.randint(ikey, (SEQ,), 0, VOCAB, dtype=jnp.int32)
    hidden0 = jnp.zeros((N_LAYERS, 1, HIDDEN), jnp.float32)   # RNN.init_hidden()

    # Full-sequence decode (the performance path).
    logits, h_final = rnn_forward_sequence(tokens, hidden0, packed)
    logits = jax.block_until_ready(logits)
    h_final = jax.block_until_ready(h_final)

    logits_ref, h_ref = rnn_sequence_ref(tokens, hidden0, params)
    assert logits.shape == (SEQ, OUTPUT) and h_final.shape == (N_LAYERS, 1, HIDDEN)
    assert jnp.allclose(logits, logits_ref, atol=2e-3, rtol=2e-3), \
        float(jnp.max(jnp.abs(logits - logits_ref)))
    assert jnp.allclose(h_final, h_ref, atol=2e-3, rtol=2e-3), \
        float(jnp.max(jnp.abs(h_final - h_ref)))

    # Single-token call mirroring the PyTorch forward signature.
    out1, h1 = rnn_forward(tokens[:1], hidden0, packed)
    out1 = jax.block_until_ready(out1)
    out1_ref, h1_ref = rnn_sequence_ref(tokens[:1], hidden0, params)
    assert jnp.allclose(out1, out1_ref, atol=2e-3, rtol=2e-3)
    assert jnp.allclose(h1, h1_ref, atol=2e-3, rtol=2e-3)

    print("KERNEL_OK")
</pallas_src>

<mosaic_0001>
module attributes {stable_mosaic.version = 11 : i64} {
  func.func @gru_seq_kernel(%arg0: memref<16x128xf32, #tpu.memory_space<vmem>>, %arg1: memref<1x128xf32, #tpu.memory_space<vmem>>, %arg2: memref<128x384xf32, #tpu.memory_space<vmem>>, %arg3: memref<128x384xf32, #tpu.memory_space<vmem>>, %arg4: memref<1x384xf32, #tpu.memory_space<vmem>>, %arg5: memref<1x384xf32, #tpu.memory_space<vmem>>, %arg6: memref<128x128xf32, #tpu.memory_space<vmem>>, %arg7: memref<1x128xf32, #tpu.memory_space<vmem>>, %arg8: memref<16x128xf32, #tpu.memory_space<vmem>>, %arg9: memref<1x128xf32, #tpu.memory_space<vmem>>, %arg10: memref<16x384xf32, #tpu.memory_space<vmem>>, %arg11: memref<16x128xf32, #tpu.memory_space<vmem>>) attributes {dimension_semantics = [], scalar_prefetch = 0 : i64, scratch_operands = 2 : i64, tpu.core_type = #tpu.core_type<tc>} {
    %c0 = arith.constant 0 : index
    %c0_0 = arith.constant 0 : index
    %0 = vector.load %arg0[%c0, %c0_0] : memref<16x128xf32, #tpu.memory_space<vmem>>, vector<16x128xf32>
    %c0_1 = arith.constant 0 : index
    %c0_2 = arith.constant 0 : index
    %1 = vector.load %arg2[%c0_1, %c0_2] : memref<128x384xf32, #tpu.memory_space<vmem>>, vector<128x384xf32>
    %cst = arith.constant dense<0.000000e+00> : vector<16x384xf32>
    %2 = tpu.matmul %0, %1, %cst {dimension_numbers = #tpu.dot_dimension_numbers<[1], [0], [0], [1], [0, 0, 1, 1], [], []>} : vector<16x128xf32>, vector<128x384xf32>, vector<16x384xf32> -> vector<16x384xf32>
    %c0_3 = arith.constant 0 : index
    %c0_4 = arith.constant 0 : index
    %3 = vector.load %arg4[%c0_3, %c0_4] : memref<1x384xf32, #tpu.memory_space<vmem>>, vector<1x384xf32>
    %4 = vector.broadcast %3 : vector<1x384xf32> to vector<16x384xf32>
    %5 = arith.addf %2, %4 : vector<16x384xf32>
    %c0_5 = arith.constant 0 : index
    %c0_6 = arith.constant 0 : index
    %6 = vector.load %arg10[%c0_5, %c0_6] : memref<16x384xf32, #tpu.memory_space<vmem>>, vector<16x384xf32>
    tpu.vector_store %arg10[%c0_5, %c0_6], %5 {strides = array<i32>} : memref<16x384xf32, #tpu.memory_space<vmem>>, vector<16x384xf32>,
    %cst_7 = arith.constant 0.000000e+00 : f32
    %7 = vector.broadcast %cst_7 : f32 to vector<16x128xf32>
    %c0_8 = arith.constant 0 : index
    %c0_9 = arith.constant 0 : index
    %8 = vector.load %arg11[%c0_8, %c0_9] : memref<16x128xf32, #tpu.memory_space<vmem>>, vector<16x128xf32>
    tpu.vector_store %arg11[%c0_8, %c0_9], %7 {strides = array<i32>} : memref<16x128xf32, #tpu.memory_space<vmem>>, vector<16x128xf32>,
    %c0_10 = arith.constant 0 : index
    %c0_11 = arith.constant 0 : index
    %9 = vector.load %arg3[%c0_10, %c0_11] : memref<128x384xf32, #tpu.memory_space<vmem>>, vector<128x384xf32>
    %c0_12 = arith.constant 0 : index
    %c0_13 = arith.constant 0 : index
    %10 = vector.load %arg5[%c0_12, %c0_13] : memref<1x384xf32, #tpu.memory_space<vmem>>, vector<1x384xf32>
    %c0_14 = arith.constant 0 : index
    %c0_15 = arith.constant 0 : index
    %11 = vector.load %arg1[%c0_14, %c0_15] : memref<1x128xf32, #tpu.memory_space<vmem>>, vector<1x128xf32>
    %c0_i32 = arith.constant 0 : i32
    %12 = arith.index_cast %c0_i32 : i32 to index
    %c0_16 = arith.constant 0 : index
    %13 = vector.load %arg10[%12, %c0_16] : memref<16x384xf32, #tpu.memory_space<vmem>>, vector<1x384xf32>
    %cst_17 = arith.constant dense<0.000000e+00> : vector<1x384xf32>
    %14 = tpu.matmul %11, %9, %cst_17 {dimension_numbers = #tpu.dot_dimension_numbers<[1], [0], [0], [1], [0, 0, 1, 1], [], []>} : vector<1x128xf32>, vector<128x384xf32>, vector<1x384xf32> -> vector<1x384xf32>
    %15 = arith.addf %14, %10 : vector<1x384xf32>
    %16 = vector.extract_strided_slice %13 {offsets = [0, 0], sizes = [1, 128], strides = [1, 1]} : vector<1x384xf32> to vector<1x128xf32>
    %17 = vector.extract_strided_slice %15 {offsets = [0, 0], sizes = [1, 128], strides = [1, 1]} : vector<1x384xf32> to vector<1x128xf32>
    %18 = arith.addf %16, %17 : vector<1x128xf32>
    %19 = arith.negf %18 : vector<1x128xf32>
    %20 = math.exp %19 : vector<1x128xf32>
    %cst_18 = arith.constant 1.000000e+00 : f32
    %21 = vector.broadcast %cst_18 : f32 to vector<1x128xf32>
    %22 = arith.addf %21, %20 : vector<1x128xf32>
    %23 = arith.divf %21, %22 : vector<1x128xf32>
    %24 = vector.extract_strided_slice %13 {offsets = [0, 128], sizes = [1, 128], strides = [1, 1]} : vector<1x384xf32> to vector<1x128xf32>
    %25 = vector.extract_strided_slice %15 {offsets = [0, 128], sizes = [1, 128], strides = [1, 1]} : vector<1x384xf32> to vector<1x128xf32>
    %26 = arith.addf %24, %25 : vector<1x128xf32>
    %27 = arith.negf %26 : vector<1x128xf32>
    %28 = math.exp %27 : vector<1x128xf32>
    %cst_19 = arith.constant 1.000000e+00 : f32
    %29 = vector.broadcast %cst_19 : f32 to vector<1x128xf32>
    %30 = arith.addf %29, %28 : vector<1x128xf32>
    %31 = arith.divf %29, %30 : vector<1x128xf32>
    %32 = vector.extract_strided_slice %13 {offsets = [0, 256], sizes = [1, 128], strides = [1, 1]} : vector<1x384xf32> to vector<1x128xf32>
    %33 = vector.extract_strided_slice %15 {offsets = [0, 256], sizes = [1, 128], strides = [1, 1]} : vector<1x384xf32> to vector<1x128xf32>
    %34 = arith.mulf %23, %33 : vector<1x128xf32>
    %35 = arith.addf %32, %34 : vector<1x128xf32>
    %36 = math.tanh %35 : vector<1x128xf32>
    %cst_20 = arith.constant 1.000000e+00 : f32
    %37 = vector.broadcast %cst_20 : f32 to vector<1x128xf32>
    %38 = arith.subf %37, %31 : vector<1x128xf32>
    %39 = arith.mulf %38, %36 : vector<1x128xf32>
    %40 = arith.mulf %31, %11 : vector<1x128xf32>
    %41 = arith.addf %39, %40 : vector<1x128xf32>
    %42 = arith.index_cast %c0_i32 : i32 to index
    %c0_21 = arith.constant 0 : index
    %43 = vector.load %arg11[%42, %c0_21] : memref<16x128xf32, #tpu.memory_space<vmem>>, vector<1x128xf32>
    tpu.vector_store %arg11[%42, %c0_21], %41 {strides = array<i32>} : memref<16x128xf32, #tpu.memory_space<vmem>>, vector<1x128xf32>,
    %c1_i32 = arith.constant 1 : i32
    %44 = arith.index_cast %c1_i32 : i32 to index
    %c0_22 = arith.constant 0 : index
    %45 = vector.load %arg10[%44, %c0_22] : memref<16x384xf32, #tpu.memory_space<vmem>>, vector<1x384xf32>
    %cst_23 = arith.constant dense<0.000000e+00> : vector<1x384xf32>
    %46 = tpu.matmul %41, %9, %cst_23 {dimension_numbers = #tpu.dot_dimension_numbers<[1], [0], [0], [1], [0, 0, 1, 1], [], []>} : vector<1x128xf32>, vector<128x384xf32>, vector<1x384xf32> -> vector<1x384xf32>
    %47 = arith.addf %46, %10 : vector<1x384xf32>
    %48 = vector.extract_strided_slice %45 {offsets = [0, 0], sizes = [1, 128], strides = [1, 1]} : vector<1x384xf32> to vector<1x128xf32>
    %49 = vector.extract_strided_slice %47 {offsets = [0, 0], sizes = [1, 128], strides = [1, 1]} : vector<1x384xf32> to vector<1x128xf32>
    %50 = arith.addf %48, %49 : vector<1x128xf32>
    %51 = arith.negf %50 : vector<1x128xf32>
    %52 = math.exp %51 : vector<1x128xf32>
    %cst_24 = arith.constant 1.000000e+00 : f32
    %53 = vector.broadcast %cst_24 : f32 to vector<1x128xf32>
    %54 = arith.addf %53, %52 : vector<1x128xf32>
    %55 = arith.divf %53, %54 : vector<1x128xf32>
    %56 = vector.extract_strided_slice %45 {offsets = [0, 128], sizes = [1, 128], strides = [1, 1]} : vector<1x384xf32> to vector<1x128xf32>
    %57 = vector.extract_strided_slice %47 {offsets = [0, 128], sizes = [1, 128], strides = [1, 1]} : vector<1x384xf32> to vector<1x128xf32>
    %58 = arith.addf %56, %57 : vector<1x128xf32>
    %59 = arith.negf %58 : vector<1x128xf32>
    %60 = math.exp %59 : vector<1x128xf32>
    %cst_25 = arith.constant 1.000000e+00 : f32
    %61 = vector.broadcast %cst_25 : f32 to vector<1x128xf32>
    %62 = arith.addf %61, %60 : vector<1x128xf32>
    %63 = arith.divf %61, %62 : vector<1x128xf32>
    %64 = vector.extract_strided_slice %45 {offsets = [0, 256], sizes = [1, 128], strides = [1, 1]} : vector<1x384xf32> to vector<1x128xf32>
    %65 = vector.extract_strided_slice %47 {offsets = [0, 256], sizes = [1, 128], strides = [1, 1]} : vector<1x384xf32> to vector<1x128xf32>
    %66 = arith.mulf %55, %65 : vector<1x128xf32>
    %67 = arith.addf %64, %66 : vector<1x128xf32>
    %68 = math.tanh %67 : vector<1x128xf32>
    %cst_26 = arith.constant 1.000000e+00 : f32
    %69 = vector.broadcast %cst_26 : f32 to vector<1x128xf32>
    %70 = arith.subf %69, %63 : vector<1x128xf32>
    %71 = arith.mulf %70, %68 : vector<1x128xf32>
    %72 = arith.mulf %63, %41 : vector<1x128xf32>
    %73 = arith.addf %71, %72 : vector<1x128xf32>
    %74 = arith.index_cast %c1_i32 : i32 to index
    %c0_27 = arith.constant 0 : index
    %75 = vector.load %arg11[%74, %c0_27] : memref<16x128xf32, #tpu.memory_space<vmem>>, vector<1x128xf32>
    tpu.vector_store %arg11[%74, %c0_27], %73 {strides = array<i32>} : memref<16x128xf32, #tpu.memory_space<vmem>>, vector<1x128xf32>,
    %c2_i32 = arith.constant 2 : i32
    %76 = arith.index_cast %c2_i32 : i32 to index
    %c0_28 = arith.constant 0 : index
    %77 = vector.load %arg10[%76, %c0_28] : memref<16x384xf32, #tpu.memory_space<vmem>>, vector<1x384xf32>
    %cst_29 = arith.constant dense<0.000000e+00> : vector<1x384xf32>
    %78 = tpu.matmul %73, %9, %cst_29 {dimension_numbers = #tpu.dot_dimension_numbers<[1], [0], [0], [1], [0, 0, 1, 1], [], []>} : vector<1x128xf32>, vector<128x384xf32>, vector<1x384xf32> -> vector<1x384xf32>
    %79 = arith.addf %78, %10 : vector<1x384xf32>
    %80 = vector.extract_strided_slice %77 {offsets = [0, 0], sizes = [1, 128], strides = [1, 1]} : vector<1x384xf32> to vector<1x128xf32>
    %81 = vector.extract_strided_slice %79 {offsets = [0, 0], sizes = [1, 128], strides = [1, 1]} : vector<1x384xf32> to vector<1x128xf32>
    %82 = arith.addf %80, %81 : vector<1x128xf32>
    %83 = arith.negf %82 : vector<1x128xf32>
    %84 = math.exp %83 : vector<1x128xf32>
    %cst_30 = arith.constant 1.000000e+00 : f32
    %85 = vector.broadcast %cst_30 : f32 to vector<1x128xf32>
    %86 = arith.addf %85, %84 : vector<1x128xf32>
    %87 = arith.divf %85, %86 : vector<1x128xf32>
    %88 = vector.extract_strided_slice %77 {offsets = [0, 128], sizes = [1, 128], strides = [1, 1]} : vector<1x384xf32> to vector<1x128xf32>
    %89 = vector.extract_strided_slice %79 {offsets = [0, 128], sizes = [1, 128], strides = [1, 1]} : vector<1x384xf32> to vector<1x128xf32>
    %90 = arith.addf %88, %89 : vector<1x128xf32>
    %91 = arith.negf %90 : vector<1x128xf32>
    %92 = math.exp %91 : vector<1x128xf32>
    %cst_31 = arith.constant 1.000000e+00 : f32
    %93 = vector.broadcast %cst_31 : f32 to vector<1x128xf32>
    %94 = arith.addf %93, %92 : vector<1x128xf32>
    %95 = arith.divf %93, %94 : vector<1x128xf32>
    %96 = vector.extract_strided_slice %77 {offsets = [0, 256], sizes = [1, 128], strides = [1, 1]} : vector<1x384xf32> to vector<1x128xf32>
    %97 = vector.extract_strided_slice %79 {offsets = [0, 256], sizes = [1, 128], strides = [1, 1]} : vector<1x384xf32> to vector<1x128xf32>
    %98 = arith.mulf %87, %97 : vector<1x128xf32>
    %99 = arith.addf %96, %98 : vector<1x128xf32>
    %100 = math.tanh %99 : vector<1x128xf32>
    %cst_32 = arith.constant 1.000000e+00 : f32
    %101 = vector.broadcast %cst_32 : f32 to vector<1x128xf32>
    %102 = arith.subf %101, %95 : vector<1x128xf32>
    %103 = arith.mulf %102, %100 : vector<1x128xf32>
    %104 = arith.mulf %95, %73 : vector<1x128xf32>
    %105 = arith.addf %103, %104 : vector<1x128xf32>
    %106 = arith.index_cast %c2_i32 : i32 to index
    %c0_33 = arith.constant 0 : index
    %107 = vector.load %arg11[%106, %c0_33] : memref<16x128xf32, #tpu.memory_space<vmem>>, vector<1x128xf32>
    tpu.vector_store %arg11[%106, %c0_33], %105 {strides = array<i32>} : memref<16x128xf32, #tpu.memory_space<vmem>>, vector<1x128xf32>,
    %c3_i32 = arith.constant 3 : i32
    %108 = arith.index_cast %c3_i32 : i32 to index
    %c0_34 = arith.constant 0 : index
    %109 = vector.load %arg10[%108, %c0_34] : memref<16x384xf32, #tpu.memory_space<vmem>>, vector<1x384xf32>
    %cst_35 = arith.constant dense<0.000000e+00> : vector<1x384xf32>
    %110 = tpu.matmul %105, %9, %cst_35 {dimension_numbers = #tpu.dot_dimension_numbers<[1], [0], [0], [1], [0, 0, 1, 1], [], []>} : vector<1x128xf32>, vector<128x384xf32>, vector<1x384xf32> -> vector<1x384xf32>
    %111 = arith.addf %110, %10 : vector<1x384xf32>
    %112 = vector.extract_strided_slice %109 {offsets = [0, 0], sizes = [1, 128], strides = [1, 1]} : vector<1x384xf32> to vector<1x128xf32>
    %113 = vector.extract_strided_slice %111 {offsets = [0, 0], sizes = [1, 128], strides = [1, 1]} : vector<1x384xf32> to vector<1x128xf32>
    %114 = arith.addf %112, %113 : vector<1x128xf32>
    %115 = arith.negf %114 : vector<1x128xf32>
    %116 = math.exp %115 : vector<1x128xf32>
    %cst_36 = arith.constant 1.000000e+00 : f32
    %117 = vector.broadcast %cst_36 : f32 to vector<1x128xf32>
    %118 = arith.addf %117, %116 : vector<1x128xf32>
    %119 = arith.divf %117, %118 : vector<1x128xf32>
    %120 = vector.extract_strided_slice %109 {offsets = [0, 128], sizes = [1, 128], strides = [1, 1]} : vector<1x384xf32> to vector<1x128xf32>
    %121 = vector.extract_strided_slice %111 {offsets = [0, 128], sizes = [1, 128], strides = [1, 1]} : vector<1x384xf32> to vector<1x128xf32>
    %122 = arith.addf %120, %121 : vector<1x128xf32>
    %123 = arith.negf %122 : vector<1x128xf32>
    %124 = math.exp %123 : vector<1x128xf32>
    %cst_37 = arith.constant 1.000000e+00 : f32
    %125 = vector.broadcast %cst_37 : f32 to vector<1x128xf32>
    %126 = arith.addf %125, %124 : vector<1x128xf32>
    %127 = arith.divf %125, %126 : vector<1x128xf32>
    %128 = vector.extract_strided_slice %109 {offsets = [0, 256], sizes = [1, 128], strides = [1, 1]} : vector<1x384xf32> to vector<1x128xf32>
    %129 = vector.extract_strided_slice %111 {offsets = [0, 256], sizes = [1, 128], strides = [1, 1]} : vector<1x384xf32> to vector<1x128xf32>
    %130 = arith.mulf %119, %129 : vector<1x128xf32>
    %131 = arith.addf %128, %130 : vector<1x128xf32>
    %132 = math.tanh %131 : vector<1x128xf32>
    %cst_38 = arith.constant 1.000000e+00 : f32
    %133 = vector.broadcast %cst_38 : f32 to vector<1x128xf32>
    %134 = arith.subf %133, %127 : vector<1x128xf32>
    %135 = arith.mulf %134, %132 : vector<1x128xf32>
    %136 = arith.mulf %127, %105 : vector<1x128xf32>
    %137 = arith.addf %135, %136 : vector<1x128xf32>
    %138 = arith.index_cast %c3_i32 : i32 to index
    %c0_39 = arith.constant 0 : index
    %139 = vector.load %arg11[%138, %c0_39] : memref<16x128xf32, #tpu.memory_space<vmem>>, vector<1x128xf32>
    tpu.vector_store %arg11[%138, %c0_39], %137 {strides = array<i32>} : memref<16x128xf32, #tpu.memory_space<vmem>>, vector<1x128xf32>,
    %c4_i32 = arith.constant 4 : i32
    %140 = arith.index_cast %c4_i32 : i32 to index
    %c0_40 = arith.constant 0 : index
    %141 = vector.load %arg10[%140, %c0_40] : memref<16x384xf32, #tpu.memory_space<vmem>>, vector<1x384xf32>
    %cst_41 = arith.constant dense<0.000000e+00> : vector<1x384xf32>
    %142 = tpu.matmul %137, %9, %cst_41 {dimension_numbers = #tpu.dot_dimension_numbers<[1], [0], [0], [1], [0, 0, 1, 1], [], []>} : vector<1x128xf32>, vector<128x384xf32>, vector<1x384xf32> -> vector<1x384xf32>
    %143 = arith.addf %142, %10 : vector<1x384xf32>
    %144 = vector.extract_strided_slice %141 {offsets = [0, 0], sizes = [1, 128], strides = [1, 1]} : vector<1x384xf32> to vector<1x128xf32>
    %145 = vector.extract_strided_slice %143 {offsets = [0, 0], sizes = [1, 128], strides = [1, 1]} : vector<1x384xf32> to vector<1x128xf32>
    %146 = arith.addf %144, %145 : vector<1x128xf32>
    %147 = arith.negf %146 : vector<1x128xf32>
    %148 = math.exp %147 : vector<1x128xf32>
    %cst_42 = arith.constant 1.000000e+00 : f32
    %149 = vector.broadcast %cst_42 : f32 to vector<1x128xf32>
    %150 = arith.addf %149, %148 : vector<1x128xf32>
    %151 = arith.divf %149, %150 : vector<1x128xf32>
    %152 = vector.extract_strided_slice %141 {offsets = [0, 128], sizes = [1, 128], strides = [1, 1]} : vector<1x384xf32> to vector<1x128xf32>
    %153 = vector.extract_strided_slice %143 {offsets = [0, 128], sizes = [1, 128], strides = [1, 1]} : vector<1x384xf32> to vector<1x128xf32>
    %154 = arith.addf %152, %153 : vector<1x128xf32>
    %155 = arith.negf %154 : vector<1x128xf32>
    %156 = math.exp %155 : vector<1x128xf32>
    %cst_43 = arith.constant 1.000000e+00 : f32
    %157 = vector.broadcast %cst_43 : f32 to vector<1x128xf32>
    %158 = arith.addf %157, %156 : vector<1x128xf32>
    %159 = arith.divf %157, %158 : vector<1x128xf32>
    %160 = vector.extract_strided_slice %141 {offsets = [0, 256], sizes = [1, 128], strides = [1, 1]} : vector<1x384xf32> to vector<1x128xf32>
    %161 = vector.extract_strided_slice %143 {offsets = [0, 256], sizes = [1, 128], strides = [1, 1]} : vector<1x384xf32> to vector<1x128xf32>
    %162 = arith.mulf %151, %161 : vector<1x128xf32>
    %163 = arith.addf %160, %162 : vector<1x128xf32>
    %164 = math.tanh %163 : vector<1x128xf32>
    %cst_44 = arith.constant 1.000000e+00 : f32
    %165 = vector.broadcast %cst_44 : f32 to vector<1x128xf32>
    %166 = arith.subf %165, %159 : vector<1x128xf32>
    %167 = arith.mulf %166, %164 : vector<1x128xf32>
    %168 = arith.mulf %159, %137 : vector<1x128xf32>
    %169 = arith.addf %167, %168 : vector<1x128xf32>
    %170 = arith.index_cast %c4_i32 : i32 to index
    %c0_45 = arith.constant 0 : index
    %171 = vector.load %arg11[%170, %c0_45] : memref<16x128xf32, #tpu.memory_space<vmem>>, vector<1x128xf32>
    tpu.vector_store %arg11[%170, %c0_45], %169 {strides = array<i32>} : memref<16x128xf32, #tpu.memory_space<vmem>>, vector<1x128xf32>,
    %c5_i32 = arith.constant 5 : i32
    %172 = arith.index_cast %c5_i32 : i32 to index
    %c0_46 = arith.constant 0 : index
    %173 = vector.load %arg10[%172, %c0_46] : memref<16x384xf32, #tpu.memory_space<vmem>>, vector<1x384xf32>
    %cst_47 = arith.constant dense<0.000000e+00> : vector<1x384xf32>
    %174 = tpu.matmul %169, %9, %cst_47 {dimension_numbers = #tpu.dot_dimension_numbers<[1], [0], [0], [1], [0, 0, 1, 1], [], []>} : vector<1x128xf32>, vector<128x384xf32>, vector<1x384xf32> -> vector<1x384xf32>
    %175 = arith.addf %174, %10 : vector<1x384xf32>
    %176 = vector.extract_strided_slice %173 {offsets = [0, 0], sizes = [1, 128], strides = [1, 1]} : vector<1x384xf32> to vector<1x128xf32>
    %177 = vector.extract_strided_slice %175 {offsets = [0, 0], sizes = [1, 128], strides = [1, 1]} : vector<1x384xf32> to vector<1x128xf32>
    %178 = arith.addf %176, %177 : vector<1x128xf32>
    %179 = arith.negf %178 : vector<1x128xf32>
    %180 = math.exp %179 : vector<1x128xf32>
    %cst_48 = arith.constant 1.000000e+00 : f32
    %181 = vector.broadcast %cst_48 : f32 to vector<1x128xf32>
    %182 = arith.addf %181, %180 : vector<1x128xf32>
    %183 = arith.divf %181, %182 : vector<1x128xf32>
    %184 = vector.extract_strided_slice %173 {offsets = [0, 128], sizes = [1, 128], strides = [1, 1]} : vector<1x384xf32> to vector<1x128xf32>
    %185 = vector.extract_strided_slice %175 {offsets = [0, 128], sizes = [1, 128], strides = [1, 1]} : vector<1x384xf32> to vector<1x128xf32>
    %186 = arith.addf %184, %185 : vector<1x128xf32>
    %187 = arith.negf %186 : vector<1x128xf32>
    %188 = math.exp %187 : vector<1x128xf32>
    %cst_49 = arith.constant 1.000000e+00 : f32
    %189 = vector.broadcast %cst_49 : f32 to vector<1x128xf32>
    %190 = arith.addf %189, %188 : vector<1x128xf32>
    %191 = arith.divf %189, %190 : vector<1x128xf32>
    %192 = vector.extract_strided_slice %173 {offsets = [0, 256], sizes = [1, 128], strides = [1, 1]} : vector<1x384xf32> to vector<1x128xf32>
    %193 = vector.extract_strided_slice %175 {offsets = [0, 256], sizes = [1, 128], strides = [1, 1]} : vector<1x384xf32> to vector<1x128xf32>
    %194 = arith.mulf %183, %193 : vector<1x128xf32>
    %195 = arith.addf %192, %194 : vector<1x128xf32>
    %196 = math.tanh %195 : vector<1x128xf32>
    %cst_50 = arith.constant 1.000000e+00 : f32
    %197 = vector.broadcast %cst_50 : f32 to vector<1x128xf32>
    %198 = arith.subf %197, %191 : vector<1x128xf32>
    %199 = arith.mulf %198, %196 : vector<1x128xf32>
    %200 = arith.mulf %191, %169 : vector<1x128xf32>
    %201 = arith.addf %199, %200 : vector<1x128xf32>
    %202 = arith.index_cast %c5_i32 : i32 to index
    %c0_51 = arith.constant 0 : index
    %203 = vector.load %arg11[%202, %c0_51] : memref<16x128xf32, #tpu.memory_space<vmem>>, vector<1x128xf32>
    tpu.vector_store %arg11[%202, %c0_51], %201 {strides = array<i32>} : memref<16x128xf32, #tpu.memory_space<vmem>>, vector<1x128xf32>,
    %c6_i32 = arith.constant 6 : i32
    %204 = arith.index_cast %c6_i32 : i32 to index
    %c0_52 = arith.constant 0 : index
    %205 = vector.load %arg10[%204, %c0_52] : memref<16x384xf32, #tpu.memory_space<vmem>>, vector<1x384xf32>
    %cst_53 = arith.constant dense<0.000000e+00> : vector<1x384xf32>
    %206 = tpu.matmul %201, %9, %cst_53 {dimension_numbers = #tpu.dot_dimension_numbers<[1], [0], [0], [1], [0, 0, 1, 1], [], []>} : vector<1x128xf32>, vector<128x384xf32>, vector<1x384xf32> -> vector<1x384xf32>
    %207 = arith.addf %206, %10 : vector<1x384xf32>
    %208 = vector.extract_strided_slice %205 {offsets = [0, 0], sizes = [1, 128], strides = [1, 1]} : vector<1x384xf32> to vector<1x128xf32>
    %209 = vector.extract_strided_slice %207 {offsets = [0, 0], sizes = [1, 128], strides = [1, 1]} : vector<1x384xf32> to vector<1x128xf32>
    %210 = arith.addf %208, %209 : vector<1x128xf32>
    %211 = arith.negf %210 : vector<1x128xf32>
    %212 = math.exp %211 : vector<1x128xf32>
    %cst_54 = arith.constant 1.000000e+00 : f32
    %213 = vector.broadcast %cst_54 : f32 to vector<1x128xf32>
    %214 = arith.addf %213, %212 : vector<1x128xf32>
    %215 = arith.divf %213, %214 : vector<1x128xf32>
    %216 = vector.extract_strided_slice %205 {offsets = [0, 128], sizes = [1, 128], strides = [1, 1]} : vector<1x384xf32> to vector<1x128xf32>
    %217 = vector.extract_strided_slice %207 {offsets = [0, 128], sizes = [1, 128], strides = [1, 1]} : vector<1x384xf32> to vector<1x128xf32>
    %218 = arith.addf %216, %217 : vector<1x128xf32>
    %219 = arith.negf %218 : vector<1x128xf32>
    %220 = math.exp %219 : vector<1x128xf32>
    %cst_55 = arith.constant 1.000000e+00 : f32
    %221 = vector.broadcast %cst_55 : f32 to vector<1x128xf32>
    %222 = arith.addf %221, %220 : vector<1x128xf32>
    %223 = arith.divf %221, %222 : vector<1x128xf32>
    %224 = vector.extract_strided_slice %205 {offsets = [0, 256], sizes = [1, 128], strides = [1, 1]} : vector<1x384xf32> to vector<1x128xf32>
    %225 = vector.extract_strided_slice %207 {offsets = [0, 256], sizes = [1, 128], strides = [1, 1]} : vector<1x384xf32> to vector<1x128xf32>
    %226 = arith.mulf %215, %225 : vector<1x128xf32>
    %227 = arith.addf %224, %226 : vector<1x128xf32>
    %228 = math.tanh %227 : vector<1x128xf32>
    %cst_56 = arith.constant 1.000000e+00 : f32
    %229 = vector.broadcast %cst_56 : f32 to vector<1x128xf32>
    %230 = arith.subf %229, %223 : vector<1x128xf32>
    %231 = arith.mulf %230, %228 : vector<1x128xf32>
    %232 = arith.mulf %223, %201 : vector<1x128xf32>
    %233 = arith.addf %231, %232 : vector<1x128xf32>
    %234 = arith.index_cast %c6_i32 : i32 to index
    %c0_57 = arith.constant 0 : index
    %235 = vector.load %arg11[%234, %c0_57] : memref<16x128xf32, #tpu.memory_space<vmem>>, vector<1x128xf32>
    tpu.vector_store %arg11[%234, %c0_57], %233 {strides = array<i32>} : memref<16x128xf32, #tpu.memory_space<vmem>>, vector<1x128xf32>,
    %c7_i32 = arith.constant 7 : i32
    %236 = arith.index_cast %c7_i32 : i32 to index
    %c0_58 = arith.constant 0 : index
    %237 = vector.load %arg10[%236, %c0_58] : memref<16x384xf32, #tpu.memory_space<vmem>>, vector<1x384xf32>
    %cst_59 = arith.constant dense<0.000000e+00> : vector<1x384xf32>
    %238 = tpu.matmul %233, %9, %cst_59 {dimension_numbers = #tpu.dot_dimension_numbers<[1], [0], [0], [1], [0, 0, 1, 1], [], []>} : vector<1x128xf32>, vector<128x384xf32>, vector<1x384xf32> -> vector<1x384xf32>
    %239 = arith.addf %238, %10 : vector<1x384xf32>
    %240 = vector.extract_strided_slice %237 {offsets = [0, 0], sizes = [1, 128], strides = [1, 1]} : vector<1x384xf32> to vector<1x128xf32>
    %241 = vector.extract_strided_slice %239 {offsets = [0, 0], sizes = [1, 128], strides = [1, 1]} : vector<1x384xf32> to vector<1x128xf32>
    %242 = arith.addf %240, %241 : vector<1x128xf32>
    %243 = arith.negf %242 : vector<1x128xf32>
    %244 = math.exp %243 : vector<1x128xf32>
    %cst_60 = arith.constant 1.000000e+00 : f32
    %245 = vector.broadcast %cst_60 : f32 to vector<1x128xf32>
    %246 = arith.addf %245, %244 : vector<1x128xf32>
    %247 = arith.divf %245, %246 : vector<1x128xf32>
    %248 = vector.extract_strided_slice %237 {offsets = [0, 128], sizes = [1, 128], strides = [1, 1]} : vector<1x384xf32> to vector<1x128xf32>
    %249 = vector.extract_strided_slice %239 {offsets = [0, 128], sizes = [1, 128], strides = [1, 1]} : vector<1x384xf32> to vector<1x128xf32>
    %250 = arith.addf %248, %249 : vector<1x128xf32>
    %251 = arith.negf %250 : vector<1x128xf32>
    %252 = math.exp %251 : vector<1x128xf32>
    %cst_61 = arith.constant 1.000000e+00 : f32
    %253 = vector.broadcast %cst_61 : f32 to vector<1x128xf32>
    %254 = arith.addf %253, %252 : vector<1x128xf32>
    %255 = arith.divf %253, %254 : vector<1x128xf32>
    %256 = vector.extract_strided_slice %237 {offsets = [0, 256], sizes = [1, 128], strides = [1, 1]} : vector<1x384xf32> to vector<1x128xf32>
    %257 = vector.extract_strided_slice %239 {offsets = [0, 256], sizes = [1, 128], strides = [1, 1]} : vector<1x384xf32> to vector<1x128xf32>
    %258 = arith.mulf %247, %257 : vector<1x128xf32>
    %259 = arith.addf %256, %258 : vector<1x128xf32>
    %260 = math.tanh %259 : vector<1x128xf32>
    %cst_62 = arith.constant 1.000000e+00 : f32
    %261 = vector.broadcast %cst_62 : f32 to vector<1x128xf32>
    %262 = arith.subf %261, %255 : vector<1x128xf32>
    %263 = arith.mulf %262, %260 : vector<1x128xf32>
    %264 = arith.mulf %255, %233 : vector<1x128xf32>
    %265 = arith.addf %263, %264 : vector<1x128xf32>
    %266 = arith.index_cast %c7_i32 : i32 to index
    %c0_63 = arith.constant 0 : index
    %267 = vector.load %arg11[%266, %c0_63] : memref<16x128xf32, #tpu.memory_space<vmem>>, vector<1x128xf32>
    tpu.vector_store %arg11[%266, %c0_63], %265 {strides = array<i32>} : memref<16x128xf32, #tpu.memory_space<vmem>>, vector<1x128xf32>,
    %c8_i32 = arith.constant 8 : i32
    %268 = arith.index_cast %c8_i32 : i32 to index
    %c0_64 = arith.constant 0 : index
    %269 = vector.load %arg10[%268, %c0_64] : memref<16x384xf32, #tpu.memory_space<vmem>>, vector<1x384xf32>
    %cst_65 = arith.constant dense<0.000000e+00> : vector<1x384xf32>
    %270 = tpu.matmul %265, %9, %cst_65 {dimension_numbers = #tpu.dot_dimension_numbers<[1], [0], [0], [1], [0, 0, 1, 1], [], []>} : vector<1x128xf32>, vector<128x384xf32>, vector<1x384xf32> -> vector<1x384xf32>
    %271 = arith.addf %270, %10 : vector<1x384xf32>
    %272 = vector.extract_strided_slice %269 {offsets = [0, 0], sizes = [1, 128], strides = [1, 1]} : vector<1x384xf32> to vector<1x128xf32>
    %273 = vector.extract_strided_slice %271 {offsets = [0, 0], sizes = [1, 128], strides = [1, 1]} : vector<1x384xf32> to vector<1x128xf32>
    %274 = arith.addf %272, %273 : vector<1x128xf32>
    %275 = arith.negf %274 : vector<1x128xf32>
    %276 = math.exp %275 : vector<1x128xf32>
    %cst_66 = arith.constant 1.000000e+00 : f32
    %277 = vector.broadcast %cst_66 : f32 to vector<1x128xf32>
    %278 = arith.addf %277, %276 : vector<1x128xf32>
    %279 = arith.divf %277, %278 : vector<1x128xf32>
    %280 = vector.extract_strided_slice %269 {offsets = [0, 128], sizes = [1, 128], strides = [1, 1]} : vector<1x384xf32> to vector<1x128xf32>
    %281 = vector.extract_strided_slice %271 {offsets = [0, 128], sizes = [1, 128], strides = [1, 1]} : vector<1x384xf32> to vector<1x128xf32>
    %282 = arith.addf %280, %281 : vector<1x128xf32>
    %283 = arith.negf %282 : vector<1x128xf32>
    %284 = math.exp %283 : vector<1x128xf32>
    %cst_67 = arith.constant 1.000000e+00 : f32
    %285 = vector.broadcast %cst_67 : f32 to vector<1x128xf32>
    %286 = arith.addf %285, %284 : vector<1x128xf32>
    %287 = arith.divf %285, %286 : vector<1x128xf32>
    %288 = vector.extract_strided_slice %269 {offsets = [0, 256], sizes = [1, 128], strides = [1, 1]} : vector<1x384xf32> to vector<1x128xf32>
    %289 = vector.extract_strided_slice %271 {offsets = [0, 256], sizes = [1, 128], strides = [1, 1]} : vector<1x384xf32> to vector<1x128xf32>
    %290 = arith.mulf %279, %289 : vector<1x128xf32>
    %291 = arith.addf %288, %290 : vector<1x128xf32>
    %292 = math.tanh %291 : vector<1x128xf32>
    %cst_68 = arith.constant 1.000000e+00 : f32
    %293 = vector.broadcast %cst_68 : f32 to vector<1x128xf32>
    %294 = arith.subf %293, %287 : vector<1x128xf32>
    %295 = arith.mulf %294, %292 : vector<1x128xf32>
    %296 = arith.mulf %287, %265 : vector<1x128xf32>
    %297 = arith.addf %295, %296 : vector<1x128xf32>
    %298 = arith.index_cast %c8_i32 : i32 to index
    %c0_69 = arith.constant 0 : index
    %299 = vector.load %arg11[%298, %c0_69] : memref<16x128xf32, #tpu.memory_space<vmem>>, vector<1x128xf32>
    tpu.vector_store %arg11[%298, %c0_69], %297 {strides = array<i32>} : memref<16x128xf32, #tpu.memory_space<vmem>>, vector<1x128xf32>,
    %c9_i32 = arith.constant 9 : i32
    %300 = arith.index_cast %c9_i32 : i32 to index
    %c0_70 = arith.constant 0 : index
    %301 = vector.load %arg10[%300, %c0_70] : memref<16x384xf32, #tpu.memory_space<vmem>>, vector<1x384xf32>
    %cst_71 = arith.constant dense<0.000000e+00> : vector<1x384xf32>
    %302 = tpu.matmul %297, %9, %cst_71 {dimension_numbers = #tpu.dot_dimension_numbers<[1], [0], [0], [1], [0, 0, 1, 1], [], []>} : vector<1x128xf32>, vector<128x384xf32>, vector<1x384xf32> -> vector<1x384xf32>
    %303 = arith.addf %302, %10 : vector<1x384xf32>
    %304 = vector.extract_strided_slice %301 {offsets = [0, 0], sizes = [1, 128], strides = [1, 1]} : vector<1x384xf32> to vector<1x128xf32>
    %305 = vector.extract_strided_slice %303 {offsets = [0, 0], sizes = [1, 128], strides = [1, 1]} : vector<1x384xf32> to vector<1x128xf32>
    %306 = arith.addf %304, %305 : vector<1x128xf32>
    %307 = arith.negf %306 : vector<1x128xf32>
    %308 = math.exp %307 : vector<1x128xf32>
    %cst_72 = arith.constant 1.000000e+00 : f32
    %309 = vector.broadcast %cst_72 : f32 to vector<1x128xf32>
    %310 = arith.addf %309, %308 : vector<1x128xf32>
    %311 = arith.divf %309, %310 : vector<1x128xf32>
    %312 = vector.extract_strided_slice %301 {offsets = [0, 128], sizes = [1, 128], strides = [1, 1]} : vector<1x384xf32> to vector<1x128xf32>
    %313 = vector.extract_strided_slice %303 {offsets = [0, 128], sizes = [1, 128], strides = [1, 1]} : vector<1x384xf32> to vector<1x128xf32>
    %314 = arith.addf %312, %313 : vector<1x128xf32>
    %315 = arith.negf %314 : vector<1x128xf32>
    %316 = math.exp %315 : vector<1x128xf32>
    %cst_73 = arith.constant 1.000000e+00 : f32
    %317 = vector.broadcast %cst_73 : f32 to vector<1x128xf32>
    %318 = arith.addf %317, %316 : vector<1x128xf32>
    %319 = arith.divf %317, %318 : vector<1x128xf32>
    %320 = vector.extract_strided_slice %301 {offsets = [0, 256], sizes = [1, 128], strides = [1, 1]} : vector<1x384xf32> to vector<1x128xf32>
    %321 = vector.extract_strided_slice %303 {offsets = [0, 256], sizes = [1, 128], strides = [1, 1]} : vector<1x384xf32> to vector<1x128xf32>
    %322 = arith.mulf %311, %321 : vector<1x128xf32>
    %323 = arith.addf %320, %322 : vector<1x128xf32>
    %324 = math.tanh %323 : vector<1x128xf32>
    %cst_74 = arith.constant 1.000000e+00 : f32
    %325 = vector.broadcast %cst_74 : f32 to vector<1x128xf32>
    %326 = arith.subf %325, %319 : vector<1x128xf32>
    %327 = arith.mulf %326, %324 : vector<1x128xf32>
    %328 = arith.mulf %319, %297 : vector<1x128xf32>
    %329 = arith.addf %327, %328 : vector<1x128xf32>
    %330 = arith.index_cast %c9_i32 : i32 to index
    %c0_75 = arith.constant 0 : index
    %331 = vector.load %arg11[%330, %c0_75] : memref<16x128xf32, #tpu.memory_space<vmem>>, vector<1x128xf32>
    tpu.vector_store %arg11[%330, %c0_75], %329 {strides = array<i32>} : memref<16x128xf32, #tpu.memory_space<vmem>>, vector<1x128xf32>,
    %c10_i32 = arith.constant 10 : i32
    %332 = arith.index_cast %c10_i32 : i32 to index
    %c0_76 = arith.constant 0 : index
    %333 = vector.load %arg10[%332, %c0_76] : memref<16x384xf32, #tpu.memory_space<vmem>>, vector<1x384xf32>
    %cst_77 = arith.constant dense<0.000000e+00> : vector<1x384xf32>
    %334 = tpu.matmul %329, %9, %cst_77 {dimension_numbers = #tpu.dot_dimension_numbers<[1], [0], [0], [1], [0, 0, 1, 1], [], []>} : vector<1x128xf32>, vector<128x384xf32>, vector<1x384xf32> -> vector<1x384xf32>
    %335 = arith.addf %334, %10 : vector<1x384xf32>
    %336 = vector.extract_strided_slice %333 {offsets = [0, 0], sizes = [1, 128], strides = [1, 1]} : vector<1x384xf32> to vector<1x128xf32>
    %337 = vector.extract_strided_slice %335 {offsets = [0, 0], sizes = [1, 128], strides = [1, 1]} : vector<1x384xf32> to vector<1x128xf32>
    %338 = arith.addf %336, %337 : vector<1x128xf32>
    %339 = arith.negf %338 : vector<1x128xf32>
    %340 = math.exp %339 : vector<1x128xf32>
    %cst_78 = arith.constant 1.000000e+00 : f32
    %341 = vector.broadcast %cst_78 : f32 to vector<1x128xf32>
    %342 = arith.addf %341, %340 : vector<1x128xf32>
    %343 = arith.divf %341, %342 : vector<1x128xf32>
    %344 = vector.extract_strided_slice %333 {offsets = [0, 128], sizes = [1, 128], strides = [1, 1]} : vector<1x384xf32> to vector<1x128xf32>
    %345 = vector.extract_strided_slice %335 {offsets = [0, 128], sizes = [1, 128], strides = [1, 1]} : vector<1x384xf32> to vector<1x128xf32>
    %346 = arith.addf %344, %345 : vector<1x128xf32>
    %347 = arith.negf %346 : vector<1x128xf32>
    %348 = math.exp %347 : vector<1x128xf32>
    %cst_79 = arith.constant 1.000000e+00 : f32
    %349 = vector.broadcast %cst_79 : f32 to vector<1x128xf32>
    %350 = arith.addf %349, %348 : vector<1x128xf32>
    %351 = arith.divf %349, %350 : vector<1x128xf32>
    %352 = vector.extract_strided_slice %333 {offsets = [0, 256], sizes = [1, 128], strides = [1, 1]} : vector<1x384xf32> to vector<1x128xf32>
    %353 = vector.extract_strided_slice %335 {offsets = [0, 256], sizes = [1, 128], strides = [1, 1]} : vector<1x384xf32> to vector<1x128xf32>
    %354 = arith.mulf %343, %353 : vector<1x128xf32>
    %355 = arith.addf %352, %354 : vector<1x128xf32>
    %356 = math.tanh %355 : vector<1x128xf32>
    %cst_80 = arith.constant 1.000000e+00 : f32
    %357 = vector.broadcast %cst_80 : f32 to vector<1x128xf32>
    %358 = arith.subf %357, %351 : vector<1x128xf32>
    %359 = arith.mulf %358, %356 : vector<1x128xf32>
    %360 = arith.mulf %351, %329 : vector<1x128xf32>
    %361 = arith.addf %359, %360 : vector<1x128xf32>
    %362 = arith.index_cast %c10_i32 : i32 to index
    %c0_81 = arith.constant 0 : index
    %363 = vector.load %arg11[%362, %c0_81] : memref<16x128xf32, #tpu.memory_space<vmem>>, vector<1x128xf32>
    tpu.vector_store %arg11[%362, %c0_81], %361 {strides = array<i32>} : memref<16x128xf32, #tpu.memory_space<vmem>>, vector<1x128xf32>,
    %c11_i32 = arith.constant 11 : i32
    %364 = arith.index_cast %c11_i32 : i32 to index
    %c0_82 = arith.constant 0 : index
    %365 = vector.load %arg10[%364, %c0_82] : memref<16x384xf32, #tpu.memory_space<vmem>>, vector<1x384xf32>
    %cst_83 = arith.constant dense<0.000000e+00> : vector<1x384xf32>
    %366 = tpu.matmul %361, %9, %cst_83 {dimension_numbers = #tpu.dot_dimension_numbers<[1], [0], [0], [1], [0, 0, 1, 1], [], []>} : vector<1x128xf32>, vector<128x384xf32>, vector<1x384xf32> -> vector<1x384xf32>
    %367 = arith.addf %366, %10 : vector<1x384xf32>
    %368 = vector.extract_strided_slice %365 {offsets = [0, 0], sizes = [1, 128], strides = [1, 1]} : vector<1x384xf32> to vector<1x128xf32>
    %369 = vector.extract_strided_slice %367 {offsets = [0, 0], sizes = [1, 128], strides = [1, 1]} : vector<1x384xf32> to vector<1x128xf32>
    %370 = arith.addf %368, %369 : vector<1x128xf32>
    %371 = arith.negf %370 : vector<1x128xf32>
    %372 = math.exp %371 : vector<1x128xf32>
    %cst_84 = arith.constant 1.000000e+00 : f32
    %373 = vector.broadcast %cst_84 : f32 to vector<1x128xf32>
    %374 = arith.addf %373, %372 : vector<1x128xf32>
    %375 = arith.divf %373, %374 : vector<1x128xf32>
    %376 = vector.extract_strided_slice %365 {offsets = [0, 128], sizes = [1, 128], strides = [1, 1]} : vector<1x384xf32> to vector<1x128xf32>
    %377 = vector.extract_strided_slice %367 {offsets = [0, 128], sizes = [1, 128], strides = [1, 1]} : vector<1x384xf32> to vector<1x128xf32>
    %378 = arith.addf %376, %377 : vector<1x128xf32>
    %379 = arith.negf %378 : vector<1x128xf32>
    %380 = math.exp %379 : vector<1x128xf32>
    %cst_85 = arith.constant 1.000000e+00 : f32
    %381 = vector.broadcast %cst_85 : f32 to vector<1x128xf32>
    %382 = arith.addf %381, %380 : vector<1x128xf32>
    %383 = arith.divf %381, %382 : vector<1x128xf32>
    %384 = vector.extract_strided_slice %365 {offsets = [0, 256], sizes = [1, 128], strides = [1, 1]} : vector<1x384xf32> to vector<1x128xf32>
    %385 = vector.extract_strided_slice %367 {offsets = [0, 256], sizes = [1, 128], strides = [1, 1]} : vector<1x384xf32> to vector<1x128xf32>
    %386 = arith.mulf %375, %385 : vector<1x128xf32>
    %387 = arith.addf %384, %386 : vector<1x128xf32>
    %388 = math.tanh %387 : vector<1x128xf32>
    %cst_86 = arith.constant 1.000000e+00 : f32
    %389 = vector.broadcast %cst_86 : f32 to vector<1x128xf32>
    %390 = arith.subf %389, %383 : vector<1x128xf32>
    %391 = arith.mulf %390, %388 : vector<1x128xf32>
    %392 = arith.mulf %383, %361 : vector<1x128xf32>
    %393 = arith.addf %391, %392 : vector<1x128xf32>
    %394 = arith.index_cast %c11_i32 : i32 to index
    %c0_87 = arith.constant 0 : index
    %395 = vector.load %arg11[%394, %c0_87] : memref<16x128xf32, #tpu.memory_space<vmem>>, vector<1x128xf32>
    tpu.vector_store %arg11[%394, %c0_87], %393 {strides = array<i32>} : memref<16x128xf32, #tpu.memory_space<vmem>>, vector<1x128xf32>,
    %c12_i32 = arith.constant 12 : i32
    %396 = arith.index_cast %c12_i32 : i32 to index
    %c0_88 = arith.constant 0 : index
    %397 = vector.load %arg10[%396, %c0_88] : memref<16x384xf32, #tpu.memory_space<vmem>>, vector<1x384xf32>
    %cst_89 = arith.constant dense<0.000000e+00> : vector<1x384xf32>
    %398 = tpu.matmul %393, %9, %cst_89 {dimension_numbers = #tpu.dot_dimension_numbers<[1], [0], [0], [1], [0, 0, 1, 1], [], []>} : vector<1x128xf32>, vector<128x384xf32>, vector<1x384xf32> -> vector<1x384xf32>
    %399 = arith.addf %398, %10 : vector<1x384xf32>
    %400 = vector.extract_strided_slice %397 {offsets = [0, 0], sizes = [1, 128], strides = [1, 1]} : vector<1x384xf32> to vector<1x128xf32>
    %401 = vector.extract_strided_slice %399 {offsets = [0, 0], sizes = [1, 128], strides = [1, 1]} : vector<1x384xf32> to vector<1x128xf32>
    %402 = arith.addf %400, %401 : vector<1x128xf32>
    %403 = arith.negf %402 : vector<1x128xf32>
    %404 = math.exp %403 : vector<1x128xf32>
    %cst_90 = arith.constant 1.000000e+00 : f32
    %405 = vector.broadcast %cst_90 : f32 to vector<1x128xf32>
    %406 = arith.addf %405, %404 : vector<1x128xf32>
    %407 = arith.divf %405, %406 : vector<1x128xf32>
    %408 = vector.extract_strided_slice %397 {offsets = [0, 128], sizes = [1, 128], strides = [1, 1]} : vector<1x384xf32> to vector<1x128xf32>
    %409 = vector.extract_strided_slice %399 {offsets = [0, 128], sizes = [1, 128], strides = [1, 1]} : vector<1x384xf32> to vector<1x128xf32>
    %410 = arith.addf %408, %409 : vector<1x128xf32>
    %411 = arith.negf %410 : vector<1x128xf32>
    %412 = math.exp %411 : vector<1x128xf32>
    %cst_91 = arith.constant 1.000000e+00 : f32
    %413 = vector.broadcast %cst_91 : f32 to vector<1x128xf32>
    %414 = arith.addf %413, %412 : vector<1x128xf32>
    %415 = arith.divf %413, %414 : vector<1x128xf32>
    %416 = vector.extract_strided_slice %397 {offsets = [0, 256], sizes = [1, 128], strides = [1, 1]} : vector<1x384xf32> to vector<1x128xf32>
    %417 = vector.extract_strided_slice %399 {offsets = [0, 256], sizes = [1, 128], strides = [1, 1]} : vector<1x384xf32> to vector<1x128xf32>
    %418 = arith.mulf %407, %417 : vector<1x128xf32>
    %419 = arith.addf %416, %418 : vector<1x128xf32>
    %420 = math.tanh %419 : vector<1x128xf32>
    %cst_92 = arith.constant 1.000000e+00 : f32
    %421 = vector.broadcast %cst_92 : f32 to vector<1x128xf32>
    %422 = arith.subf %421, %415 : vector<1x128xf32>
    %423 = arith.mulf %422, %420 : vector<1x128xf32>
    %424 = arith.mulf %415, %393 : vector<1x128xf32>
    %425 = arith.addf %423, %424 : vector<1x128xf32>
    %426 = arith.index_cast %c12_i32 : i32 to index
    %c0_93 = arith.constant 0 : index
    %427 = vector.load %arg11[%426, %c0_93] : memref<16x128xf32, #tpu.memory_space<vmem>>, vector<1x128xf32>
    tpu.vector_store %arg11[%426, %c0_93], %425 {strides = array<i32>} : memref<16x128xf32, #tpu.memory_space<vmem>>, vector<1x128xf32>,
    %c13_i32 = arith.constant 13 : i32
    %428 = arith.index_cast %c13_i32 : i32 to index
    %c0_94 = arith.constant 0 : index
    %429 = vector.load %arg10[%428, %c0_94] : memref<16x384xf32, #tpu.memory_space<vmem>>, vector<1x384xf32>
    %cst_95 = arith.constant dense<0.000000e+00> : vector<1x384xf32>
    %430 = tpu.matmul %425, %9, %cst_95 {dimension_numbers = #tpu.dot_dimension_numbers<[1], [0], [0], [1], [0, 0, 1, 1], [], []>} : vector<1x128xf32>, vector<128x384xf32>, vector<1x384xf32> -> vector<1x384xf32>
    %431 = arith.addf %430, %10 : vector<1x384xf32>
    %432 = vector.extract_strided_slice %429 {offsets = [0, 0], sizes = [1, 128], strides = [1, 1]} : vector<1x384xf32> to vector<1x128xf32>
    %433 = vector.extract_strided_slice %431 {offsets = [0, 0], sizes = [1, 128], strides = [1, 1]} : vector<1x384xf32> to vector<1x128xf32>
    %434 = arith.addf %432, %433 : vector<1x128xf32>
    %435 = arith.negf %434 : vector<1x128xf32>
    %436 = math.exp %435 : vector<1x128xf32>
    %cst_96 = arith.constant 1.000000e+00 : f32
    %437 = vector.broadcast %cst_96 : f32 to vector<1x128xf32>
    %438 = arith.addf %437, %436 : vector<1x128xf32>
    %439 = arith.divf %437, %438 : vector<1x128xf32>
    %440 = vector.extract_strided_slice %429 {offsets = [0, 128], sizes = [1, 128], strides = [1, 1]} : vector<1x384xf32> to vector<1x128xf32>
    %441 = vector.extract_strided_slice %431 {offsets = [0, 128], sizes = [1, 128], strides = [1, 1]} : vector<1x384xf32> to vector<1x128xf32>
    %442 = arith.addf %440, %441 : vector<1x128xf32>
    %443 = arith.negf %442 : vector<1x128xf32>
    %444 = math.exp %443 : vector<1x128xf32>
    %cst_97 = arith.constant 1.000000e+00 : f32
    %445 = vector.broadcast %cst_97 : f32 to vector<1x128xf32>
    %446 = arith.addf %445, %444 : vector<1x128xf32>
    %447 = arith.divf %445, %446 : vector<1x128xf32>
    %448 = vector.extract_strided_slice %429 {offsets = [0, 256], sizes = [1, 128], strides = [1, 1]} : vector<1x384xf32> to vector<1x128xf32>
    %449 = vector.extract_strided_slice %431 {offsets = [0, 256], sizes = [1, 128], strides = [1, 1]} : vector<1x384xf32> to vector<1x128xf32>
    %450 = arith.mulf %439, %449 : vector<1x128xf32>
    %451 = arith.addf %448, %450 : vector<1x128xf32>
    %452 = math.tanh %451 : vector<1x128xf32>
    %cst_98 = arith.constant 1.000000e+00 : f32
    %453 = vector.broadcast %cst_98 : f32 to vector<1x128xf32>
    %454 = arith.subf %453, %447 : vector<1x128xf32>
    %455 = arith.mulf %454, %452 : vector<1x128xf32>
    %456 = arith.mulf %447, %425 : vector<1x128xf32>
    %457 = arith.addf %455, %456 : vector<1x128xf32>
    %458 = arith.index_cast %c13_i32 : i32 to index
    %c0_99 = arith.constant 0 : index
    %459 = vector.load %arg11[%458, %c0_99] : memref<16x128xf32, #tpu.memory_space<vmem>>, vector<1x128xf32>
    tpu.vector_store %arg11[%458, %c0_99], %457 {strides = array<i32>} : memref<16x128xf32, #tpu.memory_space<vmem>>, vector<1x128xf32>,
    %c14_i32 = arith.constant 14 : i32
    %460 = arith.index_cast %c14_i32 : i32 to index
    %c0_100 = arith.constant 0 : index
    %461 = vector.load %arg10[%460, %c0_100] : memref<16x384xf32, #tpu.memory_space<vmem>>, vector<1x384xf32>
    %cst_101 = arith.constant dense<0.000000e+00> : vector<1x384xf32>
    %462 = tpu.matmul %457, %9, %cst_101 {dimension_numbers = #tpu.dot_dimension_numbers<[1], [0], [0], [1], [0, 0, 1, 1], [], []>} : vector<1x128xf32>, vector<128x384xf32>, vector<1x384xf32> -> vector<1x384xf32>
    %463 = arith.addf %462, %10 : vector<1x384xf32>
    %464 = vector.extract_strided_slice %461 {offsets = [0, 0], sizes = [1, 128], strides = [1, 1]} : vector<1x384xf32> to vector<1x128xf32>
    %465 = vector.extract_strided_slice %463 {offsets = [0, 0], sizes = [1, 128], strides = [1, 1]} : vector<1x384xf32> to vector<1x128xf32>
    %466 = arith.addf %464, %465 : vector<1x128xf32>
    %467 = arith.negf %466 : vector<1x128xf32>
    %468 = math.exp %467 : vector<1x128xf32>
    %cst_102 = arith.constant 1.000000e+00 : f32
    %469 = vector.broadcast %cst_102 : f32 to vector<1x128xf32>
    %470 = arith.addf %469, %468 : vector<1x128xf32>
    %471 = arith.divf %469, %470 : vector<1x128xf32>
    %472 = vector.extract_strided_slice %461 {offsets = [0, 128], sizes = [1, 128], strides = [1, 1]} : vector<1x384xf32> to vector<1x128xf32>
    %473 = vector.extract_strided_slice %463 {offsets = [0, 128], sizes = [1, 128], strides = [1, 1]} : vector<1x384xf32> to vector<1x128xf32>
    %474 = arith.addf %472, %473 : vector<1x128xf32>
    %475 = arith.negf %474 : vector<1x128xf32>
    %476 = math.exp %475 : vector<1x128xf32>
    %cst_103 = arith.constant 1.000000e+00 : f32
    %477 = vector.broadcast %cst_103 : f32 to vector<1x128xf32>
    %478 = arith.addf %477, %476 : vector<1x128xf32>
    %479 = arith.divf %477, %478 : vector<1x128xf32>
    %480 = vector.extract_strided_slice %461 {offsets = [0, 256], sizes = [1, 128], strides = [1, 1]} : vector<1x384xf32> to vector<1x128xf32>
    %481 = vector.extract_strided_slice %463 {offsets = [0, 256], sizes = [1, 128], strides = [1, 1]} : vector<1x384xf32> to vector<1x128xf32>
    %482 = arith.mulf %471, %481 : vector<1x128xf32>
    %483 = arith.addf %480, %482 : vector<1x128xf32>
    %484 = math.tanh %483 : vector<1x128xf32>
    %cst_104 = arith.constant 1.000000e+00 : f32
    %485 = vector.broadcast %cst_104 : f32 to vector<1x128xf32>
    %486 = arith.subf %485, %479 : vector<1x128xf32>
    %487 = arith.mulf %486, %484 : vector<1x128xf32>
    %488 = arith.mulf %479, %457 : vector<1x128xf32>
    %489 = arith.addf %487, %488 : vector<1x128xf32>
    %490 = arith.index_cast %c14_i32 : i32 to index
    %c0_105 = arith.constant 0 : index
    %491 = vector.load %arg11[%490, %c0_105] : memref<16x128xf32, #tpu.memory_space<vmem>>, vector<1x128xf32>
    tpu.vector_store %arg11[%490, %c0_105], %489 {strides = array<i32>} : memref<16x128xf32, #tpu.memory_space<vmem>>, vector<1x128xf32>,
    %c15_i32 = arith.constant 15 : i32
    %492 = arith.index_cast %c15_i32 : i32 to index
    %c0_106 = arith.constant 0 : index
    %493 = vector.load %arg10[%492, %c0_106] : memref<16x384xf32, #tpu.memory_space<vmem>>, vector<1x384xf32>
    %cst_107 = arith.constant dense<0.000000e+00> : vector<1x384xf32>
    %494 = tpu.matmul %489, %9, %cst_107 {dimension_numbers = #tpu.dot_dimension_numbers<[1], [0], [0], [1], [0, 0, 1, 1], [], []>} : vector<1x128xf32>, vector<128x384xf32>, vector<1x384xf32> -> vector<1x384xf32>
    %495 = arith.addf %494, %10 : vector<1x384xf32>
    %496 = vector.extract_strided_slice %493 {offsets = [0, 0], sizes = [1, 128], strides = [1, 1]} : vector<1x384xf32> to vector<1x128xf32>
    %497 = vector.extract_strided_slice %495 {offsets = [0, 0], sizes = [1, 128], strides = [1, 1]} : vector<1x384xf32> to vector<1x128xf32>
    %498 = arith.addf %496, %497 : vector<1x128xf32>
    %499 = arith.negf %498 : vector<1x128xf32>
    %500 = math.exp %499 : vector<1x128xf32>
    %cst_108 = arith.constant 1.000000e+00 : f32
    %501 = vector.broadcast %cst_108 : f32 to vector<1x128xf32>
    %502 = arith.addf %501, %500 : vector<1x128xf32>
    %503 = arith.divf %501, %502 : vector<1x128xf32>
    %504 = vector.extract_strided_slice %493 {offsets = [0, 128], sizes = [1, 128], strides = [1, 1]} : vector<1x384xf32> to vector<1x128xf32>
    %505 = vector.extract_strided_slice %495 {offsets = [0, 128], sizes = [1, 128], strides = [1, 1]} : vector<1x384xf32> to vector<1x128xf32>
    %506 = arith.addf %504, %505 : vector<1x128xf32>
    %507 = arith.negf %506 : vector<1x128xf32>
    %508 = math.exp %507 : vector<1x128xf32>
    %cst_109 = arith.constant 1.000000e+00 : f32
    %509 = vector.broadcast %cst_109 : f32 to vector<1x128xf32>
    %510 = arith.addf %509, %508 : vector<1x128xf32>
    %511 = arith.divf %509, %510 : vector<1x128xf32>
    %512 = vector.extract_strided_slice %493 {offsets = [0, 256], sizes = [1, 128], strides = [1, 1]} : vector<1x384xf32> to vector<1x128xf32>
    %513 = vector.extract_strided_slice %495 {offsets = [0, 256], sizes = [1, 128], strides = [1, 1]} : vector<1x384xf32> to vector<1x128xf32>
    %514 = arith.mulf %503, %513 : vector<1x128xf32>
    %515 = arith.addf %512, %514 : vector<1x128xf32>
    %516 = math.tanh %515 : vector<1x128xf32>
    %cst_110 = arith.constant 1.000000e+00 : f32
    %517 = vector.broadcast %cst_110 : f32 to vector<1x128xf32>
    %518 = arith.subf %517, %511 : vector<1x128xf32>
    %519 = arith.mulf %518, %516 : vector<1x128xf32>
    %520 = arith.mulf %511, %489 : vector<1x128xf32>
    %521 = arith.addf %519, %520 : vector<1x128xf32>
    %522 = arith.index_cast %c15_i32 : i32 to index
    %c0_111 = arith.constant 0 : index
    %523 = vector.load %arg11[%522, %c0_111] : memref<16x128xf32, #tpu.memory_space<vmem>>, vector<1x128xf32>
    tpu.vector_store %arg11[%522, %c0_111], %521 {strides = array<i32>} : memref<16x128xf32, #tpu.memory_space<vmem>>, vector<1x128xf32>,
    %c16_i32 = arith.constant 16 : i32
    %c0_112 = arith.constant 0 : index
    %c0_113 = arith.constant 0 : index
    %524 = vector.load %arg9[%c0_112, %c0_113] : memref<1x128xf32, #tpu.memory_space<vmem>>, vector<1x128xf32>
    tpu.vector_store %arg9[%c0_112, %c0_113], %521 {strides = array<i32>} : memref<1x128xf32, #tpu.memory_space<vmem>>, vector<1x128xf32>,
    %c0_114 = arith.constant 0 : index
    %c0_115 = arith.constant 0 : index
    %525 = vector.load %arg11[%c0_114, %c0_115] : memref<16x128xf32, #tpu.memory_space<vmem>>, vector<16x128xf32>
    %c0_116 = arith.constant 0 : index
    %c0_117 = arith.constant 0 : index
    %526 = vector.load %arg6[%c0_116, %c0_117] : memref<128x128xf32, #tpu.memory_space<vmem>>, vector<128x128xf32>
    %cst_118 = arith.constant dense<0.000000e+00> : vector<16x128xf32>
    %527 = tpu.matmul %525, %526, %cst_118 {dimension_numbers = #tpu.dot_dimension_numbers<[1], [0], [0], [1], [0, 0, 1, 1], [], []>} : vector<16x128xf32>, vector<128x128xf32>, vector<16x128xf32> -> vector<16x128xf32>
    %c0_119 = arith.constant 0 : index
    %c0_120 = arith.constant 0 : index
    %528 = vector.load %arg7[%c0_119, %c0_120] : memref<1x128xf32, #tpu.memory_space<vmem>>, vector<1x128xf32>
    %529 = vector.broadcast %528 : vector<1x128xf32> to vector<16x128xf32>
    %530 = arith.addf %527, %529 : vector<16x128xf32>
    %c0_121 = arith.constant 0 : index
    %c0_122 = arith.constant 0 : index
    %531 = vector.load %arg8[%c0_121, %c0_122] : memref<16x128xf32, #tpu.memory_space<vmem>>, vector<16x128xf32>
    tpu.vector_store %arg8[%c0_121, %c0_122], %530 {strides = array<i32>} : memref<16x128xf32, #tpu.memory_space<vmem>>, vector<16x128xf32>,
    return
  }
}

</mosaic_0001>

<llo_original>
// kernel: tpu_custom_call.1
$region0: #{tpu_custom_call.1}
  #allocation0 [shape = 'u32[]', space=smem, size = 0x4, offset = 0x4, fixed_abs, tag = 'smem constant byte address 0x4 - core index']
  #allocation1 [shape = 'u32[144,128]{1,0:T(1,128)}', space=vmem, size = 0x12000, scoped, tag = 'internal scratch']
  #allocation2 [shape = 'f32[16,384]{1,0:T(8,128)}', space=vmem, size = 0x6000, scoped, tag = 'scratch operand']
  #allocation3 [shape = 'f32[16,128]{1,0:T(8,128)}', space=vmem, size = 0x2000, scoped, tag = 'scratch operand']
  %s0 = inlined_call_operand.hbm [shape: f32[16,128], index: 0, kind: input, shape index: {}]
  %s1 = inlined_call_operand.vmem [shape: f32[1,128], index: 1, kind: input, shape index: {}]
  %s2 = inlined_call_operand.hbm [shape: f32[128,384], index: 2, kind: input, shape index: {}]
  %s3 = inlined_call_operand.hbm [shape: f32[128,384], index: 3, kind: input, shape index: {}]
  %s4 = inlined_call_operand.vmem [shape: f32[1,384], index: 4, kind: input, shape index: {}]
  %s5 = inlined_call_operand.vmem [shape: f32[1,384], index: 5, kind: input, shape index: {}]
  %s6 = inlined_call_operand.hbm [shape: f32[128,128], index: 6, kind: input, shape index: {}]
  %s7 = inlined_call_operand.vmem [shape: f32[1,128], index: 7, kind: input, shape index: {}]
  %s8 = inlined_call_operand.hbm [shape: f32[16,128], index: 8, kind: output, shape index: {0}]
  %s9 = inlined_call_operand.hbm [shape: f32[1,128], index: 9, kind: output, shape index: {1}]
  %10 = xla_tuple %s8, %s9
  %s11 = sld [smem:[#allocation0]]
  $region66: #{tpu_custom_call.1} parent=0
    _
  %s13 = ssub.s32 1, %s11
  %s14 = scalar_select 0, %s13, %s11
  $region1: #{tpu_custom_call.1} parent=0
    #allocation4 [shape = 'u8[8192]{0}', space=vmem, size = 0x2000, scoped, tag = 'input window, operand 0, single buffered']
    #allocation5 [shape = 's32[1]{0}', space=sflag, size = 0x4, scoped, tag = 'scoped memory for tpu_custom_call.1']
    #allocation6 [shape = 's32[1]{0}', space=sflag, size = 0x4, scoped, tag = 'scoped memory for tpu_custom_call.1']
    #allocation7 [shape = 'u8[196608]{0}', space=vmem, size = 0x30000, scoped, tag = 'input window, operand 2, single buffered']
    #allocation8 [shape = 's32[1]{0}', space=sflag, size = 0x4, scoped, tag = 'scoped memory for tpu_custom_call.1']
    #allocation9 [shape = 'u8[196608]{0}', space=vmem, size = 0x30000, scoped, tag = 'input window, operand 3, single buffered']
    #allocation10 [shape = 'u8[65536]{0}', space=vmem, size = 0x10000, scoped, tag = 'input window, operand 6, single buffered']
    #allocation11 [shape = 's32[1]{0}', space=sflag, size = 0x4, scoped, tag = 'scoped memory for tpu_custom_call.1']
    #allocation12 [shape = 'u8[8192]{0}', space=vmem, size = 0x2000, scoped, tag = 'output window, operand 0, single buffered']
    #allocation13 [shape = 'u8[512]{0}', space=vmem, size = 0x400, scoped, tag = 'output window, operand 1, single buffered']
    #allocation14 [shape = 's32[1]{0}', space=sflag, size = 0x4, scoped, tag = 'scoped memory for tpu_custom_call.1']
    %15 = vsyncpa [#allocation5], 0
    %16 = vsyncpa [#allocation8], 0
    %17 = vsyncpa [#allocation11], 0
    %18 = vsyncpa [#allocation6], 0
    %19 = vsyncpa [#allocation14], 0
    // Predicated region
    $region2: #{tpu_custom_call.1} parent=1 // pred_check
      _
    $region3: #{tpu_custom_call.1} parent=1 // pred_check_branch
      %21 = sbr.rel (0) target = $region5
    $region4: #{tpu_custom_call.1} parent=1 // pred_region
      %s23 = ssub.s32 256, 256
      %24 = vsyncadd [#allocation5], %s23
      %s25 = sshll.u32 [#allocation4], 4
      %s26 = int_to_ptr.vmem [resolvable:$true] %s25
      %31 = dma.hbm_to_vmem [thread:$0]  %s0, 256, %s26, [#allocation5], 128, 128, 8
    $region5: #{tpu_custom_call.1} parent=1 // pred_fallthru
      _
    // Predicated region
    $region6: #{tpu_custom_call.1} parent=1 // pred_check
      _
    $region7: #{tpu_custom_call.1} parent=1 // pred_check_branch
      %33 = sbr.rel (0) target = $region9
    $region8: #{tpu_custom_call.1} parent=1 // pred_region
      _
    $region9: #{tpu_custom_call.1} parent=1 // pred_fallthru
      _
    // Predicated region
    $region10: #{tpu_custom_call.1} parent=1 // pred_check
      _
    $region11: #{tpu_custom_call.1} parent=1 // pred_check_branch
      %35 = sbr.rel (0) target = $region13
    $region12: #{tpu_custom_call.1} parent=1 // pred_region
      %s37 = ssub.s32 6144, 6144
      %38 = vsyncadd [#allocation8], %s37
      %s39 = sshll.u32 [#allocation7], 4
      %s40 = int_to_ptr.vmem [resolvable:$true] %s39
      %45 = dma.hbm_to_vmem [thread:$0]  %s2, 6144, %s40, [#allocation8], 384, 384, 24
    $region13: #{tpu_custom_call.1} parent=1 // pred_fallthru
      _
    // Predicated region
    $region14: #{tpu_custom_call.1} parent=1 // pred_check
      _
    $region15: #{tpu_custom_call.1} parent=1 // pred_check_branch
      %47 = sbr.rel (0) target = $region17
    $region16: #{tpu_custom_call.1} parent=1 // pred_region
      %s49 = ssub.s32 6144, 6144
      %50 = vsyncadd [#allocation8], %s49
      %s51 = sshll.u32 [#allocation9], 4
      %s52 = int_to_ptr.vmem [resolvable:$true] %s51
      %57 = dma.hbm_to_vmem [thread:$0]  %s3, 6144, %s52, [#allocation8], 384, 384, 24
    $region17: #{tpu_custom_call.1} parent=1 // pred_fallthru
      _
    // Predicated region
    $region18: #{tpu_custom_call.1} parent=1 // pred_check
      _
    $region19: #{tpu_custom_call.1} parent=1 // pred_check_branch
      %59 = sbr.rel (0) target = $region21
    $region20: #{tpu_custom_call.1} parent=1 // pred_region
      _
    $region21: #{tpu_custom_call.1} parent=1 // pred_fallthru
      _
    // Predicated region
    $region22: #{tpu_custom_call.1} parent=1 // pred_check
      _
    $region23: #{tpu_custom_call.1} parent=1 // pred_check_branch
      %61 = sbr.rel (0) target = $region25
    $region24: #{tpu_custom_call.1} parent=1 // pred_region
      _
    $region25: #{tpu_custom_call.1} parent=1 // pred_fallthru
      _
    // Predicated region
    $region26: #{tpu_custom_call.1} parent=1 // pred_check
      _
    $region27: #{tpu_custom_call.1} parent=1 // pred_check_branch
      %63 = sbr.rel (0) target = $region29
    $region28: #{tpu_custom_call.1} parent=1 // pred_region
      %s65 = ssub.s32 2048, 2048
      %66 = vsyncadd [#allocation11], %s65
      %s67 = sshll.u32 [#allocation10], 4
      %s68 = int_to_ptr.vmem [resolvable:$true] %s67
      %73 = dma.hbm_to_vmem [thread:$0]  %s6, 2048, %s68, [#allocation11], 128, 128, 8
    $region29: #{tpu_custom_call.1} parent=1 // pred_fallthru
      _
    // Predicated region
    $region30: #{tpu_custom_call.1} parent=1 // pred_check
      _
    $region31: #{tpu_custom_call.1} parent=1 // pred_check_branch
      %75 = sbr.rel (0) target = $region33
    $region32: #{tpu_custom_call.1} parent=1 // pred_region
      _
    $region33: #{tpu_custom_call.1} parent=1 // pred_fallthru
      _
    // Predicated region
    $region34: #{tpu_custom_call.1} parent=1 // pred_check
      _
    $region35: #{tpu_custom_call.1} parent=1 // pred_check_branch
      %77 = sbr.rel (0) target = $region37
    $region36: #{tpu_custom_call.1} parent=1 // pred_region
      %78 = dma.done [#allocation5], 256
    $region37: #{tpu_custom_call.1} parent=1 // pred_fallthru
      _
    // Predicated region
    $region38: #{tpu_custom_call.1} parent=1 // pred_check
      _
    $region39: #{tpu_custom_call.1} parent=1 // pred_check_branch
      %80 = sbr.rel (0) target = $region41
    $region40: #{tpu_custom_call.1} parent=1 // pred_region
      %81 = dma.done [#allocation8], 6144
    $region41: #{tpu_custom_call.1} parent=1 // pred_fallthru
      _
    // Predicated region
    $region42: #{tpu_custom_call.1} parent=1 // pred_check
      _
    $region43: #{tpu_custom_call.1} parent=1 // pred_check_branch
      %83 = sbr.rel (0) target = $region45
    $region44: #{tpu_custom_call.1} parent=1 // pred_region
      %84 = dma.done [#allocation8], 6144
    $region45: #{tpu_custom_call.1} parent=1 // pred_fallthru
      _
    // Predicated region
    $region46: #{tpu_custom_call.1} parent=1 // pred_check
      _
    $region47: #{tpu_custom_call.1} parent=1 // pred_check_branch
      %86 = sbr.rel (0) target = $region49
    $region48: #{tpu_custom_call.1} parent=1 // pred_region
      %87 = dma.done [#allocation11], 2048
    $region49: #{tpu_custom_call.1} parent=1 // pred_fallthru
      _
    %v88 = vld [vmem:[#allocation4] sm:$0xff]
    %v89 = vld [vmem:[#allocation4 + $0x8] sm:$0xff]
    %v90 = vld [vmem:[#allocation7] sm:$0xff]
    %v91 = vld [vmem:[#allocation7 + $0x8] sm:$0xff]
    %v92 = vld [vmem:[#allocation7 + $0x10] sm:$0xff]
    %v93 = vld [vmem:[#allocation7 + $0x18] sm:$0xff]
    %v94 = vld [vmem:[#allocation7 + $0x20] sm:$0xff]
    %v95 = vld [vmem:[#allocation7 + $0x28] sm:$0xff]
    %v96 = vld [vmem:[#allocation7 + $0x30] sm:$0xff]
    %v97 = vld [vmem:[#allocation7 + $0x38] sm:$0xff]
    %v98 = vld [vmem:[#allocation7 + $0x40] sm:$0xff]
    %v99 = vld [vmem:[#allocation7 + $0x48] sm:$0xff]
    %v100 = vld [vmem:[#allocation7 + $0x50] sm:$0xff]
    %v101 = vld [vmem:[#allocation7 + $0x58] sm:$0xff]
    %v102 = vld [vmem:[#allocation7 + $0x60] sm:$0xff]
    %v103 = vld [vmem:[#allocation7 + $0x68] sm:$0xff]
    %v104 = vld [vmem:[#allocation7 + $0x70] sm:$0xff]
    %v105 = vld [vmem:[#allocation7 + $0x78] sm:$0xff]
    %v106 = vld [vmem:[#allocation7 + $0x80] sm:$0xff]
    %v107 = vld [vmem:[#allocation7 + $0x88] sm:$0xff]
    %v108 = vld [vmem:[#allocation7 + $0x90] sm:$0xff]
    %v109 = vld [vmem:[#allocation7 + $0x98] sm:$0xff]
    %v110 = vld [vmem:[#allocation7 + $0xa0] sm:$0xff]
    %v111 = vld [vmem:[#allocation7 + $0xa8] sm:$0xff]
    %v112 = vld [vmem:[#allocation7 + $0xb0] sm:$0xff]
    %v113 = vld [vmem:[#allocation7 + $0xb8] sm:$0xff]
    %v114 = vld [vmem:[#allocation7 + $0xc0] sm:$0xff]
    %v115 = vld [vmem:[#allocation7 + $0xc8] sm:$0xff]
    %v116 = vld [vmem:[#allocation7 + $0xd0] sm:$0xff]
    %v117 = vld [vmem:[#allocation7 + $0xd8] sm:$0xff]
    %v118 = vld [vmem:[#allocation7 + $0xe0] sm:$0xff]
    %v119 = vld [vmem:[#allocation7 + $0xe8] sm:$0xff]
    %v120 = vld [vmem:[#allocation7 + $0xf0] sm:$0xff]
    %v121 = vld [vmem:[#allocation7 + $0xf8] sm:$0xff]
    %v122 = vld [vmem:[#allocation7 + $0x100] sm:$0xff]
    %v123 = vld [vmem:[#allocation7 + $0x108] sm:$0xff]
    %v124 = vld [vmem:[#allocation7 + $0x110] sm:$0xff]
    %v125 = vld [vmem:[#allocation7 + $0x118] sm:$0xff]
    %v126 = vld [vmem:[#allocation7 + $0x120] sm:$0xff]
    %v127 = vld [vmem:[#allocation7 + $0x128] sm:$0xff]
    %v128 = vld [vmem:[#allocation7 + $0x130] sm:$0xff]
    %v129 = vld [vmem:[#allocation7 + $0x138] sm:$0xff]
    %v130 = vld [vmem:[#allocation7 + $0x140] sm:$0xff]
    %v131 = vld [vmem:[#allocation7 + $0x148] sm:$0xff]
    %v132 = vld [vmem:[#allocation7 + $0x150] sm:$0xff]
    %v133 = vld [vmem:[#allocation7 + $0x158] sm:$0xff]
    %v134 = vld [vmem:[#allocation7 + $0x160] sm:$0xff]
    %v135 = vld [vmem:[#allocation7 + $0x168] sm:$0xff]
    %v136 = vld [vmem:[#allocation7 + $0x170] sm:$0xff]
    %v137 = vld [vmem:[#allocation7 + $0x178] sm:$0xff]
    %v138 = vld [vmem:[%s4] sm:$0x7]
    %v140 = vlaneseq
    %v141 = vshrl.u32 %v140, 7
    %v142 = vsub.s32 0, %v141
    %v143 = vrot.slane %v138, %v142
    %v144 = vlaneseq
    %v145 = vshrl.u32 %v144, 7
    %v146 = vsub.s32 1, %v145
    %v147 = vrot.slane %v138, %v146
    %v148 = vlaneseq
    %v149 = vshrl.u32 %v148, 7
    %v150 = vsub.s32 2, %v149
    %v151 = vrot.slane %v138, %v150
    %155 = vmatprep.subr.mxu0 %v91
    %156 = vmatpush1.msra.mxu0 %v90
    %157 = vmatprep.subr.mxu0 %v94
    %158 = vmatpush1.msra.mxu0 %v93
    %159 = vmatprep.subr.mxu0 %v97
    %160 = vmatpush1.msra.mxu0 %v96
    %161 = vmatprep.subr.mxu0 %v100
    %162 = vmatpush1.msra.mxu0 %v99
    %163 = vmatprep.subr.mxu0 %v103
    %164 = vmatpush1.msra.mxu0 %v102
    %165 = vmatprep.subr.mxu0 %v106
    %166 = vmatpush1.msra.mxu0 %v105
    %167 = vmatprep.subr.mxu0 %v109
    %168 = vmatpush1.msra.mxu0 %v108
    %169 = vmatprep.subr.mxu0 %v112
    %170 = vmatpush1.msra.mxu0 %v111
    %171 = vmatprep.subr.mxu0 %v115
    %172 = vmatpush1.msra.mxu0 %v114
    %173 = vmatprep.subr.mxu0 %v118
    %174 = vmatpush1.msra.mxu0 %v117
    %175 = vmatprep.subr.mxu0 %v121
    %176 = vmatpush1.msra.mxu0 %v120
    %177 = vmatprep.subr.mxu0 %v124
    %178 = vmatpush1.msra.mxu0 %v123
    %179 = vmatprep.subr.mxu0 %v127
    %180 = vmatpush1.msra.mxu0 %v126
    %181 = vmatprep.subr.mxu0 %v130
    %182 = vmatpush1.msra.mxu0 %v129
    %183 = vmatprep.subr.mxu0 %v133
    %184 = vmatpush1.msra.mxu0 %v132
    %185 = vmatprep.subr.mxu0 %v136
    %186 = vmatpush1.msra.mxu0 %v135
    %187 = vmatprep.subr.mxu0 0.0
    %188 = vmatpush1.msra.mxu0 0.0
    %189 = vmatprep.subr.mxu0 0.0
    %190 = vmatpush1.msra.mxu0 0.0
    %191 = vmatprep.subr.mxu0 0.0
    %192 = vmatpush1.msra.mxu0 0.0
    %193 = vmatprep.subr.mxu0 0.0
    %194 = vmatpush1.msra.mxu0 0.0
    %195 = vmatprep.subr.mxu0 0.0
    %196 = vmatpush1.msra.mxu0 0.0
    %197 = vmatprep.subr.mxu0 0.0
    %198 = vmatpush1.msra.mxu0 0.0
    %199 = vmatprep.subr.mxu0 0.0
    %200 = vmatpush1.msra.mxu0 0.0
    %201 = vmatprep.subr.mxu0 0.0
    %202 = vmatpush1.msra.mxu0 0.0
    %203 = vmatprep.subr.mxu0 0.0
    %204 = vmatpush1.msra.mxu0 0.0
    %205 = vmatprep.subr.mxu0 0.0
    %206 = vmatpush1.msra.mxu0 0.0
    %207 = vmatprep.subr.mxu0 0.0
    %208 = vmatpush1.msra.mxu0 0.0
    %209 = vmatprep.subr.mxu0 0.0
    %210 = vmatpush1.msra.mxu0 0.0
    %211 = vmatprep.subr.mxu0 0.0
    %212 = vmatpush1.msra.mxu0 0.0
    %213 = vmatprep.subr.mxu0 0.0
    %214 = vmatpush1.msra.mxu0 0.0
    %215 = vmatprep.subr.mxu0 0.0
    %216 = vmatpush1.msra.mxu0 0.0
    %217 = vmatprep.subr.mxu0 0.0
    %218 = vmatpush1.msra.mxu0 0.0
    %219 = vmatprep.mubr.f32.mxu0 0.0
    %220 = vmatmul.mubr.f32.gmra.mrb[0].mxu0 %v88
    %v221 = vpop.f32.mrb[0].mxu0
    %v222 = vadd.f32 %v143, %v221
    %v223 = vpop.f32.mrb[0].mxu0
    %v224 = vadd.f32 %v147, %v223
    %225 = vmatprep.mubr.f32.mxu0 0.0
    %226 = vmatmul.mubr.f32.gmra.mrb[0].mxu0 %v89
    %v227 = vpop.f32.mrb[0].mxu0
    %v228 = vadd.f32 %v143, %v227
    %v229 = vpop.f32.mrb[0].mxu0
    %v230 = vadd.f32 %v147, %v229
    %231 = vdwg.mxu0
    %232 = vmatprep.subr.mxu0 0.0
    %233 = vmatpush1.msra.mxu0 %v92
    %234 = vmatprep.subr.mxu0 0.0
    %235 = vmatpush1.msra.mxu0 %v95
    %236 = vmatprep.subr.mxu0 0.0
    %237 = vmatpush1.msra.mxu0 %v98
    %238 = vmatprep.subr.mxu0 0.0
    %239 = vmatpush1.msra.mxu0 %v101
    %240 = vmatprep.subr.mxu0 0.0
    %241 = vmatpush1.msra.mxu0 %v104
    %242 = vmatprep.subr.mxu0 0.0
    %243 = vmatpush1.msra.mxu0 %v107
    %244 = vmatprep.subr.mxu0 0.0
    %245 = vmatpush1.msra.mxu0 %v110
    %246 = vmatprep.subr.mxu0 0.0
    %247 = vmatpush1.msra.mxu0 %v113
    %248 = vmatprep.subr.mxu0 0.0
    %249 = vmatpush1.msra.mxu0 %v116
    %250 = vmatprep.subr.mxu0 0.0
    %251 = vmatpush1.msra.mxu0 %v119
    %252 = vmatprep.subr.mxu0 0.0
    %253 = vmatpush1.msra.mxu0 %v122
    %254 = vmatprep.subr.mxu0 0.0
    %255 = vmatpush1.msra.mxu0 %v125
    %256 = vmatprep.subr.mxu0 0.0
    %257 = vmatpush1.msra.mxu0 %v128
    %258 = vmatprep.subr.mxu0 0.0
    %259 = vmatpush1.msra.mxu0 %v131
    %260 = vmatprep.subr.mxu0 0.0
    %261 = vmatpush1.msra.mxu0 %v134
    %262 = vmatprep.subr.mxu0 0.0
    %263 = vmatpush1.msra.mxu0 %v137
    %264 = vmatprep.subr.mxu0 0.0
    %265 = vmatpush1.msra.mxu0 0.0
    %266 = vmatprep.subr.mxu0 0.0
    %267 = vmatpush1.msra.mxu0 0.0
    %268 = vmatprep.subr.mxu0 0.0
    %269 = vmatpush1.msra.mxu0 0.0
    %270 = vmatprep.subr.mxu0 0.0
    %271 = vmatpush1.msra.mxu0 0.0
    %272 = vmatprep.subr.mxu0 0.0
    %273 = vmatpush1.msra.mxu0 0.0
    %274 = vmatprep.subr.mxu0 0.0
    %275 = vmatpush1.msra.mxu0 0.0
    %276 = vmatprep.subr.mxu0 0.0
    %277 = vmatpush1.msra.mxu0 0.0
    %278 = vmatprep.subr.mxu0 0.0
    %279 = vmatpush1.msra.mxu0 0.0
    %280 = vmatprep.subr.mxu0 0.0
    %281 = vmatpush1.msra.mxu0 0.0
    %282 = vmatprep.subr.mxu0 0.0
    %283 = vmatpush1.msra.mxu0 0.0
    %284 = vmatprep.subr.mxu0 0.0
    %285 = vmatpush1.msra.mxu0 0.0
    %286 = vmatprep.subr.mxu0 0.0
    %287 = vmatpush1.msra.mxu0 0.0
    %288 = vmatprep.subr.mxu0 0.0
    %289 = vmatpush1.msra.mxu0 0.0
    %290 = vmatprep.subr.mxu0 0.0
    %291 = vmatpush1.msra.mxu0 0.0
    %292 = vmatprep.subr.mxu0 0.0
    %293 = vmatpush1.msra.mxu0 0.0
    %294 = vmatprep.subr.mxu0 0.0
    %295 = vmatpush1.msra.mxu0 0.0
    %296 = vmatprep.mubr.f32.mxu0 0.0
    %297 = vmatmul.mubr.f32.gmra.mrb[0].mxu0 %v88
    %v298 = vpop.f32.mrb[0].mxu0
    %v299 = vadd.f32 %v151, %v298
    %v300 = vpop.f32.mrb[0].mxu0
    %301 = vmatprep.mubr.f32.mxu0 0.0
    %302 = vmatmul.mubr.f32.gmra.mrb[0].mxu0 %v89
    %v303 = vpop.f32.mrb[0].mxu0
    %v304 = vadd.f32 %v151, %v303
    %v305 = vpop.f32.mrb[0].mxu0
    %306 = vdwg.mxu0
    %307 = vst [vmem:[#allocation2] sm:$0xff] %v222
    %308 = vst [vmem:[#allocation2 + $0x8] sm:$0xff] %v224
    %309 = vst [vmem:[#allocation2 + $0x10] sm:$0xff] %v299
    %310 = vst [vmem:[#allocation2 + $0x18] sm:$0xff] %v228
    %311 = vst [vmem:[#allocation2 + $0x20] sm:$0xff] %v230
    %312 = vst [vmem:[#allocation2 + $0x28] sm:$0xff] %v304
    %313 = vst [vmem:[#allocation3] sm:$0xff] 0.0
    %314 = vst [vmem:[#allocation3 + $0x8] sm:$0xff] 0.0
    %v315 = vld [vmem:[#allocation9] sm:$0xff]
    %v316 = vld [vmem:[#allocation9 + $0x8] sm:$0xff]
    %v317 = vld [vmem:[#allocation9 + $0x10] sm:$0xff]
    %v318 = vld [vmem:[#allocation9 + $0x18] sm:$0xff]
    %v319 = vld [vmem:[#allocation9 + $0x20] sm:$0xff]
    %v320 = vld [vmem:[#allocation9 + $0x28] sm:$0xff]
    %v321 = vld [vmem:[#allocation9 + $0x30] sm:$0xff]
    %v322 = vld [vmem:[#allocation9 + $0x38] sm:$0xff]
    %v323 = vld [vmem:[#allocation9 + $0x40] sm:$0xff]
    %v324 = vld [vmem:[#allocation9 + $0x48] sm:$0xff]
    %v325 = vld [vmem:[#allocation9 + $0x50] sm:$0xff]
    %v326 = vld [vmem:[#allocation9 + $0x58] sm:$0xff]
    %v327 = vld [vmem:[#allocation9 + $0x60] sm:$0xff]
    %v328 = vld [vmem:[#allocation9 + $0x68] sm:$0xff]
    %v329 = vld [vmem:[#allocation9 + $0x70] sm:$0xff]
    %v330 = vld [vmem:[#allocation9 + $0x78] sm:$0xff]
    %v331 = vld [vmem:[#allocation9 + $0x80] sm:$0xff]
    %v332 = vld [vmem:[#allocation9 + $0x88] sm:$0xff]
    %v333 = vld [vmem:[#allocation9 + $0x90] sm:$0xff]
    %v334 = vld [vmem:[#allocation9 + $0x98] sm:$0xff]
    %v335 = vld [vmem:[#allocation9 + $0xa0] sm:$0xff]
    %v336 = vld [vmem:[#allocation9 + $0xa8] sm:$0xff]
    %v337 = vld [vmem:[#allocation9 + $0xb0] sm:$0xff]
    %v338 = vld [vmem:[#allocation9 + $0xb8] sm:$0xff]
    %v339 = vld [vmem:[#allocation9 + $0xc0] sm:$0xff]
    %v340 = vld [vmem:[#allocation9 + $0xc8] sm:$0xff]
    %v341 = vld [vmem:[#allocation9 + $0xd0] sm:$0xff]
    %v342 = vld [vmem:[#allocation9 + $0xd8] sm:$0xff]
    %v343 = vld [vmem:[#allocation9 + $0xe0] sm:$0xff]
    %v344 = vld [vmem:[#allocation9 + $0xe8] sm:$0xff]
    %v345 = vld [vmem:[#allocation9 + $0xf0] sm:$0xff]
    %v346 = vld [vmem:[#allocation9 + $0xf8] sm:$0xff]
    %v347 = vld [vmem:[#allocation9 + $0x100] sm:$0xff]
    %v348 = vld [vmem:[#allocation9 + $0x108] sm:$0xff]
    %v349 = vld [vmem:[#allocation9 + $0x110] sm:$0xff]
    %v350 = vld [vmem:[#allocation9 + $0x118] sm:$0xff]
    %v351 = vld [vmem:[#allocation9 + $0x120] sm:$0xff]
    %v352 = vld [vmem:[#allocation9 + $0x128] sm:$0xff]
    %v353 = vld [vmem:[#allocation9 + $0x130] sm:$0xff]
    %v354 = vld [vmem:[#allocation9 + $0x138] sm:$0xff]
    %v355 = vld [vmem:[#allocation9 + $0x140] sm:$0xff]
    %v356 = vld [vmem:[#allocation9 + $0x148] sm:$0xff]
    %v357 = vld [vmem:[#allocation9 + $0x150] sm:$0xff]
    %v358 = vld [vmem:[#allocation9 + $0x158] sm:$0xff]
    %v359 = vld [vmem:[#allocation9 + $0x160] sm:$0xff]
    %v360 = vld [vmem:[#allocation9 + $0x168] sm:$0xff]
    %v361 = vld [vmem:[#allocation9 + $0x170] sm:$0xff]
    %v362 = vld [vmem:[#allocation9 + $0x178] sm:$0xff]
    %v363 = vld [vmem:[%s5] sm:$0x7]
    %v364 = vld [vmem:[%s1] sm:$0x1]
    %v365 = vld [vmem:[#allocation2] ss:$8 sm:$0x7]
    %v367 = vlaneseq
    %v368 = vshrl.u32 %v367, 7
    %v369 = vsub.s32 0, %v368
    %v370 = vrot.slane %v363, %v369
    %v371 = vlaneseq
    %v372 = vshrl.u32 %v371, 7
    %v373 = vsub.s32 1, %v372
    %v374 = vrot.slane %v363, %v373
    %v375 = vlaneseq
    %v376 = vshrl.u32 %v375, 7
    %v377 = vsub.s32 2, %v376
    %v378 = vrot.slane %v363, %v377
    %382 = vmatprep.subr.mxu0 %v316
    %383 = vmatpush1.msra.mxu0 %v315
    %384 = vmatprep.subr.mxu0 %v319
    %385 = vmatpush1.msra.mxu0 %v318
    %386 = vmatprep.subr.mxu0 %v322
    %387 = vmatpush1.msra.mxu0 %v321
    %388 = vmatprep.subr.mxu0 %v325
    %389 = vmatpush1.msra.mxu0 %v324
    %390 = vmatprep.subr.mxu0 %v328
    %391 = vmatpush1.msra.mxu0 %v327
    %392 = vmatprep.subr.mxu0 %v331
    %393 = vmatpush1.msra.mxu0 %v330
    %394 = vmatprep.subr.mxu0 %v334
    %395 = vmatpush1.msra.mxu0 %v333
    %396 = vmatprep.subr.mxu0 %v337
    %397 = vmatpush1.msra.mxu0 %v336
    %398 = vmatprep.subr.mxu0 %v340
    %399 = vmatpush1.msra.mxu0 %v339
    %400 = vmatprep.subr.mxu0 %v343
    %401 = vmatpush1.msra.mxu0 %v342
    %402 = vmatprep.subr.mxu0 %v346
    %403 = vmatpush1.msra.mxu0 %v345
    %404 = vmatprep.subr.mxu0 %v349
    %405 = vmatpush1.msra.mxu0 %v348
    %406 = vmatprep.subr.mxu0 %v352
    %407 = vmatpush1.msra.mxu0 %v351
    %408 = vmatprep.subr.mxu0 %v355
    %409 = vmatpush1.msra.mxu0 %v354
    %410 = vmatprep.subr.mxu0 %v358
    %411 = vmatpush1.msra.mxu0 %v357
    %412 = vmatprep.subr.mxu0 %v361
    %413 = vmatpush1.msra.mxu0 %v360
    %414 = vmatprep.subr.mxu0 0.0
    %415 = vmatpush1.msra.mxu0 0.0
    %416 = vmatprep.subr.mxu0 0.0
    %417 = vmatpush1.msra.mxu0 0.0
    %418 = vmatprep.subr.mxu0 0.0
    %419 = vmatpush1.msra.mxu0 0.0
    %420 = vmatprep.subr.mxu0 0.0
    %421 = vmatpush1.msra.mxu0 0.0
    %422 = vmatprep.subr.mxu0 0.0
    %423 = vmatpush1.msra.mxu0 0.0
    %424 = vmatprep.subr.mxu0 0.0
    %425 = vmatpush1.msra.mxu0 0.0
    %426 = vmatprep.subr.mxu0 0.0
    %427 = vmatpush1.msra.mxu0 0.0
    %428 = vmatprep.subr.mxu0 0.0
    %429 = vmatpush1.msra.mxu0 0.0
    %430 = vmatprep.subr.mxu0 0.0
    %431 = vmatpush1.msra.mxu0 0.0
    %432 = vmatprep.subr.mxu0 0.0
    %433 = vmatpush1.msra.mxu0 0.0
    %434 = vmatprep.subr.mxu0 0.0
    %435 = vmatpush1.msra.mxu0 0.0
    %436 = vmatprep.subr.mxu0 0.0
    %437 = vmatpush1.msra.mxu0 0.0
    %438 = vmatprep.subr.mxu0 0.0
    %439 = vmatpush1.msra.mxu0 0.0
    %440 = vmatprep.subr.mxu0 0.0
    %441 = vmatpush1.msra.mxu0 0.0
    %442 = vmatprep.subr.mxu0 0.0
    %443 = vmatpush1.msra.mxu0 0.0
    %444 = vmatprep.subr.mxu0 0.0
    %445 = vmatpush1.msra.mxu0 0.0
    %446 = vmatprep.mubr.f32.mxu0 0.0
    %447 = vmatmul.mubr.f32.gmra.mrb[0].mxu0 %v364
    %v448 = vpop.f32.mrb[0].mxu0
    %v449 = vadd.f32 %v370, %v448
    %v450 = vpop.f32.mrb[0].mxu0
    %v451 = vadd.f32 %v374, %v450
    %452 = vdwg.mxu0
    %453 = vmatprep.subr.mxu0 0.0
    %454 = vmatpush1.msra.mxu0 %v317
    %455 = vmatprep.subr.mxu0 0.0
    %456 = vmatpush1.msra.mxu0 %v320
    %457 = vmatprep.subr.mxu0 0.0
    %458 = vmatpush1.msra.mxu0 %v323
    %459 = vmatprep.subr.mxu0 0.0
    %460 = vmatpush1.msra.mxu0 %v326
    %461 = vmatprep.subr.mxu0 0.0
    %462 = vmatpush1.msra.mxu0 %v329
    %463 = vmatprep.subr.mxu0 0.0
    %464 = vmatpush1.msra.mxu0 %v332
    %465 = vmatprep.subr.mxu0 0.0
    %466 = vmatpush1.msra.mxu0 %v335
    %467 = vmatprep.subr.mxu0 0.0
    %468 = vmatpush1.msra.mxu0 %v338
    %469 = vmatprep.subr.mxu0 0.0
    %470 = vmatpush1.msra.mxu0 %v341
    %471 = vmatprep.subr.mxu0 0.0
    %472 = vmatpush1.msra.mxu0 %v344
    %473 = vmatprep.subr.mxu0 0.0
    %474 = vmatpush1.msra.mxu0 %v347
    %475 = vmatprep.subr.mxu0 0.0
    %476 = vmatpush1.msra.mxu0 %v350
    %477 = vmatprep.subr.mxu0 0.0
    %478 = vmatpush1.msra.mxu0 %v353
    %479 = vmatprep.subr.mxu0 0.0
    %480 = vmatpush1.msra.mxu0 %v356
    %481 = vmatprep.subr.mxu0 0.0
    %482 = vmatpush1.msra.mxu0 %v359
    %483 = vmatprep.subr.mxu0 0.0
    %484 = vmatpush1.msra.mxu0 %v362
    %485 = vmatprep.subr.mxu0 0.0
    %486 = vmatpush1.msra.mxu0 0.0
    %487 = vmatprep.subr.mxu0 0.0
    %488 = vmatpush1.msra.mxu0 0.0
    %489 = vmatprep.subr.mxu0 0.0
    %490 = vmatpush1.msra.mxu0 0.0
    %491 = vmatprep.subr.mxu0 0.0
    %492 = vmatpush1.msra.mxu0 0.0
    %493 = vmatprep.subr.mxu0 0.0
    %494 = vmatpush1.msra.mxu0 0.0
    %495 = vmatprep.subr.mxu0 0.0
    %496 = vmatpush1.msra.mxu0 0.0
    %497 = vmatprep.subr.mxu0 0.0
    %498 = vmatpush1.msra.mxu0 0.0
    %499 = vmatprep.subr.mxu0 0.0
    %500 = vmatpush1.msra.mxu0 0.0
    %501 = vmatprep.subr.mxu0 0.0
    %502 = vmatpush1.msra.mxu0 0.0
    %503 = vmatprep.subr.mxu0 0.0
    %504 = vmatpush1.msra.mxu0 0.0
    %505 = vmatprep.subr.mxu0 0.0
    %506 = vmatpush1.msra.mxu0 0.0
    %507 = vmatprep.subr.mxu0 0.0
    %508 = vmatpush1.msra.mxu0 0.0
    %509 = vmatprep.subr.mxu0 0.0
    %510 = vmatpush1.msra.mxu0 0.0
    %511 = vmatprep.subr.mxu0 0.0
    %512 = vmatpush1.msra.mxu0 0.0
    %513 = vmatprep.subr.mxu0 0.0
    %514 = vmatpush1.msra.mxu0 0.0
    %515 = vmatprep.subr.mxu0 0.0
    %516 = vmatpush1.msra.mxu0 0.0
    %517 = vmatprep.mubr.f32.mxu0 0.0
    %518 = vmatmul.mubr.f32.gmra.mrb[0].mxu0 %v364
    %v519 = vpop.f32.mrb[0].mxu0
    %v520 = vadd.f32 %v378, %v519
    %v521 = vpop.f32.mrb[0].mxu0
    %522 = vdwg.mxu0
    %v523 = vadd.f32 %v365, %v449
    %v524 = vxor.u32 %v523, 2147483648
    %v525 = vmul.f32 %v524, 1.442695
    %v526 = vpow.pop %v525
    %v527 = vadd.f32 %v526, 1.0
    %v528 = vrcp.pop %v527
    %v529 = vmul.f32 1.0, %v528
    %v531 = vrot.slane %v365, 1
    %v533 = vadd.f32 %v531, %v451
    %v534 = vxor.u32 %v533, 2147483648
    %v535 = vmul.f32 %v534, 1.442695
    %v536 = vpow.pop %v535
    %v537 = vadd.f32 %v536, 1.0
    %v538 = vrcp.pop %v537
    %v539 = vmul.f32 1.0, %v538
    %v540 = vmul.f32 %v529, %v520
    %v541 = vrot.slane %v365, 2
    %v543 = vadd.f32 %v541, %v540
    %v544 = vtanh.pop %v543
    %v545 = vsub.f32 1.0, %v539
    %v546 = vmul.f32 %v545, %v544
    %v547 = vmul.f32 %v539, %v364
    %v548 = vadd.f32 %v546, %v547
    %549 = vst [vmem:[#allocation3] sm:$0x1] %v548
    %s550 = scalar_lea.vmem [#allocation2], 1
    %v551 = vld [vmem:[%s550] ss:$8 sm:$0x7]
    %552 = vmatprep.subr.mxu0 %v316
    %553 = vmatpush1.msra.mxu0 %v315
    %554 = vmatprep.subr.mxu0 %v319
    %555 = vmatpush1.msra.mxu0 %v318
    %556 = vmatprep.subr.mxu0 %v322
    %557 = vmatpush1.msra.mxu0 %v321
    %558 = vmatprep.subr.mxu0 %v325
    %559 = vmatpush1.msra.mxu0 %v324
    %560 = vmatprep.subr.mxu0 %v328
    %561 = vmatpush1.msra.mxu0 %v327
    %562 = vmatprep.subr.mxu0 %v331
    %563 = vmatpush1.msra.mxu0 %v330
    %564 = vmatprep.subr.mxu0 %v334
    %565 = vmatpush1.msra.mxu0 %v333
    %566 = vmatprep.subr.mxu0 %v337
    %567 = vmatpush1.msra.mxu0 %v336
    %568 = vmatprep.subr.mxu0 %v340
    %569 = vmatpush1.msra.mxu0 %v339
    %570 = vmatprep.subr.mxu0 %v343
    %571 = vmatpush1.msra.mxu0 %v342
    %572 = vmatprep.subr.mxu0 %v346
    %573 = vmatpush1.msra.mxu0 %v345
    %574 = vmatprep.subr.mxu0 %v349
    %575 = vmatpush1.msra.mxu0 %v348
    %576 = vmatprep.subr.mxu0 %v352
    %577 = vmatpush1.msra.mxu0 %v351
    %578 = vmatprep.subr.mxu0 %v355
    %579 = vmatpush1.msra.mxu0 %v354
    %580 = vmatprep.subr.mxu0 %v358
    %581 = vmatpush1.msra.mxu0 %v357
    %582 = vmatprep.subr.mxu0 %v361
    %583 = vmatpush1.msra.mxu0 %v360
    %584 = vmatprep.subr.mxu0 0.0
    %585 = vmatpush1.msra.mxu0 0.0
    %586 = vmatprep.subr.mxu0 0.0
    %587 = vmatpush1.msra.mxu0 0.0
    %588 = vmatprep.subr.mxu0 0.0
    %589 = vmatpush1.msra.mxu0 0.0
    %590 = vmatprep.subr.mxu0 0.0
    %591 = vmatpush1.msra.mxu0 0.0
    %592 = vmatprep.subr.mxu0 0.0
    %593 = vmatpush1.msra.mxu0 0.0
    %594 = vmatprep.subr.mxu0 0.0
    %595 = vmatpush1.msra.mxu0 0.0
    %596 = vmatprep.subr.mxu0 0.0
    %597 = vmatpush1.msra.mxu0 0.0
    %598 = vmatprep.subr.mxu0 0.0
    %599 = vmatpush1.msra.mxu0 0.0
    %600 = vmatprep.subr.mxu0 0.0
    %601 = vmatpush1.msra.mxu0 0.0
    %602 = vmatprep.subr.mxu0 0.0
    %603 = vmatpush1.msra.mxu0 0.0
    %604 = vmatprep.subr.mxu0 0.0
    %605 = vmatpush1.msra.mxu0 0.0
    %606 = vmatprep.subr.mxu0 0.0
    %607 = vmatpush1.msra.mxu0 0.0
    %608 = vmatprep.subr.mxu0 0.0
    %609 = vmatpush1.msra.mxu0 0.0
    %610 = vmatprep.subr.mxu0 0.0
    %611 = vmatpush1.msra.mxu0 0.0
    %612 = vmatprep.subr.mxu0 0.0
    %613 = vmatpush1.msra.mxu0 0.0
    %614 = vmatprep.subr.mxu0 0.0
    %615 = vmatpush1.msra.mxu0 0.0
    %616 = vmatprep.mubr.f32.mxu0 0.0
    %617 = vmatmul.mubr.f32.gmra.mrb[0].mxu0 %v548
    %v618 = vpop.f32.mrb[0].mxu0
    %v619 = vadd.f32 %v370, %v618
    %v620 = vpop.f32.mrb[0].mxu0
    %v621 = vadd.f32 %v374, %v620
    %622 = vdwg.mxu0
    %623 = vmatprep.subr.mxu0 0.0
    %624 = vmatpush1.msra.mxu0 %v317
    %625 = vmatprep.subr.mxu0 0.0
    %626 = vmatpush1.msra.mxu0 %v320
    %627 = vmatprep.subr.mxu0 0.0
    %628 = vmatpush1.msra.mxu0 %v323
    %629 = vmatprep.subr.mxu0 0.0
    %630 = vmatpush1.msra.mxu0 %v326
    %631 = vmatprep.subr.mxu0 0.0
    %632 = vmatpush1.msra.mxu0 %v329
    %633 = vmatprep.subr.mxu0 0.0
    %634 = vmatpush1.msra.mxu0 %v332
    %635 = vmatprep.subr.mxu0 0.0
    %636 = vmatpush1.msra.mxu0 %v335
    %637 = vmatprep.subr.mxu0 0.0
    %638 = vmatpush1.msra.mxu0 %v338
    %639 = vmatprep.subr.mxu0 0.0
    %640 = vmatpush1.msra.mxu0 %v341
    %641 = vmatprep.subr.mxu0 0.0
    %642 = vmatpush1.msra.mxu0 %v344
    %643 = vmatprep.subr.mxu0 0.0
    %644 = vmatpush1.msra.mxu0 %v347
    %645 = vmatprep.subr.mxu0 0.0
    %646 = vmatpush1.msra.mxu0 %v350
    %647 = vmatprep.subr.mxu0 0.0
    %648 = vmatpush1.msra.mxu0 %v353
    %649 = vmatprep.subr.mxu0 0.0
    %650 = vmatpush1.msra.mxu0 %v356
    %651 = vmatprep.subr.mxu0 0.0
    %652 = vmatpush1.msra.mxu0 %v359
    %653 = vmatprep.subr.mxu0 0.0
    %654 = vmatpush1.msra.mxu0 %v362
    %655 = vmatprep.subr.mxu0 0.0
    %656 = vmatpush1.msra.mxu0 0.0
    %657 = vmatprep.subr.mxu0 0.0
    %658 = vmatpush1.msra.mxu0 0.0
    %659 = vmatprep.subr.mxu0 0.0
    %660 = vmatpush1.msra.mxu0 0.0
    %661 = vmatprep.subr.mxu0 0.0
    %662 = vmatpush1.msra.mxu0 0.0
    %663 = vmatprep.subr.mxu0 0.0
    %664 = vmatpush1.msra.mxu0 0.0
    %665 = vmatprep.subr.mxu0 0.0
    %666 = vmatpush1.msra.mxu0 0.0
    %667 = vmatprep.subr.mxu0 0.0
    %668 = vmatpush1.msra.mxu0 0.0
    %669 = vmatprep.subr.mxu0 0.0
    %670 = vmatpush1.msra.mxu0 0.0
    %671 = vmatprep.subr.mxu0 0.0
    %672 = vmatpush1.msra.mxu0 0.0
    %673 = vmatprep.subr.mxu0 0.0
    %674 = vmatpush1.msra.mxu0 0.0
    %675 = vmatprep.subr.mxu0 0.0
    %676 = vmatpush1.msra.mxu0 0.0
    %677 = vmatprep.subr.mxu0 0.0
    %678 = vmatpush1.msra.mxu0 0.0
    %679 = vmatprep.subr.mxu0 0.0
    %680 = vmatpush1.msra.mxu0 0.0
    %681 = vmatprep.subr.mxu0 0.0
    %682 = vmatpush1.msra.mxu0 0.0
    %683 = vmatprep.subr.mxu0 0.0
    %684 = vmatpush1.msra.mxu0 0.0
    %685 = vmatprep.subr.mxu0 0.0
    %686 = vmatpush1.msra.mxu0 0.0
    %687 = vmatprep.mubr.f32.mxu0 0.0
    %688 = vmatmul.mubr.f32.gmra.mrb[0].mxu0 %v548
    %v689 = vpop.f32.mrb[0].mxu0
    %v690 = vadd.f32 %v378, %v689
    %v691 = vpop.f32.mrb[0].mxu0
    %692 = vdwg.mxu0
    %v693 = vadd.f32 %v551, %v619
    %v694 = vxor.u32 %v693, 2147483648
    %v695 = vmul.f32 %v694, 1.442695
    %v696 = vpow.pop %v695
    %v697 = vadd.f32 %v696, 1.0
    %v698 = vrcp.pop %v697
    %v699 = vmul.f32 1.0, %v698
    %v701 = vrot.slane %v551, 1
    %v703 = vadd.f32 %v701, %v621
    %v704 = vxor.u32 %v703, 2147483648
    %v705 = vmul.f32 %v704, 1.442695
    %v706 = vpow.pop %v705
    %v707 = vadd.f32 %v706, 1.0
    %v708 = vrcp.pop %v707
    %v709 = vmul.f32 1.0, %v708
    %v710 = vmul.f32 %v699, %v690
    %v711 = vrot.slane %v551, 2
    %v713 = vadd.f32 %v711, %v710
    %v714 = vtanh.pop %v713
    %v715 = vsub.f32 1.0, %v709
    %v716 = vmul.f32 %v715, %v714
    %v717 = vmul.f32 %v709, %v548
    %v718 = vadd.f32 %v716, %v717
    %719 = vst [vmem:[#allocation3 + $0x1] sm:$0x1] %v718
    %s720 = scalar_lea.vmem [#allocation2], 2
    %v721 = vld [vmem:[%s720] ss:$8 sm:$0x7]
    %722 = vmatprep.subr.mxu0 %v316
    %723 = vmatpush1.msra.mxu0 %v315
    %724 = vmatprep.subr.mxu0 %v319
    %725 = vmatpush1.msra.mxu0 %v318
    %726 = vmatprep.subr.mxu0 %v322
    %727 = vmatpush1.msra.mxu0 %v321
    %728 = vmatprep.subr.mxu0 %v325
    %729 = vmatpush1.msra.mxu0 %v324
    %730 = vmatprep.subr.mxu0 %v328
    %731 = vmatpush1.msra.mxu0 %v327
    %732 = vmatprep.subr.mxu0 %v331
    %733 = vmatpush1.msra.mxu0 %v330
    %734 = vmatprep.subr.mxu0 %v334
    %735 = vmatpush1.msra.mxu0 %v333
    %736 = vmatprep.subr.mxu0 %v337
    %737 = vmatpush1.msra.mxu0 %v336
    %738 = vmatprep.subr.mxu0 %v340
    %739 = vmatpush1.msra.mxu0 %v339
    %740 = vmatprep.subr.mxu0 %v343
    %741 = vmatpush1.msra.mxu0 %v342
    %742 = vmatprep.subr.mxu0 %v346
    %743 = vmatpush1.msra.mxu0 %v345
    %744 = vmatprep.subr.mxu0 %v349
    %745 = vmatpush1.msra.mxu0 %v348
    %746 = vmatprep.subr.mxu0 %v352
    %747 = vmatpush1.msra.mxu0 %v351
    %748 = vmatprep.subr.mxu0 %v355
    %749 = vmatpush1.msra.mxu0 %v354
    %750 = vmatprep.subr.mxu0 %v358
    %751 = vmatpush1.msra.mxu0 %v357
    %752 = vmatprep.subr.mxu0 %v361
    %753 = vmatpush1.msra.mxu0 %v360
    %754 = vmatprep.subr.mxu0 0.0
    %755 = vmatpush1.msra.mxu0 0.0
    %756 = vmatprep.subr.mxu0 0.0
    %757 = vmatpush1.msra.mxu0 0.0
    %758 = vmatprep.subr.mxu0 0.0
    %759 = vmatpush1.msra.mxu0 0.0
    %760 = vmatprep.subr.mxu0 0.0
    %761 = vmatpush1.msra.mxu0 0.0
    %762 = vmatprep.subr.mxu0 0.0
    %763 = vmatpush1.msra.mxu0 0.0
    %764 = vmatprep.subr.mxu0 0.0
    %765 = vmatpush1.msra.mxu0 0.0
    %766 = vmatprep.subr.mxu0 0.0
    %767 = vmatpush1.msra.mxu0 0.0
    %768 = vmatprep.subr.mxu0 0.0
    %769 = vmatpush1.msra.mxu0 0.0
    %770 = vmatprep.subr.mxu0 0.0
    %771 = vmatpush1.msra.mxu0 0.0
    %772 = vmatprep.subr.mxu0 0.0
    %773 = vmatpush1.msra.mxu0 0.0
    %774 = vmatprep.subr.mxu0 0.0
    %775 = vmatpush1.msra.mxu0 0.0
    %776 = vmatprep.subr.mxu0 0.0
    %777 = vmatpush1.msra.mxu0 0.0
    %778 = vmatprep.subr.mxu0 0.0
    %779 = vmatpush1.msra.mxu0 0.0
    %780 = vmatprep.subr.mxu0 0.0
    %781 = vmatpush1.msra.mxu0 0.0
    %782 = vmatprep.subr.mxu0 0.0
    %783 = vmatpush1.msra.mxu0 0.0
    %784 = vmatprep.subr.mxu0 0.0
    %785 = vmatpush1.msra.mxu0 0.0
    %786 = vmatprep.mubr.f32.mxu0 0.0
    %787 = vmatmul.mubr.f32.gmra.mrb[0].mxu0 %v718
    %v788 = vpop.f32.mrb[0].mxu0
    %v789 = vadd.f32 %v370, %v788
    %v790 = vpop.f32.mrb[0].mxu0
    %v791 = vadd.f32 %v374, %v790
    %792 = vdwg.mxu0
    %793 = vmatprep.subr.mxu0 0.0
    %794 = vmatpush1.msra.mxu0 %v317
    %795 = vmatprep.subr.mxu0 0.0
    %796 = vmatpush1.msra.mxu0 %v320
    %797 = vmatprep.subr.mxu0 0.0
    %798 = vmatpush1.msra.mxu0 %v323
    %799 = vmatprep.subr.mxu0 0.0
    %800 = vmatpush1.msra.mxu0 %v326
    %801 = vmatprep.subr.mxu0 0.0
    %802 = vmatpush1.msra.mxu0 %v329
    %803 = vmatprep.subr.mxu0 0.0
    %804 = vmatpush1.msra.mxu0 %v332
    %805 = vmatprep.subr.mxu0 0.0
    %806 = vmatpush1.msra.mxu0 %v335
    %807 = vmatprep.subr.mxu0 0.0
    %808 = vmatpush1.msra.mxu0 %v338
    %809 = vmatprep.subr.mxu0 0.0
    %810 = vmatpush1.msra.mxu0 %v341
    %811 = vmatprep.subr.mxu0 0.0
    %812 = vmatpush1.msra.mxu0 %v344
    %813 = vmatprep.subr.mxu0 0.0
    %814 = vmatpush1.msra.mxu0 %v347
    %815 = vmatprep.subr.mxu0 0.0
    %816 = vmatpush1.msra.mxu0 %v350
    %817 = vmatprep.subr.mxu0 0.0
    %818 = vmatpush1.msra.mxu0 %v353
    %819 = vmatprep.subr.mxu0 0.0
    %820 = vmatpush1.msra.mxu0 %v356
    %821 = vmatprep.subr.mxu0 0.0
    %822 = vmatpush1.msra.mxu0 %v359
    %823 = vmatprep.subr.mxu0 0.0
    %824 = vmatpush1.msra.mxu0 %v362
    %825 = vmatprep.subr.mxu0 0.0
    %826 = vmatpush1.msra.mxu0 0.0
    %827 = vmatprep.subr.mxu0 0.0
    %828 = vmatpush1.msra.mxu0 0.0
    %829 = vmatprep.subr.mxu0 0.0
    %830 = vmatpush1.msra.mxu0 0.0
    %831 = vmatprep.subr.mxu0 0.0
    %832 = vmatpush1.msra.mxu0 0.0
    %833 = vmatprep.subr.mxu0 0.0
    %834 = vmatpush1.msra.mxu0 0.0
    %835 = vmatprep.subr.mxu0 0.0
    %836 = vmatpush1.msra.mxu0 0.0
    %837 = vmatprep.subr.mxu0 0.0
    %838 = vmatpush1.msra.mxu0 0.0
    %839 = vmatprep.subr.mxu0 0.0
    %840 = vmatpush1.msra.mxu0 0.0
    %841 = vmatprep.subr.mxu0 0.0
    %842 = vmatpush1.msra.mxu0 0.0
    %843 = vmatprep.subr.mxu0 0.0
    %844 = vmatpush1.msra.mxu0 0.0
    %845 = vmatprep.subr.mxu0 0.0
    %846 = vmatpush1.msra.mxu0 0.0
    %847 = vmatprep.subr.mxu0 0.0
    %848 = vmatpush1.msra.mxu0 0.0
    %849 = vmatprep.subr.mxu0 0.0
    %850 = vmatpush1.msra.mxu0 0.0
    %851 = vmatprep.subr.mxu0 0.0
    %852 = vmatpush1.msra.mxu0 0.0
    %853 = vmatprep.subr.mxu0 0.0
    %854 = vmatpush1.msra.mxu0 0.0
    %855 = vmatprep.subr.mxu0 0.0
    %856 = vmatpush1.msra.mxu0 0.0
    %857 = vmatprep.mubr.f32.mxu0 0.0
    %858 = vmatmul.mubr.f32.gmra.mrb[0].mxu0 %v718
    %v859 = vpop.f32.mrb[0].mxu0
    %v860 = vadd.f32 %v378, %v859
    %v861 = vpop.f32.mrb[0].mxu0
    %862 = vdwg.mxu0
    %v863 = vadd.f32 %v721, %v789
    %v864 = vxor.u32 %v863, 2147483648
    %v865 = vmul.f32 %v864, 1.442695
    %v866 = vpow.pop %v865
    %v867 = vadd.f32 %v866, 1.0
    %v868 = vrcp.pop %v867
    %v869 = vmul.f32 1.0, %v868
    %v871 = vrot.slane %v721, 1
    %v873 = vadd.f32 %v871, %v791
    %v874 = vxor.u32 %v873, 2147483648
    %v875 = vmul.f32 %v874, 1.442695
    %v876 = vpow.pop %v875
    %v877 = vadd.f32 %v876, 1.0
    %v878 = vrcp.pop %v877
    %v879 = vmul.f32 1.0, %v878
    %v880 = vmul.f32 %v869, %v860
    %v881 = vrot.slane %v721, 2
    %v883 = vadd.f32 %v881, %v880
    %v884 = vtanh.pop %v883
    %v885 = vsub.f32 1.0, %v879
    %v886 = vmul.f32 %v885, %v884
    %v887 = vmul.f32 %v879, %v718
    %v888 = vadd.f32 %v886, %v887
    %889 = vst [vmem:[#allocation3 + $0x2] sm:$0x1] %v888
    %s890 = scalar_lea.vmem [#allocation2], 3
    %v891 = vld [vmem:[%s890] ss:$8 sm:$0x7]
    %892 = vmatprep.subr.mxu0 %v316
    %893 = vmatpush1.msra.mxu0 %v315
    %894 = vmatprep.subr.mxu0 %v319
    %895 = vmatpush1.msra.mxu0 %v318
    %896 = vmatprep.subr.mxu0 %v322
    %897 = vmatpush1.msra.mxu0 %v321
    %898 = vmatprep.subr.mxu0 %v325
    %899 = vmatpush1.msra.mxu0 %v324
    %900 = vmatprep.subr.mxu0 %v328
    %901 = vmatpush1.msra.mxu0 %v327
    %902 = vmatprep.subr.mxu0 %v331
    %903 = vmatpush1.msra.mxu0 %v330
    %904 = vmatprep.subr.mxu0 %v334
    %905 = vmatpush1.msra.mxu0 %v333
    %906 = vmatprep.subr.mxu0 %v337
    %907 = vmatpush1.msra.mxu0 %v336
    %908 = vmatprep.subr.mxu0 %v340
    %909 = vmatpush1.msra.mxu0 %v339
    %910 = vmatprep.subr.mxu0 %v343
    %911 = vmatpush1.msra.mxu0 %v342
    %912 = vmatprep.subr.mxu0 %v346
    %913 = vmatpush1.msra.mxu0 %v345
    %914 = vmatprep.subr.mxu0 %v349
    %915 = vmatpush1.msra.mxu0 %v348
    %916 = vmatprep.subr.mxu0 %v352
    %917 = vmatpush1.msra.mxu0 %v351
    %918 = vmatprep.subr.mxu0 %v355
    %919 = vmatpush1.msra.mxu0 %v354
    %920 = vmatprep.subr.mxu0 %v358
    %921 = vmatpush1.msra.mxu0 %v357
    %922 = vmatprep.subr.mxu0 %v361
    %923 = vmatpush1.msra.mxu0 %v360
    %924 = vmatprep.subr.mxu0 0.0
    %925 = vmatpush1.msra.mxu0 0.0
    %926 = vmatprep.subr.mxu0 0.0
    %927 = vmatpush1.msra.mxu0 0.0
    %928 = vmatprep.subr.mxu0 0.0
    %929 = vmatpush1.msra.mxu0 0.0
    %930 = vmatprep.subr.mxu0 0.0
    %931 = vmatpush1.msra.mxu0 0.0
    %932 = vmatprep.subr.mxu0 0.0
    %933 = vmatpush1.msra.mxu0 0.0
    %934 = vmatprep.subr.mxu0 0.0
    %935 = vmatpush1.msra.mxu0 0.0
    %936 = vmatprep.subr.mxu0 0.0
    %937 = vmatpush1.msra.mxu0 0.0
    %938 = vmatprep.subr.mxu0 0.0
    %939 = vmatpush1.msra.mxu0 0.0
    %940 = vmatprep.subr.mxu0 0.0
    %941 = vmatpush1.msra.mxu0 0.0
    %942 = vmatprep.subr.mxu0 0.0
    %943 = vmatpush1.msra.mxu0 0.0
    %944 = vmatprep.subr.mxu0 0.0
    %945 = vmatpush1.msra.mxu0 0.0
    %946 = vmatprep.subr.mxu0 0.0
    %947 = vmatpush1.msra.mxu0 0.0
    %948 = vmatprep.subr.mxu0 0.0
    %949 = vmatpush1.msra.mxu0 0.0
    %950 = vmatprep.subr.mxu0 0.0
    %951 = vmatpush1.msra.mxu0 0.0
    %952 = vmatprep.subr.mxu0 0.0
    %953 = vmatpush1.msra.mxu0 0.0
    %954 = vmatprep.subr.mxu0 0.0
    %955 = vmatpush1.msra.mxu0 0.0
    %956 = vmatprep.mubr.f32.mxu0 0.0
    %957 = vmatmul.mubr.f32.gmra.mrb[0].mxu0 %v888
    %v958 = vpop.f32.mrb[0].mxu0
    %v959 = vadd.f32 %v370, %v958
    %v960 = vpop.f32.mrb[0].mxu0
    %v961 = vadd.f32 %v374, %v960
    %962 = vdwg.mxu0
    %963 = vmatprep.subr.mxu0 0.0
    %964 = vmatpush1.msra.mxu0 %v317
    %965 = vmatprep.subr.mxu0 0.0
    %966 = vmatpush1.msra.mxu0 %v320
    %967 = vmatprep.subr.mxu0 0.0
    %968 = vmatpush1.msra.mxu0 %v323
    %969 = vmatprep.subr.mxu0 0.0
    %970 = vmatpush1.msra.mxu0 %v326
    %971 = vmatprep.subr.mxu0 0.0
    %972 = vmatpush1.msra.mxu0 %v329
    %973 = vmatprep.subr.mxu0 0.0
    %974 = vmatpush1.msra.mxu0 %v332
    %975 = vmatprep.subr.mxu0 0.0
    %976 = vmatpush1.msra.mxu0 %v335
    %977 = vmatprep.subr.mxu0 0.0
    %978 = vmatpush1.msra.mxu0 %v338
    %979 = vmatprep.subr.mxu0 0.0
    %980 = vmatpush1.msra.mxu0 %v341
    %981 = vmatprep.subr.mxu0 0.0
    %982 = vmatpush1.msra.mxu0 %v344
    %983 = vmatprep.subr.mxu0 0.0
    %984 = vmatpush1.msra.mxu0 %v347
    %985 = vmatprep.subr.mxu0 0.0
    %986 = vmatpush1.msra.mxu0 %v350
    %987 = vmatprep.subr.mxu0 0.0
    %988 = vmatpush1.msra.mxu0 %v353
    %989 = vmatprep.subr.mxu0 0.0
    %990 = vmatpush1.msra.mxu0 %v356
    %991 = vmatprep.subr.mxu0 0.0
    %992 = vmatpush1.msra.mxu0 %v359
    %993 = vmatprep.subr.mxu0 0.0
    %994 = vmatpush1.msra.mxu0 %v362
    %995 = vmatprep.subr.mxu0 0.0
    %996 = vmatpush1.msra.mxu0 0.0
    %997 = vmatprep.subr.mxu0 0.0
    %998 = vmatpush1.msra.mxu0 0.0
    %999 = vmatprep.subr.mxu0 0.0
    %1000 = vmatpush1.msra.mxu0 0.0
    %1001 = vmatprep.subr.mxu0 0.0
    %1002 = vmatpush1.msra.mxu0 0.0
    %1003 = vmatprep.subr.mxu0 0.0
    %1004 = vmatpush1.msra.mxu0 0.0
    %1005 = vmatprep.subr.mxu0 0.0
    %1006 = vmatpush1.msra.mxu0 0.0
    %1007 = vmatprep.subr.mxu0 0.0
    %1008 = vmatpush1.msra.mxu0 0.0
    %1009 = vmatprep.subr.mxu0 0.0
    %1010 = vmatpush1.msra.mxu0 0.0
    %1011 = vmatprep.subr.mxu0 0.0
    %1012 = vmatpush1.msra.mxu0 0.0
    %1013 = vmatprep.subr.mxu0 0.0
    %1014 = vmatpush1.msra.mxu0 0.0
    %1015 = vmatprep.subr.mxu0 0.0
    %1016 = vmatpush1.msra.mxu0 0.0
    %1017 = vmatprep.subr.mxu0 0.0
    %1018 = vmatpush1.msra.mxu0 0.0
    %1019 = vmatprep.subr.mxu0 0.0
    %1020 = vmatpush1.msra.mxu0 0.0
    %1021 = vmatprep.subr.mxu0 0.0
    %1022 = vmatpush1.msra.mxu0 0.0
    %1023 = vmatprep.subr.mxu0 0.0
    %1024 = vmatpush1.msra.mxu0 0.0
    %1025 = vmatprep.subr.mxu0 0.0
    %1026 = vmatpush1.msra.mxu0 0.0
    %1027 = vmatprep.mubr.f32.mxu0 0.0
    %1028 = vmatmul.mubr.f32.gmra.mrb[0].mxu0 %v888
    %v1029 = vpop.f32.mrb[0].mxu0
    %v1030 = vadd.f32 %v378, %v1029
    %v1031 = vpop.f32.mrb[0].mxu0
    %1032 = vdwg.mxu0
    %v1033 = vadd.f32 %v891, %v959
    %v1034 = vxor.u32 %v1033, 2147483648
    %v1035 = vmul.f32 %v1034, 1.442695
    %v1036 = vpow.pop %v1035
    %v1037 = vadd.f32 %v1036, 1.0
    %v1038 = vrcp.pop %v1037
    %v1039 = vmul.f32 1.0, %v1038
    %v1041 = vrot.slane %v891, 1
    %v1043 = vadd.f32 %v1041, %v961
    %v1044 = vxor.u32 %v1043, 2147483648
    %v1045 = vmul.f32 %v1044, 1.442695
    %v1046 = vpow.pop %v1045
    %v1047 = vadd.f32 %v1046, 1.0
    %v1048 = vrcp.pop %v1047
    %v1049 = vmul.f32 1.0, %v1048
    %v1050 = vmul.f32 %v1039, %v1030
    %v1051 = vrot.slane %v891, 2
    %v1053 = vadd.f32 %v1051, %v1050
    %v1054 = vtanh.pop %v1053
    %v1055 = vsub.f32 1.0, %v1049
    %v1056 = vmul.f32 %v1055, %v1054
    %v1057 = vmul.f32 %v1049, %v888
    %v1058 = vadd.f32 %v1056, %v1057
    %1059 = vst [vmem:[#allocation3 + $0x3] sm:$0x1] %v1058
    %s1060 = scalar_lea.vmem [#allocation2], 4
    %v1061 = vld [vmem:[%s1060] ss:$8 sm:$0x7]
    %1062 = vmatprep.subr.mxu0 %v316
    %1063 = vmatpush1.msra.mxu0 %v315
    %1064 = vmatprep.subr.mxu0 %v319
    %1065 = vmatpush1.msra.mxu0 %v318
    %1066 = vmatprep.subr.mxu0 %v322
    %1067 = vmatpush1.msra.mxu0 %v321
    %1068 = vmatprep.subr.mxu0 %v325
    %1069 = vmatpush1.msra.mxu0 %v324
    %1070 = vmatprep.subr.mxu0 %v328
    %1071 = vmatpush1.msra.mxu0 %v327
    %1072 = vmatprep.subr.mxu0 %v331
    %1073 = vmatpush1.msra.mxu0 %v330
    %1074 = vmatprep.subr.mxu0 %v334
    %1075 = vmatpush1.msra.mxu0 %v333
    %1076 = vmatprep.subr.mxu0 %v337
    %1077 = vmatpush1.msra.mxu0 %v336
    %1078 = vmatprep.subr.mxu0 %v340
    %1079 = vmatpush1.msra.mxu0 %v339
    %1080 = vmatprep.subr.mxu0 %v343
    %1081 = vmatpush1.msra.mxu0 %v342
    %1082 = vmatprep.subr.mxu0 %v346
    %1083 = vmatpush1.msra.mxu0 %v345
    %1084 = vmatprep.subr.mxu0 %v349
    %1085 = vmatpush1.msra.mxu0 %v348
    %1086 = vmatprep.subr.mxu0 %v352
    %1087 = vmatpush1.msra.mxu0 %v351
    %1088 = vmatprep.subr.mxu0 %v355
    %1089 = vmatpush1.msra.mxu0 %v354
    %1090 = vmatprep.subr.mxu0 %v358
    %1091 = vmatpush1.msra.mxu0 %v357
    %1092 = vmatprep.subr.mxu0 %v361
    %1093 = vmatpush1.msra.mxu0 %v360
    %1094 = vmatprep.subr.mxu0 0.0
    %1095 = vmatpush1.msra.mxu0 0.0
    %1096 = vmatprep.subr.mxu0 0.0
    %1097 = vmatpush1.msra.mxu0 0.0
    %1098 = vmatprep.subr.mxu0 0.0
    %1099 = vmatpush1.msra.mxu0 0.0
    %1100 = vmatprep.subr.mxu0 0.0
    %1101 = vmatpush1.msra.mxu0 0.0
    %1102 = vmatprep.subr.mxu0 0.0
    %1103 = vmatpush1.msra.mxu0 0.0
    %1104 = vmatprep.subr.mxu0 0.0
    %1105 = vmatpush1.msra.mxu0 0.0
    %1106 = vmatprep.subr.mxu0 0.0
    %1107 = vmatpush1.msra.mxu0 0.0
    %1108 = vmatprep.subr.mxu0 0.0
    %1109 = vmatpush1.msra.mxu0 0.0
    %1110 = vmatprep.subr.mxu0 0.0
    %1111 = vmatpush1.msra.mxu0 0.0
    %1112 = vmatprep.subr.mxu0 0.0
    %1113 = vmatpush1.msra.mxu0 0.0
    %1114 = vmatprep.subr.mxu0 0.0
    %1115 = vmatpush1.msra.mxu0 0.0
    %1116 = vmatprep.subr.mxu0 0.0
    %1117 = vmatpush1.msra.mxu0 0.0
    %1118 = vmatprep.subr.mxu0 0.0
    %1119 = vmatpush1.msra.mxu0 0.0
    %1120 = vmatprep.subr.mxu0 0.0
    %1121 = vmatpush1.msra.mxu0 0.0
    %1122 = vmatprep.subr.mxu0 0.0
    %1123 = vmatpush1.msra.mxu0 0.0
    %1124 = vmatprep.subr.mxu0 0.0
    %1125 = vmatpush1.msra.mxu0 0.0
    %1126 = vmatprep.mubr.f32.mxu0 0.0
    %1127 = vmatmul.mubr.f32.gmra.mrb[0].mxu0 %v1058
    %v1128 = vpop.f32.mrb[0].mxu0
    %v1129 = vadd.f32 %v370, %v1128
    %v1130 = vpop.f32.mrb[0].mxu0
    %v1131 = vadd.f32 %v374, %v1130
    %1132 = vdwg.mxu0
    %1133 = vmatprep.subr.mxu0 0.0
    %1134 = vmatpush1.msra.mxu0 %v317
    %1135 = vmatprep.subr.mxu0 0.0
    %1136 = vmatpush1.msra.mxu0 %v320
    %1137 = vmatprep.subr.mxu0 0.0
    %1138 = vmatpush1.msra.mxu0 %v323
    %1139 = vmatprep.subr.mxu0 0.0
    %1140 = vmatpush1.msra.mxu0 %v326
    %1141 = vmatprep.subr.mxu0 0.0
    %1142 = vmatpush1.msra.mxu0 %v329
    %1143 = vmatprep.subr.mxu0 0.0
    %1144 = vmatpush1.msra.mxu0 %v332
    %1145 = vmatprep.subr.mxu0 0.0
    %1146 = vmatpush1.msra.mxu0 %v335
    %1147 = vmatprep.subr.mxu0 0.0
    %1148 = vmatpush1.msra.mxu0 %v338
    %1149 = vmatprep.subr.mxu0 0.0
    %1150 = vmatpush1.msra.mxu0 %v341
    %1151 = vmatprep.subr.mxu0 0.0
    %1152 = vmatpush1.msra.mxu0 %v344
    %1153 = vmatprep.subr.mxu0 0.0
    %1154 = vmatpush1.msra.mxu0 %v347
    %1155 = vmatprep.subr.mxu0 0.0
    %1156 = vmatpush1.msra.mxu0 %v350
    %1157 = vmatprep.subr.mxu0 0.0
    %1158 = vmatpush1.msra.mxu0 %v353
    %1159 = vmatprep.subr.mxu0 0.0
    %1160 = vmatpush1.msra.mxu0 %v356
    %1161 = vmatprep.subr.mxu0 0.0
    %1162 = vmatpush1.msra.mxu0 %v359
    %1163 = vmatprep.subr.mxu0 0.0
    %1164 = vmatpush1.msra.mxu0 %v362
    %1165 = vmatprep.subr.mxu0 0.0
    %1166 = vmatpush1.msra.mxu0 0.0
    %1167 = vmatprep.subr.mxu0 0.0
    %1168 = vmatpush1.msra.mxu0 0.0
    %1169 = vmatprep.subr.mxu0 0.0
    %1170 = vmatpush1.msra.mxu0 0.0
    %1171 = vmatprep.subr.mxu0 0.0
    %1172 = vmatpush1.msra.mxu0 0.0
    %1173 = vmatprep.subr.mxu0 0.0
    %1174 = vmatpush1.msra.mxu0 0.0
    %1175 = vmatprep.subr.mxu0 0.0
    %1176 = vmatpush1.msra.mxu0 0.0
    %1177 = vmatprep.subr.mxu0 0.0
    %1178 = vmatpush1.msra.mxu0 0.0
    %1179 = vmatprep.subr.mxu0 0.0
    %1180 = vmatpush1.msra.mxu0 0.0
    %1181 = vmatprep.subr.mxu0 0.0
    %1182 = vmatpush1.msra.mxu0 0.0
    %1183 = vmatprep.subr.mxu0 0.0
    %1184 = vmatpush1.msra.mxu0 0.0
    %1185 = vmatprep.subr.mxu0 0.0
    %1186 = vmatpush1.msra.mxu0 0.0
    %1187 = vmatprep.subr.mxu0 0.0
    %1188 = vmatpush1.msra.mxu0 0.0
    %1189 = vmatprep.subr.mxu0 0.0
    %1190 = vmatpush1.msra.mxu0 0.0
    %1191 = vmatprep.subr.mxu0 0.0
    %1192 = vmatpush1.msra.mxu0 0.0
    %1193 = vmatprep.subr.mxu0 0.0
    %1194 = vmatpush1.msra.mxu0 0.0
    %1195 = vmatprep.subr.mxu0 0.0
    %1196 = vmatpush1.msra.mxu0 0.0
    %1197 = vmatprep.mubr.f32.mxu0 0.0
    %1198 = vmatmul.mubr.f32.gmra.mrb[0].mxu0 %v1058
    %v1199 = vpop.f32.mrb[0].mxu0
    %v1200 = vadd.f32 %v378, %v1199
    %v1201 = vpop.f32.mrb[0].mxu0
    %1202 = vdwg.mxu0
    %v1203 = vadd.f32 %v1061, %v1129
    %v1204 = vxor.u32 %v1203, 2147483648
    %v1205 = vmul.f32 %v1204, 1.442695
    %v1206 = vpow.pop %v1205
    %v1207 = vadd.f32 %v1206, 1.0
    %v1208 = vrcp.pop %v1207
    %v1209 = vmul.f32 1.0, %v1208
    %v1211 = vrot.slane %v1061, 1
    %v1213 = vadd.f32 %v1211, %v1131
    %v1214 = vxor.u32 %v1213, 2147483648
    %v1215 = vmul.f32 %v1214, 1.442695
    %v1216 = vpow.pop %v1215
    %v1217 = vadd.f32 %v1216, 1.0
    %v1218 = vrcp.pop %v1217
    %v1219 = vmul.f32 1.0, %v1218
    %v1220 = vmul.f32 %v1209, %v1200
    %v1221 = vrot.slane %v1061, 2
    %v1223 = vadd.f32 %v1221, %v1220
    %v1224 = vtanh.pop %v1223
    %v1225 = vsub.f32 1.0, %v1219
    %v1226 = vmul.f32 %v1225, %v1224
    %v1227 = vmul.f32 %v1219, %v1058
    %v1228 = vadd.f32 %v1226, %v1227
    %1229 = vst [vmem:[#allocation3 + $0x4] sm:$0x1] %v1228
    %s1230 = scalar_lea.vmem [#allocation2], 5
    %v1231 = vld [vmem:[%s1230] ss:$8 sm:$0x7]
    %1232 = vmatprep.subr.mxu0 %v316
    %1233 = vmatpush1.msra.mxu0 %v315
    %1234 = vmatprep.subr.mxu0 %v319
    %1235 = vmatpush1.msra.mxu0 %v318
    %1236 = vmatprep.subr.mxu0 %v322
    %1237 = vmatpush1.msra.mxu0 %v321
    %1238 = vmatprep.subr.mxu0 %v325
    %1239 = vmatpush1.msra.mxu0 %v324
    %1240 = vmatprep.subr.mxu0 %v328
    %1241 = vmatpush1.msra.mxu0 %v327
    %1242 = vmatprep.subr.mxu0 %v331
    %1243 = vmatpush1.msra.mxu0 %v330
    %1244 = vmatprep.subr.mxu0 %v334
    %1245 = vmatpush1.msra.mxu0 %v333
    %1246 = vmatprep.subr.mxu0 %v337
    %1247 = vmatpush1.msra.mxu0 %v336
    %1248 = vmatprep.subr.mxu0 %v340
    %1249 = vmatpush1.msra.mxu0 %v339
    %1250 = vmatprep.subr.mxu0 %v343
    %1251 = vmatpush1.msra.mxu0 %v342
    %1252 = vmatprep.subr.mxu0 %v346
    %1253 = vmatpush1.msra.mxu0 %v345
    %1254 = vmatprep.subr.mxu0 %v349
    %1255 = vmatpush1.msra.mxu0 %v348
    %1256 = vmatprep.subr.mxu0 %v352
    %1257 = vmatpush1.msra.mxu0 %v351
    %1258 = vmatprep.subr.mxu0 %v355
    %1259 = vmatpush1.msra.mxu0 %v354
    %1260 = vmatprep.subr.mxu0 %v358
    %1261 = vmatpush1.msra.mxu0 %v357
    %1262 = vmatprep.subr.mxu0 %v361
    %1263 = vmatpush1.msra.mxu0 %v360
    %1264 = vmatprep.subr.mxu0 0.0
    %1265 = vmatpush1.msra.mxu0 0.0
    %1266 = vmatprep.subr.mxu0 0.0
    %1267 = vmatpush1.msra.mxu0 0.0
    %1268 = vmatprep.subr.mxu0 0.0
    %1269 = vmatpush1.msra.mxu0 0.0
    %1270 = vmatprep.subr.mxu0 0.0
    %1271 = vmatpush1.msra.mxu0 0.0
    %1272 = vmatprep.subr.mxu0 0.0
    %1273 = vmatpush1.msra.mxu0 0.0
    %1274 = vmatprep.subr.mxu0 0.0
    %1275 = vmatpush1.msra.mxu0 0.0
    %1276 = vmatprep.subr.mxu0 0.0
    %1277 = vmatpush1.msra.mxu0 0.0
    %1278 = vmatprep.subr.mxu0 0.0
    %1279 = vmatpush1.msra.mxu0 0.0
    %1280 = vmatprep.subr.mxu0 0.0
    %1281 = vmatpush1.msra.mxu0 0.0
    %1282 = vmatprep.subr.mxu0 0.0
    %1283 = vmatpush1.msra.mxu0 0.0
    %1284 = vmatprep.subr.mxu0 0.0
    %1285 = vmatpush1.msra.mxu0 0.0
    %1286 = vmatprep.subr.mxu0 0.0
    %1287 = vmatpush1.msra.mxu0 0.0
    %1288 = vmatprep.subr.mxu0 0.0
    %1289 = vmatpush1.msra.mxu0 0.0
    %1290 = vmatprep.subr.mxu0 0.0
    %1291 = vmatpush1.msra.mxu0 0.0
    %1292 = vmatprep.subr.mxu0 0.0
    %1293 = vmatpush1.msra.mxu0 0.0
    %1294 = vmatprep.subr.mxu0 0.0
    %1295 = vmatpush1.msra.mxu0 0.0
    %1296 = vmatprep.mubr.f32.mxu0 0.0
    %1297 = vmatmul.mubr.f32.gmra.mrb[0].mxu0 %v1228
    %v1298 = vpop.f32.mrb[0].mxu0
    %v1299 = vadd.f32 %v370, %v1298
    %v1300 = vpop.f32.mrb[0].mxu0
    %v1301 = vadd.f32 %v374, %v1300
    %1302 = vdwg.mxu0
    %1303 = vmatprep.subr.mxu0 0.0
    %1304 = vmatpush1.msra.mxu0 %v317
    %1305 = vmatprep.subr.mxu0 0.0
    %1306 = vmatpush1.msra.mxu0 %v320
    %1307 = vmatprep.subr.mxu0 0.0
    %1308 = vmatpush1.msra.mxu0 %v323
    %1309 = vmatprep.subr.mxu0 0.0
    %1310 = vmatpush1.msra.mxu0 %v326
    %1311 = vmatprep.subr.mxu0 0.0
    %1312 = vmatpush1.msra.mxu0 %v329
    %1313 = vmatprep.subr.mxu0 0.0
    %1314 = vmatpush1.msra.mxu0 %v332
    %1315 = vmatprep.subr.mxu0 0.0
    %1316 = vmatpush1.msra.mxu0 %v335
    %1317 = vmatprep.subr.mxu0 0.0
    %1318 = vmatpush1.msra.mxu0 %v338
    %1319 = vmatprep.subr.mxu0 0.0
    %1320 = vmatpush1.msra.mxu0 %v341
    %1321 = vmatprep.subr.mxu0 0.0
    %1322 = vmatpush1.msra.mxu0 %v344
    %1323 = vmatprep.subr.mxu0 0.0
    %1324 = vmatpush1.msra.mxu0 %v347
    %1325 = vmatprep.subr.mxu0 0.0
    %1326 = vmatpush1.msra.mxu0 %v350
    %1327 = vmatprep.subr.mxu0 0.0
    %1328 = vmatpush1.msra.mxu0 %v353
    %1329 = vmatprep.subr.mxu0 0.0
    %1330 = vmatpush1.msra.mxu0 %v356
    %1331 = vmatprep.subr.mxu0 0.0
    %1332 = vmatpush1.msra.mxu0 %v359
    %1333 = vmatprep.subr.mxu0 0.0
    %1334 = vmatpush1.msra.mxu0 %v362
    %1335 = vmatprep.subr.mxu0 0.0
    %1336 = vmatpush1.msra.mxu0 0.0
    %1337 = vmatprep.subr.mxu0 0.0
    %1338 = vmatpush1.msra.mxu0 0.0
    %1339 = vmatprep.subr.mxu0 0.0
    %1340 = vmatpush1.msra.mxu0 0.0
    %1341 = vmatprep.subr.mxu0 0.0
    %1342 = vmatpush1.msra.mxu0 0.0
    %1343 = vmatprep.subr.mxu0 0.0
    %1344 = vmatpush1.msra.mxu0 0.0
    %1345 = vmatprep.subr.mxu0 0.0
    %1346 = vmatpush1.msra.mxu0 0.0
    %1347 = vmatprep.subr.mxu0 0.0
    %1348 = vmatpush1.msra.mxu0 0.0
    %1349 = vmatprep.subr.mxu0 0.0
    %1350 = vmatpush1.msra.mxu0 0.0
    %1351 = vmatprep.subr.mxu0 0.0
    %1352 = vmatpush1.msra.mxu0 0.0
    %1353 = vmatprep.subr.mxu0 0.0
    %1354 = vmatpush1.msra.mxu0 0.0
    %1355 = vmatprep.subr.mxu0 0.0
    %1356 = vmatpush1.msra.mxu0 0.0
    %1357 = vmatprep.subr.mxu0 0.0
    %1358 = vmatpush1.msra.mxu0 0.0
    %1359 = vmatprep.subr.mxu0 0.0
    %1360 = vmatpush1.msra.mxu0 0.0
    %1361 = vmatprep.subr.mxu0 0.0
    %1362 = vmatpush1.msra.mxu0 0.0
    %1363 = vmatprep.subr.mxu0 0.0
    %1364 = vmatpush1.msra.mxu0 0.0
    %1365 = vmatprep.subr.mxu0 0.0
    %1366 = vmatpush1.msra.mxu0 0.0
    %1367 = vmatprep.mubr.f32.mxu0 0.0
    %1368 = vmatmul.mubr.f32.gmra.mrb[0].mxu0 %v1228
    %v1369 = vpop.f32.mrb[0].mxu0
    %v1370 = vadd.f32 %v378, %v1369
    %v1371 = vpop.f32.mrb[0].mxu0
    %1372 = vdwg.mxu0
    %v1373 = vadd.f32 %v1231, %v1299
    %v1374 = vxor.u32 %v1373, 2147483648
    %v1375 = vmul.f32 %v1374, 1.442695
    %v1376 = vpow.pop %v1375
    %v1377 = vadd.f32 %v1376, 1.0
    %v1378 = vrcp.pop %v1377
    %v1379 = vmul.f32 1.0, %v1378
    %v1381 = vrot.slane %v1231, 1
    %v1383 = vadd.f32 %v1381, %v1301
    %v1384 = vxor.u32 %v1383, 2147483648
    %v1385 = vmul.f32 %v1384, 1.442695
    %v1386 = vpow.pop %v1385
    %v1387 = vadd.f32 %v1386, 1.0
    %v1388 = vrcp.pop %v1387
    %v1389 = vmul.f32 1.0, %v1388
    %v1390 = vmul.f32 %v1379, %v1370
    %v1391 = vrot.slane %v1231, 2
    %v1393 = vadd.f32 %v1391, %v1390
    %v1394 = vtanh.pop %v1393
    %v1395 = vsub.f32 1.0, %v1389
    %v1396 = vmul.f32 %v1395, %v1394
    %v1397 = vmul.f32 %v1389, %v1228
    %v1398 = vadd.f32 %v1396, %v1397
    %1399 = vst [vmem:[#allocation3 + $0x5] sm:$0x1] %v1398
    %s1400 = scalar_lea.vmem [#allocation2], 6
    %v1401 = vld [vmem:[%s1400] ss:$8 sm:$0x7]
    %1402 = vmatprep.subr.mxu0 %v316
    %1403 = vmatpush1.msra.mxu0 %v315
    %1404 = vmatprep.subr.mxu0 %v319
    %1405 = vmatpush1.msra.mxu0 %v318
    %1406 = vmatprep.subr.mxu0 %v322
    %1407 = vmatpush1.msra.mxu0 %v321
    %1408 = vmatprep.subr.mxu0 %v325
    %1409 = vmatpush1.msra.mxu0 %v324
    %1410 = vmatprep.subr.mxu0 %v328
    %1411 = vmatpush1.msra.mxu0 %v327
    %1412 = vmatprep.subr.mxu0 %v331
    %1413 = vmatpush1.msra.mxu0 %v330
    %1414 = vmatprep.subr.mxu0 %v334
    %1415 = vmatpush1.msra.mxu0 %v333
    %1416 = vmatprep.subr.mxu0 %v337
    %1417 = vmatpush1.msra.mxu0 %v336
    %1418 = vmatprep.subr.mxu0 %v340
    %1419 = vmatpush1.msra.mxu0 %v339
    %1420 = vmatprep.subr.mxu0 %v343
    %1421 = vmatpush1.msra.mxu0 %v342
    %1422 = vmatprep.subr.mxu0 %v346
    %1423 = vmatpush1.msra.mxu0 %v345
    %1424 = vmatprep.subr.mxu0 %v349
    %1425 = vmatpush1.msra.mxu0 %v348
    %1426 = vmatprep.subr.mxu0 %v352
    %1427 = vmatpush1.msra.mxu0 %v351
    %1428 = vmatprep.subr.mxu0 %v355
    %1429 = vmatpush1.msra.mxu0 %v354
    %1430 = vmatprep.subr.mxu0 %v358
    %1431 = vmatpush1.msra.mxu0 %v357
    %1432 = vmatprep.subr.mxu0 %v361
    %1433 = vmatpush1.msra.mxu0 %v360
    %1434 = vmatprep.subr.mxu0 0.0
    %1435 = vmatpush1.msra.mxu0 0.0
    %1436 = vmatprep.subr.mxu0 0.0
    %1437 = vmatpush1.msra.mxu0 0.0
    %1438 = vmatprep.subr.mxu0 0.0
    %1439 = vmatpush1.msra.mxu0 0.0
    %1440 = vmatprep.subr.mxu0 0.0
    %1441 = vmatpush1.msra.mxu0 0.0
    %1442 = vmatprep.subr.mxu0 0.0
    %1443 = vmatpush1.msra.mxu0 0.0
    %1444 = vmatprep.subr.mxu0 0.0
    %1445 = vmatpush1.msra.mxu0 0.0
    %1446 = vmatprep.subr.mxu0 0.0
    %1447 = vmatpush1.msra.mxu0 0.0
    %1448 = vmatprep.subr.mxu0 0.0
    %1449 = vmatpush1.msra.mxu0 0.0
    %1450 = vmatprep.subr.mxu0 0.0
    %1451 = vmatpush1.msra.mxu0 0.0
    %1452 = vmatprep.subr.mxu0 0.0
    %1453 = vmatpush1.msra.mxu0 0.0
    %1454 = vmatprep.subr.mxu0 0.0
    %1455 = vmatpush1.msra.mxu0 0.0
    %1456 = vmatprep.subr.mxu0 0.0
    %1457 = vmatpush1.msra.mxu0 0.0
    %1458 = vmatprep.subr.mxu0 0.0
    %1459 = vmatpush1.msra.mxu0 0.0
    %1460 = vmatprep.subr.mxu0 0.0
    %1461 = vmatpush1.msra.mxu0 0.0
    %1462 = vmatprep.subr.mxu0 0.0
    %1463 = vmatpush1.msra.mxu0 0.0
    %1464 = vmatprep.subr.mxu0 0.0
    %1465 = vmatpush1.msra.mxu0 0.0
    %1466 = vmatprep.mubr.f32.mxu0 0.0
    %1467 = vmatmul.mubr.f32.gmra.mrb[0].mxu0 %v1398
    %v1468 = vpop.f32.mrb[0].mxu0
    %v1469 = vadd.f32 %v370, %v1468
    %v1470 = vpop.f32.mrb[0].mxu0
    %v1471 = vadd.f32 %v374, %v1470
    %1472 = vdwg.mxu0
    %1473 = vmatprep.subr.mxu0 0.0
    %1474 = vmatpush1.msra.mxu0 %v317
    %1475 = vmatprep.subr.mxu0 0.0
    %1476 = vmatpush1.msra.mxu0 %v320
    %1477 = vmatprep.subr.mxu0 0.0
    %1478 = vmatpush1.msra.mxu0 %v323
    %1479 = vmatprep.subr.mxu0 0.0
    %1480 = vmatpush1.msra.mxu0 %v326
    %1481 = vmatprep.subr.mxu0 0.0
    %1482 = vmatpush1.msra.mxu0 %v329
    %1483 = vmatprep.subr.mxu0 0.0
    %1484 = vmatpush1.msra.mxu0 %v332
    %1485 = vmatprep.subr.mxu0 0.0
    %1486 = vmatpush1.msra.mxu0 %v335
    %1487 = vmatprep.subr.mxu0 0.0
    %1488 = vmatpush1.msra.mxu0 %v338
    %1489 = vmatprep.subr.mxu0 0.0
    %1490 = vmatpush1.msra.mxu0 %v341
    %1491 = vmatprep.subr.mxu0 0.0
    %1492 = vmatpush1.msra.mxu0 %v344
    %1493 = vmatprep.subr.mxu0 0.0
    %1494 = vmatpush1.msra.mxu0 %v347
    %1495 = vmatprep.subr.mxu0 0.0
    %1496 = vmatpush1.msra.mxu0 %v350
    %1497 = vmatprep.subr.mxu0 0.0
    %1498 = vmatpush1.msra.mxu0 %v353
    %1499 = vmatprep.subr.mxu0 0.0
    %1500 = vmatpush1.msra.mxu0 %v356
    %1501 = vmatprep.subr.mxu0 0.0
    %1502 = vmatpush1.msra.mxu0 %v359
    %1503 = vmatprep.subr.mxu0 0.0
    %1504 = vmatpush1.msra.mxu0 %v362
    %1505 = vmatprep.subr.mxu0 0.0
    %1506 = vmatpush1.msra.mxu0 0.0
    %1507 = vmatprep.subr.mxu0 0.0
    %1508 = vmatpush1.msra.mxu0 0.0
    %1509 = vmatprep.subr.mxu0 0.0
    %1510 = vmatpush1.msra.mxu0 0.0
    %1511 = vmatprep.subr.mxu0 0.0
    %1512 = vmatpush1.msra.mxu0 0.0
    %1513 = vmatprep.subr.mxu0 0.0
    %1514 = vmatpush1.msra.mxu0 0.0
    %1515 = vmatprep.subr.mxu0 0.0
    %1516 = vmatpush1.msra.mxu0 0.0
    %1517 = vmatprep.subr.mxu0 0.0
    %1518 = vmatpush1.msra.mxu0 0.0
    %1519 = vmatprep.subr.mxu0 0.0
    %1520 = vmatpush1.msra.mxu0 0.0
    %1521 = vmatprep.subr.mxu0 0.0
    %1522 = vmatpush1.msra.mxu0 0.0
    %1523 = vmatprep.subr.mxu0 0.0
    %1524 = vmatpush1.msra.mxu0 0.0
    %1525 = vmatprep.subr.mxu0 0.0
    %1526 = vmatpush1.msra.mxu0 0.0
    %1527 = vmatprep.subr.mxu0 0.0
    %1528 = vmatpush1.msra.mxu0 0.0
    %1529 = vmatprep.subr.mxu0 0.0
    %1530 = vmatpush1.msra.mxu0 0.0
    %1531 = vmatprep.subr.mxu0 0.0
    %1532 = vmatpush1.msra.mxu0 0.0
    %1533 = vmatprep.subr.mxu0 0.0
    %1534 = vmatpush1.msra.mxu0 0.0
    %1535 = vmatprep.subr.mxu0 0.0
    %1536 = vmatpush1.msra.mxu0 0.0
    %1537 = vmatprep.mubr.f32.mxu0 0.0
    %1538 = vmatmul.mubr.f32.gmra.mrb[0].mxu0 %v1398
    %v1539 = vpop.f32.mrb[0].mxu0
    %v1540 = vadd.f32 %v378, %v1539
    %v1541 = vpop.f32.mrb[0].mxu0
    %1542 = vdwg.mxu0
    %v1543 = vadd.f32 %v1401, %v1469
    %v1544 = vxor.u32 %v1543, 2147483648
    %v1545 = vmul.f32 %v1544, 1.442695
    %v1546 = vpow.pop %v1545
    %v1547 = vadd.f32 %v1546, 1.0
    %v1548 = vrcp.pop %v1547
    %v1549 = vmul.f32 1.0, %v1548
    %v1551 = vrot.slane %v1401, 1
    %v1553 = vadd.f32 %v1551, %v1471
    %v1554 = vxor.u32 %v1553, 2147483648
    %v1555 = vmul.f32 %v1554, 1.442695
    %v1556 = vpow.pop %v1555
    %v1557 = vadd.f32 %v1556, 1.0
    %v1558 = vrcp.pop %v1557
    %v1559 = vmul.f32 1.0, %v1558
    %v1560 = vmul.f32 %v1549, %v1540
    %v1561 = vrot.slane %v1401, 2
    %v1563 = vadd.f32 %v1561, %v1560
    %v1564 = vtanh.pop %v1563
    %v1565 = vsub.f32 1.0, %v1559
    %v1566 = vmul.f32 %v1565, %v1564
    %v1567 = vmul.f32 %v1559, %v1398
    %v1568 = vadd.f32 %v1566, %v1567
    %1569 = vst [vmem:[#allocation3 + $0x6] sm:$0x1] %v1568
    %s1570 = scalar_lea.vmem [#allocation2], 7
    %v1571 = vld [vmem:[%s1570] ss:$8 sm:$0x7]
    %1572 = vmatprep.subr.mxu0 %v316
    %1573 = vmatpush1.msra.mxu0 %v315
    %1574 = vmatprep.subr.mxu0 %v319
    %1575 = vmatpush1.msra.mxu0 %v318
    %1576 = vmatprep.subr.mxu0 %v322
    %1577 = vmatpush1.msra.mxu0 %v321
    %1578 = vmatprep.subr.mxu0 %v325
    %1579 = vmatpush1.msra.mxu0 %v324
    %1580 = vmatprep.subr.mxu0 %v328
    %1581 = vmatpush1.msra.mxu0 %v327
    %1582 = vmatprep.subr.mxu0 %v331
    %1583 = vmatpush1.msra.mxu0 %v330
    %1584 = vmatprep.subr.mxu0 %v334
    %1585 = vmatpush1.msra.mxu0 %v333
    %1586 = vmatprep.subr.mxu0 %v337
    %1587 = vmatpush1.msra.mxu0 %v336
    %1588 = vmatprep.subr.mxu0 %v340
    %1589 = vmatpush1.msra.mxu0 %v339
    %1590 = vmatprep.subr.mxu0 %v343
    %1591 = vmatpush1.msra.mxu0 %v342
    %1592 = vmatprep.subr.mxu0 %v346
    %1593 = vmatpush1.msra.mxu0 %v345
    %1594 = vmatprep.subr.mxu0 %v349
    %1595 = vmatpush1.msra.mxu0 %v348
    %1596 = vmatprep.subr.mxu0 %v352
    %1597 = vmatpush1.msra.mxu0 %v351
    %1598 = vmatprep.subr.mxu0 %v355
    %1599 = vmatpush1.msra.mxu0 %v354
    %1600 = vmatprep.subr.mxu0 %v358
    %1601 = vmatpush1.msra.mxu0 %v357
    %1602 = vmatprep.subr.mxu0 %v361
    %1603 = vmatpush1.msra.mxu0 %v360
    %1604 = vmatprep.subr.mxu0 0.0
    %1605 = vmatpush1.msra.mxu0 0.0
    %1606 = vmatprep.subr.mxu0 0.0
    %1607 = vmatpush1.msra.mxu0 0.0
    %1608 = vmatprep.subr.mxu0 0.0
    %1609 = vmatpush1.msra.mxu0 0.0
    %1610 = vmatprep.subr.mxu0 0.0
    %1611 = vmatpush1.msra.mxu0 0.0
    %1612 = vmatprep.subr.mxu0 0.0
    %1613 = vmatpush1.msra.mxu0 0.0
    %1614 = vmatprep.subr.mxu0 0.0
    %1615 = vmatpush1.msra.mxu0 0.0
    %1616 = vmatprep.subr.mxu0 0.0
    %1617 = vmatpush1.msra.mxu0 0.0
    %1618 = vmatprep.subr.mxu0 0.0
    %1619 = vmatpush1.msra.mxu0 0.0
    %1620 = vmatprep.subr.mxu0 0.0
    %1621 = vmatpush1.msra.mxu0 0.0
    %1622 = vmatprep.subr.mxu0 0.0
    %1623 = vmatpush1.msra.mxu0 0.0
    %1624 = vmatprep.subr.mxu0 0.0
    %1625 = vmatpush1.msra.mxu0 0.0
    %1626 = vmatprep.subr.mxu0 0.0
    %1627 = vmatpush1.msra.mxu0 0.0
    %1628 = vmatprep.subr.mxu0 0.0
    %1629 = vmatpush1.msra.mxu0 0.0
    %1630 = vmatprep.subr.mxu0 0.0
    %1631 = vmatpush1.msra.mxu0 0.0
    %1632 = vmatprep.subr.mxu0 0.0
    %1633 = vmatpush1.msra.mxu0 0.0
    %1634 = vmatprep.subr.mxu0 0.0
    %1635 = vmatpush1.msra.mxu0 0.0
    %1636 = vmatprep.mubr.f32.mxu0 0.0
    %1637 = vmatmul.mubr.f32.gmra.mrb[0].mxu0 %v1568
    %v1638 = vpop.f32.mrb[0].mxu0
    %v1639 = vadd.f32 %v370, %v1638
    %v1640 = vpop.f32.mrb[0].mxu0
    %v1641 = vadd.f32 %v374, %v1640
    %1642 = vdwg.mxu0
    %1643 = vmatprep.subr.mxu0 0.0
    %1644 = vmatpush1.msra.mxu0 %v317
    %1645 = vmatprep.subr.mxu0 0.0
    %1646 = vmatpush1.msra.mxu0 %v320
    %1647 = vmatprep.subr.mxu0 0.0
    %1648 = vmatpush1.msra.mxu0 %v323
    %1649 = vmatprep.subr.mxu0 0.0
    %1650 = vmatpush1.msra.mxu0 %v326
    %1651 = vmatprep.subr.mxu0 0.0
    %1652 = vmatpush1.msra.mxu0 %v329
    %1653 = vmatprep.subr.mxu0 0.0
    %1654 = vmatpush1.msra.mxu0 %v332
    %1655 = vmatprep.subr.mxu0 0.0
    %1656 = vmatpush1.msra.mxu0 %v335
    %1657 = vmatprep.subr.mxu0 0.0
    %1658 = vmatpush1.msra.mxu0 %v338
    %1659 = vmatprep.subr.mxu0 0.0
    %1660 = vmatpush1.msra.mxu0 %v341
    %1661 = vmatprep.subr.mxu0 0.0
    %1662 = vmatpush1.msra.mxu0 %v344
    %1663 = vmatprep.subr.mxu0 0.0
    %1664 = vmatpush1.msra.mxu0 %v347
    %1665 = vmatprep.subr.mxu0 0.0
    %1666 = vmatpush1.msra.mxu0 %v350
    %1667 = vmatprep.subr.mxu0 0.0
    %1668 = vmatpush1.msra.mxu0 %v353
    %1669 = vmatprep.subr.mxu0 0.0
    %1670 = vmatpush1.msra.mxu0 %v356
    %1671 = vmatprep.subr.mxu0 0.0
    %1672 = vmatpush1.msra.mxu0 %v359
    %1673 = vmatprep.subr.mxu0 0.0
    %1674 = vmatpush1.msra.mxu0 %v362
    %1675 = vmatprep.subr.mxu0 0.0
    %1676 = vmatpush1.msra.mxu0 0.0
    %1677 = vmatprep.subr.mxu0 0.0
    %1678 = vmatpush1.msra.mxu0 0.0
    %1679 = vmatprep.subr.mxu0 0.0
    %1680 = vmatpush1.msra.mxu0 0.0
    %1681 = vmatprep.subr.mxu0 0.0
    %1682 = vmatpush1.msra.mxu0 0.0
    %1683 = vmatprep.subr.mxu0 0.0
    %1684 = vmatpush1.msra.mxu0 0.0
    %1685 = vmatprep.subr.mxu0 0.0
    %1686 = vmatpush1.msra.mxu0 0.0
    %1687 = vmatprep.subr.mxu0 0.0
    %1688 = vmatpush1.msra.mxu0 0.0
    %1689 = vmatprep.subr.mxu0 0.0
    %1690 = vmatpush1.msra.mxu0 0.0
    %1691 = vmatprep.subr.mxu0 0.0
    %1692 = vmatpush1.msra.mxu0 0.0
    %1693 = vmatprep.subr.mxu0 0.0
    %1694 = vmatpush1.msra.mxu0 0.0
    %1695 = vmatprep.subr.mxu0 0.0
    %1696 = vmatpush1.msra.mxu0 0.0
    %1697 = vmatprep.subr.mxu0 0.0
    %1698 = vmatpush1.msra.mxu0 0.0
    %1699 = vmatprep.subr.mxu0 0.0
    %1700 = vmatpush1.msra.mxu0 0.0
    %1701 = vmatprep.subr.mxu0 0.0
    %1702 = vmatpush1.msra.mxu0 0.0
    %1703 = vmatprep.subr.mxu0 0.0
    %1704 = vmatpush1.msra.mxu0 0.0
    %1705 = vmatprep.subr.mxu0 0.0
    %1706 = vmatpush1.msra.mxu0 0.0
    %1707 = vmatprep.mubr.f32.mxu0 0.0
    %1708 = vmatmul.mubr.f32.gmra.mrb[0].mxu0 %v1568
    %v1709 = vpop.f32.mrb[0].mxu0
    %v1710 = vadd.f32 %v378, %v1709
    %v1711 = vpop.f32.mrb[0].mxu0
    %1712 = vdwg.mxu0
    %v1713 = vadd.f32 %v1571, %v1639
    %v1714 = vxor.u32 %v1713, 2147483648
    %v1715 = vmul.f32 %v1714, 1.442695
    %v1716 = vpow.pop %v1715
    %v1717 = vadd.f32 %v1716, 1.0
    %v1718 = vrcp.pop %v1717
    %v1719 = vmul.f32 1.0, %v1718
    %v1721 = vrot.slane %v1571, 1
    %v1723 = vadd.f32 %v1721, %v1641
    %v1724 = vxor.u32 %v1723, 2147483648
    %v1725 = vmul.f32 %v1724, 1.442695
    %v1726 = vpow.pop %v1725
    %v1727 = vadd.f32 %v1726, 1.0
    %v1728 = vrcp.pop %v1727
    %v1729 = vmul.f32 1.0, %v1728
    %v1730 = vmul.f32 %v1719, %v1710
    %v1731 = vrot.slane %v1571, 2
    %v1733 = vadd.f32 %v1731, %v1730
    %v1734 = vtanh.pop %v1733
    %v1735 = vsub.f32 1.0, %v1729
    %v1736 = vmul.f32 %v1735, %v1734
    %v1737 = vmul.f32 %v1729, %v1568
    %v1738 = vadd.f32 %v1736, %v1737
    %1739 = vst [vmem:[#allocation3 + $0x7] sm:$0x1] %v1738
    %s1740 = scalar_lea.vmem [#allocation2], 24
    %v1741 = vld [vmem:[%s1740] ss:$8 sm:$0x7]
    %1742 = vmatprep.subr.mxu0 %v316
    %1743 = vmatpush1.msra.mxu0 %v315
    %1744 = vmatprep.subr.mxu0 %v319
    %1745 = vmatpush1.msra.mxu0 %v318
    %1746 = vmatprep.subr.mxu0 %v322
    %1747 = vmatpush1.msra.mxu0 %v321
    %1748 = vmatprep.subr.mxu0 %v325
    %1749 = vmatpush1.msra.mxu0 %v324
    %1750 = vmatprep.subr.mxu0 %v328
    %1751 = vmatpush1.msra.mxu0 %v327
    %1752 = vmatprep.subr.mxu0 %v331
    %1753 = vmatpush1.msra.mxu0 %v330
    %1754 = vmatprep.subr.mxu0 %v334
    %1755 = vmatpush1.msra.mxu0 %v333
    %1756 = vmatprep.subr.mxu0 %v337
    %1757 = vmatpush1.msra.mxu0 %v336
    %1758 = vmatprep.subr.mxu0 %v340
    %1759 = vmatpush1.msra.mxu0 %v339
    %1760 = vmatprep.subr.mxu0 %v343
    %1761 = vmatpush1.msra.mxu0 %v342
    %1762 = vmatprep.subr.mxu0 %v346
    %1763 = vmatpush1.msra.mxu0 %v345
    %1764 = vmatprep.subr.mxu0 %v349
    %1765 = vmatpush1.msra.mxu0 %v348
    %1766 = vmatprep.subr.mxu0 %v352
    %1767 = vmatpush1.msra.mxu0 %v351
    %1768 = vmatprep.subr.mxu0 %v355
    %1769 = vmatpush1.msra.mxu0 %v354
    %1770 = vmatprep.subr.mxu0 %v358
    %1771 = vmatpush1.msra.mxu0 %v357
    %1772 = vmatprep.subr.mxu0 %v361
    %1773 = vmatpush1.msra.mxu0 %v360
    %1774 = vmatprep.subr.mxu0 0.0
    %1775 = vmatpush1.msra.mxu0 0.0
    %1776 = vmatprep.subr.mxu0 0.0
    %1777 = vmatpush1.msra.mxu0 0.0
    %1778 = vmatprep.subr.mxu0 0.0
    %1779 = vmatpush1.msra.mxu0 0.0
    %1780 = vmatprep.subr.mxu0 0.0
    %1781 = vmatpush1.msra.mxu0 0.0
    %1782 = vmatprep.subr.mxu0 0.0
    %1783 = vmatpush1.msra.mxu0 0.0
    %1784 = vmatprep.subr.mxu0 0.0
    %1785 = vmatpush1.msra.mxu0 0.0
    %1786 = vmatprep.subr.mxu0 0.0
    %1787 = vmatpush1.msra.mxu0 0.0
    %1788 = vmatprep.subr.mxu0 0.0
    %1789 = vmatpush1.msra.mxu0 0.0
    %1790 = vmatprep.subr.mxu0 0.0
    %1791 = vmatpush1.msra.mxu0 0.0
    %1792 = vmatprep.subr.mxu0 0.0
    %1793 = vmatpush1.msra.mxu0 0.0
    %1794 = vmatprep.subr.mxu0 0.0
    %1795 = vmatpush1.msra.mxu0 0.0
    %1796 = vmatprep.subr.mxu0 0.0
    %1797 = vmatpush1.msra.mxu0 0.0
    %1798 = vmatprep.subr.mxu0 0.0
    %1799 = vmatpush1.msra.mxu0 0.0
    %1800 = vmatprep.subr.mxu0 0.0
    %1801 = vmatpush1.msra.mxu0 0.0
    %1802 = vmatprep.subr.mxu0 0.0
    %1803 = vmatpush1.msra.mxu0 0.0
    %1804 = vmatprep.subr.mxu0 0.0
    %1805 = vmatpush1.msra.mxu0 0.0
    %1806 = vmatprep.mubr.f32.mxu0 0.0
    %1807 = vmatmul.mubr.f32.gmra.mrb[0].mxu0 %v1738
    %v1808 = vpop.f32.mrb[0].mxu0
    %v1809 = vadd.f32 %v370, %v1808
    %v1810 = vpop.f32.mrb[0].mxu0
    %v1811 = vadd.f32 %v374, %v1810
    %1812 = vdwg.mxu0
    %1813 = vmatprep.subr.mxu0 0.0
    %1814 = vmatpush1.msra.mxu0 %v317
    %1815 = vmatprep.subr.mxu0 0.0
    %1816 = vmatpush1.msra.mxu0 %v320
    %1817 = vmatprep.subr.mxu0 0.0
    %1818 = vmatpush1.msra.mxu0 %v323
    %1819 = vmatprep.subr.mxu0 0.0
    %1820 = vmatpush1.msra.mxu0 %v326
    %1821 = vmatprep.subr.mxu0 0.0
    %1822 = vmatpush1.msra.mxu0 %v329
    %1823 = vmatprep.subr.mxu0 0.0
    %1824 = vmatpush1.msra.mxu0 %v332
    %1825 = vmatprep.subr.mxu0 0.0
    %1826 = vmatpush1.msra.mxu0 %v335
    %1827 = vmatprep.subr.mxu0 0.0
    %1828 = vmatpush1.msra.mxu0 %v338
    %1829 = vmatprep.subr.mxu0 0.0
    %1830 = vmatpush1.msra.mxu0 %v341
    %1831 = vmatprep.subr.mxu0 0.0
    %1832 = vmatpush1.msra.mxu0 %v344
    %1833 = vmatprep.subr.mxu0 0.0
    %1834 = vmatpush1.msra.mxu0 %v347
    %1835 = vmatprep.subr.mxu0 0.0
    %1836 = vmatpush1.msra.mxu0 %v350
    %1837 = vmatprep.subr.mxu0 0.0
    %1838 = vmatpush1.msra.mxu0 %v353
    %1839 = vmatprep.subr.mxu0 0.0
    %1840 = vmatpush1.msra.mxu0 %v356
    %1841 = vmatprep.subr.mxu0 0.0
    %1842 = vmatpush1.msra.mxu0 %v359
    %1843 = vmatprep.subr.mxu0 0.0
    %1844 = vmatpush1.msra.mxu0 %v362
    %1845 = vmatprep.subr.mxu0 0.0
    %1846 = vmatpush1.msra.mxu0 0.0
    %1847 = vmatprep.subr.mxu0 0.0
    %1848 = vmatpush1.msra.mxu0 0.0
    %1849 = vmatprep.subr.mxu0 0.0
    %1850 = vmatpush1.msra.mxu0 0.0
    %1851 = vmatprep.subr.mxu0 0.0
    %1852 = vmatpush1.msra.mxu0 0.0
    %1853 = vmatprep.subr.mxu0 0.0
    %1854 = vmatpush1.msra.mxu0 0.0
    %1855 = vmatprep.subr.mxu0 0.0
    %1856 = vmatpush1.msra.mxu0 0.0
    %1857 = vmatprep.subr.mxu0 0.0
    %1858 = vmatpush1.msra.mxu0 0.0
    %1859 = vmatprep.subr.mxu0 0.0
    %1860 = vmatpush1.msra.mxu0 0.0
    %1861 = vmatprep.subr.mxu0 0.0
    %1862 = vmatpush1.msra.mxu0 0.0
    %1863 = vmatprep.subr.mxu0 0.0
    %1864 = vmatpush1.msra.mxu0 0.0
    %1865 = vmatprep.subr.mxu0 0.0
    %1866 = vmatpush1.msra.mxu0 0.0
    %1867 = vmatprep.subr.mxu0 0.0
    %1868 = vmatpush1.msra.mxu0 0.0
    %1869 = vmatprep.subr.mxu0 0.0
    %1870 = vmatpush1.msra.mxu0 0.0
    %1871 = vmatprep.subr.mxu0 0.0
    %1872 = vmatpush1.msra.mxu0 0.0
    %1873 = vmatprep.subr.mxu0 0.0
    %1874 = vmatpush1.msra.mxu0 0.0
    %1875 = vmatprep.subr.mxu0 0.0
    %1876 = vmatpush1.msra.mxu0 0.0
    %1877 = vmatprep.mubr.f32.mxu0 0.0
    %1878 = vmatmul.mubr.f32.gmra.mrb[0].mxu0 %v1738
    %v1879 = vpop.f32.mrb[0].mxu0
    %v1880 = vadd.f32 %v378, %v1879
    %v1881 = vpop.f32.mrb[0].mxu0
    %1882 = vdwg.mxu0
    %v1883 = vadd.f32 %v1741, %v1809
    %v1884 = vxor.u32 %v1883, 2147483648
    %v1885 = vmul.f32 %v1884, 1.442695
    %v1886 = vpow.pop %v1885
    %v1887 = vadd.f32 %v1886, 1.0
    %v1888 = vrcp.pop %v1887
    %v1889 = vmul.f32 1.0, %v1888
    %v1891 = vrot.slane %v1741, 1
    %v1893 = vadd.f32 %v1891, %v1811
    %v1894 = vxor.u32 %v1893, 2147483648
    %v1895 = vmul.f32 %v1894, 1.442695
    %v1896 = vpow.pop %v1895
    %v1897 = vadd.f32 %v1896, 1.0
    %v1898 = vrcp.pop %v1897
    %v1899 = vmul.f32 1.0, %v1898
    %v1900 = vmul.f32 %v1889, %v1880
    %v1901 = vrot.slane %v1741, 2
    %v1903 = vadd.f32 %v1901, %v1900
    %v1904 = vtanh.pop %v1903
    %v1905 = vsub.f32 1.0, %v1899
    %v1906 = vmul.f32 %v1905, %v1904
    %v1907 = vmul.f32 %v1899, %v1738
    %v1908 = vadd.f32 %v1906, %v1907
    %1909 = vst [vmem:[#allocation3 + $0x8] sm:$0x1] %v1908
    %s1910 = scalar_lea.vmem [#allocation2], 25
    %v1911 = vld [vmem:[%s1910] ss:$8 sm:$0x7]
    %1912 = vmatprep.subr.mxu0 %v316
    %1913 = vmatpush1.msra.mxu0 %v315
    %1914 = vmatprep.subr.mxu0 %v319
    %1915 = vmatpush1.msra.mxu0 %v318
    %1916 = vmatprep.subr.mxu0 %v322
    %1917 = vmatpush1.msra.mxu0 %v321
    %1918 = vmatprep.subr.mxu0 %v325
    %1919 = vmatpush1.msra.mxu0 %v324
    %1920 = vmatprep.subr.mxu0 %v328
    %1921 = vmatpush1.msra.mxu0 %v327
    %1922 = vmatprep.subr.mxu0 %v331
    %1923 = vmatpush1.msra.mxu0 %v330
    %1924 = vmatprep.subr.mxu0 %v334
    %1925 = vmatpush1.msra.mxu0 %v333
    %1926 = vmatprep.subr.mxu0 %v337
    %1927 = vmatpush1.msra.mxu0 %v336
    %1928 = vmatprep.subr.mxu0 %v340
    %1929 = vmatpush1.msra.mxu0 %v339
    %1930 = vmatprep.subr.mxu0 %v343
    %1931 = vmatpush1.msra.mxu0 %v342
    %1932 = vmatprep.subr.mxu0 %v346
    %1933 = vmatpush1.msra.mxu0 %v345
    %1934 = vmatprep.subr.mxu0 %v349
    %1935 = vmatpush1.msra.mxu0 %v348
    %1936 = vmatprep.subr.mxu0 %v352
    %1937 = vmatpush1.msra.mxu0 %v351
    %1938 = vmatprep.subr.mxu0 %v355
    %1939 = vmatpush1.msra.mxu0 %v354
    %1940 = vmatprep.subr.mxu0 %v358
    %1941 = vmatpush1.msra.mxu0 %v357
    %1942 = vmatprep.subr.mxu0 %v361
    %1943 = vmatpush1.msra.mxu0 %v360
    %1944 = vmatprep.subr.mxu0 0.0
    %1945 = vmatpush1.msra.mxu0 0.0
    %1946 = vmatprep.subr.mxu0 0.0
    %1947 = vmatpush1.msra.mxu0 0.0
    %1948 = vmatprep.subr.mxu0 0.0
    %1949 = vmatpush1.msra.mxu0 0.0
    %1950 = vmatprep.subr.mxu0 0.0
    %1951 = vmatpush1.msra.mxu0 0.0
    %1952 = vmatprep.subr.mxu0 0.0
    %1953 = vmatpush1.msra.mxu0 0.0
    %1954 = vmatprep.subr.mxu0 0.0
    %1955 = vmatpush1.msra.mxu0 0.0
    %1956 = vmatprep.subr.mxu0 0.0
    %1957 = vmatpush1.msra.mxu0 0.0
    %1958 = vmatprep.subr.mxu0 0.0
    %1959 = vmatpush1.msra.mxu0 0.0
    %1960 = vmatprep.subr.mxu0 0.0
    %1961 = vmatpush1.msra.mxu0 0.0
    %1962 = vmatprep.subr.mxu0 0.0
    %1963 = vmatpush1.msra.mxu0 0.0
    %1964 = vmatprep.subr.mxu0 0.0
    %1965 = vmatpush1.msra.mxu0 0.0
    %1966 = vmatprep.subr.mxu0 0.0
    %1967 = vmatpush1.msra.mxu0 0.0
    %1968 = vmatprep.subr.mxu0 0.0
    %1969 = vmatpush1.msra.mxu0 0.0
    %1970 = vmatprep.subr.mxu0 0.0
    %1971 = vmatpush1.msra.mxu0 0.0
    %1972 = vmatprep.subr.mxu0 0.0
    %1973 = vmatpush1.msra.mxu0 0.0
    %1974 = vmatprep.subr.mxu0 0.0
    %1975 = vmatpush1.msra.mxu0 0.0
    %1976 = vmatprep.mubr.f32.mxu0 0.0
    %1977 = vmatmul.mubr.f32.gmra.mrb[0].mxu0 %v1908
    %v1978 = vpop.f32.mrb[0].mxu0
    %v1979 = vadd.f32 %v370, %v1978
    %v1980 = vpop.f32.mrb[0].mxu0
    %v1981 = vadd.f32 %v374, %v1980
    %1982 = vdwg.mxu0
    %1983 = vmatprep.subr.mxu0 0.0
    %1984 = vmatpush1.msra.mxu0 %v317
    %1985 = vmatprep.subr.mxu0 0.0
    %1986 = vmatpush1.msra.mxu0 %v320
    %1987 = vmatprep.subr.mxu0 0.0
    %1988 = vmatpush1.msra.mxu0 %v323
    %1989 = vmatprep.subr.mxu0 0.0
    %1990 = vmatpush1.msra.mxu0 %v326
    %1991 = vmatprep.subr.mxu0 0.0
    %1992 = vmatpush1.msra.mxu0 %v329
    %1993 = vmatprep.subr.mxu0 0.0
    %1994 = vmatpush1.msra.mxu0 %v332
    %1995 = vmatprep.subr.mxu0 0.0
    %1996 = vmatpush1.msra.mxu0 %v335
    %1997 = vmatprep.subr.mxu0 0.0
    %1998 = vmatpush1.msra.mxu0 %v338
    %1999 = vmatprep.subr.mxu0 0.0
    %2000 = vmatpush1.msra.mxu0 %v341
    %2001 = vmatprep.subr.mxu0 0.0
    %2002 = vmatpush1.msra.mxu0 %v344
    %2003 = vmatprep.subr.mxu0 0.0
    %2004 = vmatpush1.msra.mxu0 %v347
    %2005 = vmatprep.subr.mxu0 0.0
    %2006 = vmatpush1.msra.mxu0 %v350
    %2007 = vmatprep.subr.mxu0 0.0
    %2008 = vmatpush1.msra.mxu0 %v353
    %2009 = vmatprep.subr.mxu0 0.0
    %2010 = vmatpush1.msra.mxu0 %v356
    %2011 = vmatprep.subr.mxu0 0.0
    %2012 = vmatpush1.msra.mxu0 %v359
    %2013 = vmatprep.subr.mxu0 0.0
    %2014 = vmatpush1.msra.mxu0 %v362
    %2015 = vmatprep.subr.mxu0 0.0
    %2016 = vmatpush1.msra.mxu0 0.0
    %2017 = vmatprep.subr.mxu0 0.0
    %2018 = vmatpush1.msra.mxu0 0.0
    %2019 = vmatprep.subr.mxu0 0.0
    %2020 = vmatpush1.msra.mxu0 0.0
    %2021 = vmatprep.subr.mxu0 0.0
    %2022 = vmatpush1.msra.mxu0 0.0
    %2023 = vmatprep.subr.mxu0 0.0
    %2024 = vmatpush1.msra.mxu0 0.0
    %2025 = vmatprep.subr.mxu0 0.0
    %2026 = vmatpush1.msra.mxu0 0.0
    %2027 = vmatprep.subr.mxu0 0.0
    %2028 = vmatpush1.msra.mxu0 0.0
    %2029 = vmatprep.subr.mxu0 0.0
    %2030 = vmatpush1.msra.mxu0 0.0
    %2031 = vmatprep.subr.mxu0 0.0
    %2032 = vmatpush1.msra.mxu0 0.0
    %2033 = vmatprep.subr.mxu0 0.0
    %2034 = vmatpush1.msra.mxu0 0.0
    %2035 = vmatprep.subr.mxu0 0.0
    %2036 = vmatpush1.msra.mxu0 0.0
    %2037 = vmatprep.subr.mxu0 0.0
    %2038 = vmatpush1.msra.mxu0 0.0
    %2039 = vmatprep.subr.mxu0 0.0
    %2040 = vmatpush1.msra.mxu0 0.0
    %2041 = vmatprep.subr.mxu0 0.0
    %2042 = vmatpush1.msra.mxu0 0.0
    %2043 = vmatprep.subr.mxu0 0.0
    %2044 = vmatpush1.msra.mxu0 0.0
    %2045 = vmatprep.subr.mxu0 0.0
    %2046 = vmatpush1.msra.mxu0 0.0
    %2047 = vmatprep.mubr.f32.mxu0 0.0
    %2048 = vmatmul.mubr.f32.gmra.mrb[0].mxu0 %v1908
    %v2049 = vpop.f32.mrb[0].mxu0
    %v2050 = vadd.f32 %v378, %v2049
    %v2051 = vpop.f32.mrb[0].mxu0
    %2052 = vdwg.mxu0
    %v2053 = vadd.f32 %v1911, %v1979
    %v2054 = vxor.u32 %v2053, 2147483648
    %v2055 = vmul.f32 %v2054, 1.442695
    %v2056 = vpow.pop %v2055
    %v2057 = vadd.f32 %v2056, 1.0
    %v2058 = vrcp.pop %v2057
    %v2059 = vmul.f32 1.0, %v2058
    %v2061 = vrot.slane %v1911, 1
    %v2063 = vadd.f32 %v2061, %v1981
    %v2064 = vxor.u32 %v2063, 2147483648
    %v2065 = vmul.f32 %v2064, 1.442695
    %v2066 = vpow.pop %v2065
    %v2067 = vadd.f32 %v2066, 1.0
    %v2068 = vrcp.pop %v2067
    %v2069 = vmul.f32 1.0, %v2068
    %v2070 = vmul.f32 %v2059, %v2050
    %v2071 = vrot.slane %v1911, 2
    %v2073 = vadd.f32 %v2071, %v2070
    %v2074 = vtanh.pop %v2073
    %v2075 = vsub.f32 1.0, %v2069
    %v2076 = vmul.f32 %v2075, %v2074
    %v2077 = vmul.f32 %v2069, %v1908
    %v2078 = vadd.f32 %v2076, %v2077
    %2079 = vst [vmem:[#allocation3 + $0x9] sm:$0x1] %v2078
    %s2080 = scalar_lea.vmem [#allocation2], 26
    %v2081 = vld [vmem:[%s2080] ss:$8 sm:$0x7]
    %2082 = vmatprep.subr.mxu0 %v316
    %2083 = vmatpush1.msra.mxu0 %v315
    %2084 = vmatprep.subr.mxu0 %v319
    %2085 = vmatpush1.msra.mxu0 %v318
    %2086 = vmatprep.subr.mxu0 %v322
    %2087 = vmatpush1.msra.mxu0 %v321
    %2088 = vmatprep.subr.mxu0 %v325
    %2089 = vmatpush1.msra.mxu0 %v324
    %2090 = vmatprep.subr.mxu0 %v328
    %2091 = vmatpush1.msra.mxu0 %v327
    %2092 = vmatprep.subr.mxu0 %v331
    %2093 = vmatpush1.msra.mxu0 %v330
    %2094 = vmatprep.subr.mxu0 %v334
    %2095 = vmatpush1.msra.mxu0 %v333
    %2096 = vmatprep.subr.mxu0 %v337
    %2097 = vmatpush1.msra.mxu0 %v336
    %2098 = vmatprep.subr.mxu0 %v340
    %2099 = vmatpush1.msra.mxu0 %v339
    %2100 = vmatprep.subr.mxu0 %v343
    %2101 = vmatpush1.msra.mxu0 %v342
    %2102 = vmatprep.subr.mxu0 %v346
    %2103 = vmatpush1.msra.mxu0 %v345
    %2104 = vmatprep.subr.mxu0 %v349
    %2105 = vmatpush1.msra.mxu0 %v348
    %2106 = vmatprep.subr.mxu0 %v352
    %2107 = vmatpush1.msra.mxu0 %v351
    %2108 = vmatprep.subr.mxu0 %v355
    %2109 = vmatpush1.msra.mxu0 %v354
    %2110 = vmatprep.subr.mxu0 %v358
    %2111 = vmatpush1.msra.mxu0 %v357
    %2112 = vmatprep.subr.mxu0 %v361
    %2113 = vmatpush1.msra.mxu0 %v360
    %2114 = vmatprep.subr.mxu0 0.0
    %2115 = vmatpush1.msra.mxu0 0.0
    %2116 = vmatprep.subr.mxu0 0.0
    %2117 = vmatpush1.msra.mxu0 0.0
    %2118 = vmatprep.subr.mxu0 0.0
    %2119 = vmatpush1.msra.mxu0 0.0
    %2120 = vmatprep.subr.mxu0 0.0
    %2121 = vmatpush1.msra.mxu0 0.0
    %2122 = vmatprep.subr.mxu0 0.0
    %2123 = vmatpush1.msra.mxu0 0.0
    %2124 = vmatprep.subr.mxu0 0.0
    %2125 = vmatpush1.msra.mxu0 0.0
    %2126 = vmatprep.subr.mxu0 0.0
    %2127 = vmatpush1.msra.mxu0 0.0
    %2128 = vmatprep.subr.mxu0 0.0
    %2129 = vmatpush1.msra.mxu0 0.0
    %2130 = vmatprep.subr.mxu0 0.0
    %2131 = vmatpush1.msra.mxu0 0.0
    %2132 = vmatprep.subr.mxu0 0.0
    %2133 = vmatpush1.msra.mxu0 0.0
    %2134 = vmatprep.subr.mxu0 0.0
    %2135 = vmatpush1.msra.mxu0 0.0
    %2136 = vmatprep.subr.mxu0 0.0
    %2137 = vmatpush1.msra.mxu0 0.0
    %2138 = vmatprep.subr.mxu0 0.0
    %2139 = vmatpush1.msra.mxu0 0.0
    %2140 = vmatprep.subr.mxu0 0.0
    %2141 = vmatpush1.msra.mxu0 0.0
    %2142 = vmatprep.subr.mxu0 0.0
    %2143 = vmatpush1.msra.mxu0 0.0
    %2144 = vmatprep.subr.mxu0 0.0
    %2145 = vmatpush1.msra.mxu0 0.0
    %2146 = vmatprep.mubr.f32.mxu0 0.0
    %2147 = vmatmul.mubr.f32.gmra.mrb[0].mxu0 %v2078
    %v2148 = vpop.f32.mrb[0].mxu0
    %v2149 = vadd.f32 %v370, %v2148
    %v2150 = vpop.f32.mrb[0].mxu0
    %v2151 = vadd.f32 %v374, %v2150
    %2152 = vdwg.mxu0
    %2153 = vmatprep.subr.mxu0 0.0
    %2154 = vmatpush1.msra.mxu0 %v317
    %2155 = vmatprep.subr.mxu0 0.0
    %2156 = vmatpush1.msra.mxu0 %v320
    %2157 = vmatprep.subr.mxu0 0.0
    %2158 = vmatpush1.msra.mxu0 %v323
    %2159 = vmatprep.subr.mxu0 0.0
    %2160 = vmatpush1.msra.mxu0 %v326
    %2161 = vmatprep.subr.mxu0 0.0
    %2162 = vmatpush1.msra.mxu0 %v329
    %2163 = vmatprep.subr.mxu0 0.0
    %2164 = vmatpush1.msra.mxu0 %v332
    %2165 = vmatprep.subr.mxu0 0.0
    %2166 = vmatpush1.msra.mxu0 %v335
    %2167 = vmatprep.subr.mxu0 0.0
    %2168 = vmatpush1.msra.mxu0 %v338
    %2169 = vmatprep.subr.mxu0 0.0
    %2170 = vmatpush1.msra.mxu0 %v341
    %2171 = vmatprep.subr.mxu0 0.0
    %2172 = vmatpush1.msra.mxu0 %v344
    %2173 = vmatprep.subr.mxu0 0.0
    %2174 = vmatpush1.msra.mxu0 %v347
    %2175 = vmatprep.subr.mxu0 0.0
    %2176 = vmatpush1.msra.mxu0 %v350
    %2177 = vmatprep.subr.mxu0 0.0
    %2178 = vmatpush1.msra.mxu0 %v353
    %2179 = vmatprep.subr.mxu0 0.0
    %2180 = vmatpush1.msra.mxu0 %v356
    %2181 = vmatprep.subr.mxu0 0.0
    %2182 = vmatpush1.msra.mxu0 %v359
    %2183 = vmatprep.subr.mxu0 0.0
    %2184 = vmatpush1.msra.mxu0 %v362
    %2185 = vmatprep.subr.mxu0 0.0
    %2186 = vmatpush1.msra.mxu0 0.0
    %2187 = vmatprep.subr.mxu0 0.0
    %2188 = vmatpush1.msra.mxu0 0.0
    %2189 = vmatprep.subr.mxu0 0.0
    %2190 = vmatpush1.msra.mxu0 0.0
    %2191 = vmatprep.subr.mxu0 0.0
    %2192 = vmatpush1.msra.mxu0 0.0
    %2193 = vmatprep.subr.mxu0 0.0
    %2194 = vmatpush1.msra.mxu0 0.0
    %2195 = vmatprep.subr.mxu0 0.0
    %2196 = vmatpush1.msra.mxu0 0.0
    %2197 = vmatprep.subr.mxu0 0.0
    %2198 = vmatpush1.msra.mxu0 0.0
    %2199 = vmatprep.subr.mxu0 0.0
    %2200 = vmatpush1.msra.mxu0 0.0
    %2201 = vmatprep.subr.mxu0 0.0
    %2202 = vmatpush1.msra.mxu0 0.0
    %2203 = vmatprep.subr.mxu0 0.0
    %2204 = vmatpush1.msra.mxu0 0.0
    %2205 = vmatprep.subr.mxu0 0.0
    %2206 = vmatpush1.msra.mxu0 0.0
    %2207 = vmatprep.subr.mxu0 0.0
    %2208 = vmatpush1.msra.mxu0 0.0
    %2209 = vmatprep.subr.mxu0 0.0
    %2210 = vmatpush1.msra.mxu0 0.0
    %2211 = vmatprep.subr.mxu0 0.0
    %2212 = vmatpush1.msra.mxu0 0.0
    %2213 = vmatprep.subr.mxu0 0.0
    %2214 = vmatpush1.msra.mxu0 0.0
    %2215 = vmatprep.subr.mxu0 0.0
    %2216 = vmatpush1.msra.mxu0 0.0
    %2217 = vmatprep.mubr.f32.mxu0 0.0
    %2218 = vmatmul.mubr.f32.gmra.mrb[0].mxu0 %v2078
    %v2219 = vpop.f32.mrb[0].mxu0
    %v2220 = vadd.f32 %v378, %v2219
    %v2221 = vpop.f32.mrb[0].mxu0
    %2222 = vdwg.mxu0
    %v2223 = vadd.f32 %v2081, %v2149
    %v2224 = vxor.u32 %v2223, 2147483648
    %v2225 = vmul.f32 %v2224, 1.442695
    %v2226 = vpow.pop %v2225
    %v2227 = vadd.f32 %v2226, 1.0
    %v2228 = vrcp.pop %v2227
    %v2229 = vmul.f32 1.0, %v2228
    %v2231 = vrot.slane %v2081, 1
    %v2233 = vadd.f32 %v2231, %v2151
    %v2234 = vxor.u32 %v2233, 2147483648
    %v2235 = vmul.f32 %v2234, 1.442695
    %v2236 = vpow.pop %v2235
    %v2237 = vadd.f32 %v2236, 1.0
    %v2238 = vrcp.pop %v2237
    %v2239 = vmul.f32 1.0, %v2238
    %v2240 = vmul.f32 %v2229, %v2220
    %v2241 = vrot.slane %v2081, 2
    %v2243 = vadd.f32 %v2241, %v2240
    %v2244 = vtanh.pop %v2243
    %v2245 = vsub.f32 1.0, %v2239
    %v2246 = vmul.f32 %v2245, %v2244
    %v2247 = vmul.f32 %v2239, %v2078
    %v2248 = vadd.f32 %v2246, %v2247
    %2249 = vst [vmem:[#allocation3 + $0xa] sm:$0x1] %v2248
    %s2250 = scalar_lea.vmem [#allocation2], 27
    %v2251 = vld [vmem:[%s2250] ss:$8 sm:$0x7]
    %2252 = vmatprep.subr.mxu0 %v316
    %2253 = vmatpush1.msra.mxu0 %v315
    %2254 = vmatprep.subr.mxu0 %v319
    %2255 = vmatpush1.msra.mxu0 %v318
    %2256 = vmatprep.subr.mxu0 %v322
    %2257 = vmatpush1.msra.mxu0 %v321
    %2258 = vmatprep.subr.mxu0 %v325
    %2259 = vmatpush1.msra.mxu0 %v324
    %2260 = vmatprep.subr.mxu0 %v328
    %2261 = vmatpush1.msra.mxu0 %v327
    %2262 = vmatprep.subr.mxu0 %v331
    %2263 = vmatpush1.msra.mxu0 %v330
    %2264 = vmatprep.subr.mxu0 %v334
    %2265 = vmatpush1.msra.mxu0 %v333
    %2266 = vmatprep.subr.mxu0 %v337
    %2267 = vmatpush1.msra.mxu0 %v336
    %2268 = vmatprep.subr.mxu0 %v340
    %2269 = vmatpush1.msra.mxu0 %v339
    %2270 = vmatprep.subr.mxu0 %v343
    %2271 = vmatpush1.msra.mxu0 %v342
    %2272 = vmatprep.subr.mxu0 %v346
    %2273 = vmatpush1.msra.mxu0 %v345
    %2274 = vmatprep.subr.mxu0 %v349
    %2275 = vmatpush1.msra.mxu0 %v348
    %2276 = vmatprep.subr.mxu0 %v352
    %2277 = vmatpush1.msra.mxu0 %v351
    %2278 = vmatprep.subr.mxu0 %v355
    %2279 = vmatpush1.msra.mxu0 %v354
    %2280 = vmatprep.subr.mxu0 %v358
    %2281 = vmatpush1.msra.mxu0 %v357
    %2282 = vmatprep.subr.mxu0 %v361
    %2283 = vmatpush1.msra.mxu0 %v360
    %2284 = vmatprep.subr.mxu0 0.0
    %2285 = vmatpush1.msra.mxu0 0.0
    %2286 = vmatprep.subr.mxu0 0.0
    %2287 = vmatpush1.msra.mxu0 0.0
    %2288 = vmatprep.subr.mxu0 0.0
    %2289 = vmatpush1.msra.mxu0 0.0
    %2290 = vmatprep.subr.mxu0 0.0
    %2291 = vmatpush1.msra.mxu0 0.0
    %2292 = vmatprep.subr.mxu0 0.0
    %2293 = vmatpush1.msra.mxu0 0.0
    %2294 = vmatprep.subr.mxu0 0.0
    %2295 = vmatpush1.msra.mxu0 0.0
    %2296 = vmatprep.subr.mxu0 0.0
    %2297 = vmatpush1.msra.mxu0 0.0
    %2298 = vmatprep.subr.mxu0 0.0
    %2299 = vmatpush1.msra.mxu0 0.0
    %2300 = vmatprep.subr.mxu0 0.0
    %2301 = vmatpush1.msra.mxu0 0.0
    %2302 = vmatprep.subr.mxu0 0.0
    %2303 = vmatpush1.msra.mxu0 0.0
    %2304 = vmatprep.subr.mxu0 0.0
    %2305 = vmatpush1.msra.mxu0 0.0
    %2306 = vmatprep.subr.mxu0 0.0
    %2307 = vmatpush1.msra.mxu0 0.0
    %2308 = vmatprep.subr.mxu0 0.0
    %2309 = vmatpush1.msra.mxu0 0.0
    %2310 = vmatprep.subr.mxu0 0.0
    %2311 = vmatpush1.msra.mxu0 0.0
    %2312 = vmatprep.subr.mxu0 0.0
    %2313 = vmatpush1.msra.mxu0 0.0
    %2314 = vmatprep.subr.mxu0 0.0
    %2315 = vmatpush1.msra.mxu0 0.0
    %2316 = vmatprep.mubr.f32.mxu0 0.0
    %2317 = vmatmul.mubr.f32.gmra.mrb[0].mxu0 %v2248
    %v2318 = vpop.f32.mrb[0].mxu0
    %v2319 = vadd.f32 %v370, %v2318
    %v2320 = vpop.f32.mrb[0].mxu0
    %v2321 = vadd.f32 %v374, %v2320
    %2322 = vdwg.mxu0
    %2323 = vmatprep.subr.mxu0 0.0
    %2324 = vmatpush1.msra.mxu0 %v317
    %2325 = vmatprep.subr.mxu0 0.0
    %2326 = vmatpush1.msra.mxu0 %v320
    %2327 = vmatprep.subr.mxu0 0.0
    %2328 = vmatpush1.msra.mxu0 %v323
    %2329 = vmatprep.subr.mxu0 0.0
    %2330 = vmatpush1.msra.mxu0 %v326
    %2331 = vmatprep.subr.mxu0 0.0
    %2332 = vmatpush1.msra.mxu0 %v329
    %2333 = vmatprep.subr.mxu0 0.0
    %2334 = vmatpush1.msra.mxu0 %v332
    %2335 = vmatprep.subr.mxu0 0.0
    %2336 = vmatpush1.msra.mxu0 %v335
    %2337 = vmatprep.subr.mxu0 0.0
    %2338 = vmatpush1.msra.mxu0 %v338
    %2339 = vmatprep.subr.mxu0 0.0
    %2340 = vmatpush1.msra.mxu0 %v341
    %2341 = vmatprep.subr.mxu0 0.0
    %2342 = vmatpush1.msra.mxu0 %v344
    %2343 = vmatprep.subr.mxu0 0.0
    %2344 = vmatpush1.msra.mxu0 %v347
    %2345 = vmatprep.subr.mxu0 0.0
    %2346 = vmatpush1.msra.mxu0 %v350
    %2347 = vmatprep.subr.mxu0 0.0
    %2348 = vmatpush1.msra.mxu0 %v353
    %2349 = vmatprep.subr.mxu0 0.0
    %2350 = vmatpush1.msra.mxu0 %v356
    %2351 = vmatprep.subr.mxu0 0.0
    %2352 = vmatpush1.msra.mxu0 %v359
    %2353 = vmatprep.subr.mxu0 0.0
    %2354 = vmatpush1.msra.mxu0 %v362
    %2355 = vmatprep.subr.mxu0 0.0
    %2356 = vmatpush1.msra.mxu0 0.0
    %2357 = vmatprep.subr.mxu0 0.0
    %2358 = vmatpush1.msra.mxu0 0.0
    %2359 = vmatprep.subr.mxu0 0.0
    %2360 = vmatpush1.msra.mxu0 0.0
    %2361 = vmatprep.subr.mxu0 0.0
    %2362 = vmatpush1.msra.mxu0 0.0
    %2363 = vmatprep.subr.mxu0 0.0
    %2364 = vmatpush1.msra.mxu0 0.0
    %2365 = vmatprep.subr.mxu0 0.0
    %2366 = vmatpush1.msra.mxu0 0.0
    %2367 = vmatprep.subr.mxu0 0.0
    %2368 = vmatpush1.msra.mxu0 0.0
    %2369 = vmatprep.subr.mxu0 0.0
    %2370 = vmatpush1.msra.mxu0 0.0
    %2371 = vmatprep.subr.mxu0 0.0
    %2372 = vmatpush1.msra.mxu0 0.0
    %2373 = vmatprep.subr.mxu0 0.0
    %2374 = vmatpush1.msra.mxu0 0.0
    %2375 = vmatprep.subr.mxu0 0.0
    %2376 = vmatpush1.msra.mxu0 0.0
    %2377 = vmatprep.subr.mxu0 0.0
    %2378 = vmatpush1.msra.mxu0 0.0
    %2379 = vmatprep.subr.mxu0 0.0
    %2380 = vmatpush1.msra.mxu0 0.0
    %2381 = vmatprep.subr.mxu0 0.0
    %2382 = vmatpush1.msra.mxu0 0.0
    %2383 = vmatprep.subr.mxu0 0.0
    %2384 = vmatpush1.msra.mxu0 0.0
    %2385 = vmatprep.subr.mxu0 0.0
    %2386 = vmatpush1.msra.mxu0 0.0
    %2387 = vmatprep.mubr.f32.mxu0 0.0
    %2388 = vmatmul.mubr.f32.gmra.mrb[0].mxu0 %v2248
    %v2389 = vpop.f32.mrb[0].mxu0
    %v2390 = vadd.f32 %v378, %v2389
    %v2391 = vpop.f32.mrb[0].mxu0
    %2392 = vdwg.mxu0
    %v2393 = vadd.f32 %v2251, %v2319
    %v2394 = vxor.u32 %v2393, 2147483648
    %v2395 = vmul.f32 %v2394, 1.442695
    %v2396 = vpow.pop %v2395
    %v2397 = vadd.f32 %v2396, 1.0
    %v2398 = vrcp.pop %v2397
    %v2399 = vmul.f32 1.0, %v2398
    %v2401 = vrot.slane %v2251, 1
    %v2403 = vadd.f32 %v2401, %v2321
    %v2404 = vxor.u32 %v2403, 2147483648
    %v2405 = vmul.f32 %v2404, 1.442695
    %v2406 = vpow.pop %v2405
    %v2407 = vadd.f32 %v2406, 1.0
    %v2408 = vrcp.pop %v2407
    %v2409 = vmul.f32 1.0, %v2408
    %v2410 = vmul.f32 %v2399, %v2390
    %v2411 = vrot.slane %v2251, 2
    %v2413 = vadd.f32 %v2411, %v2410
    %v2414 = vtanh.pop %v2413
    %v2415 = vsub.f32 1.0, %v2409
    %v2416 = vmul.f32 %v2415, %v2414
    %v2417 = vmul.f32 %v2409, %v2248
    %v2418 = vadd.f32 %v2416, %v2417
    %2419 = vst [vmem:[#allocation3 + $0xb] sm:$0x1] %v2418
    %s2420 = scalar_lea.vmem [#allocation2], 28
    %v2421 = vld [vmem:[%s2420] ss:$8 sm:$0x7]
    %2422 = vmatprep.subr.mxu0 %v316
    %2423 = vmatpush1.msra.mxu0 %v315
    %2424 = vmatprep.subr.mxu0 %v319
    %2425 = vmatpush1.msra.mxu0 %v318
    %2426 = vmatprep.subr.mxu0 %v322
    %2427 = vmatpush1.msra.mxu0 %v321
    %2428 = vmatprep.subr.mxu0 %v325
    %2429 = vmatpush1.msra.mxu0 %v324
    %2430 = vmatprep.subr.mxu0 %v328
    %2431 = vmatpush1.msra.mxu0 %v327
    %2432 = vmatprep.subr.mxu0 %v331
    %2433 = vmatpush1.msra.mxu0 %v330
    %2434 = vmatprep.subr.mxu0 %v334
    %2435 = vmatpush1.msra.mxu0 %v333
    %2436 = vmatprep.subr.mxu0 %v337
    %2437 = vmatpush1.msra.mxu0 %v336
    %2438 = vmatprep.subr.mxu0 %v340
    %2439 = vmatpush1.msra.mxu0 %v339
    %2440 = vmatprep.subr.mxu0 %v343
    %2441 = vmatpush1.msra.mxu0 %v342
    %2442 = vmatprep.subr.mxu0 %v346
    %2443 = vmatpush1.msra.mxu0 %v345
    %2444 = vmatprep.subr.mxu0 %v349
    %2445 = vmatpush1.msra.mxu0 %v348
    %2446 = vmatprep.subr.mxu0 %v352
    %2447 = vmatpush1.msra.mxu0 %v351
    %2448 = vmatprep.subr.mxu0 %v355
    %2449 = vmatpush1.msra.mxu0 %v354
    %2450 = vmatprep.subr.mxu0 %v358
    %2451 = vmatpush1.msra.mxu0 %v357
    %2452 = vmatprep.subr.mxu0 %v361
    %2453 = vmatpush1.msra.mxu0 %v360
    %2454 = vmatprep.subr.mxu0 0.0
    %2455 = vmatpush1.msra.mxu0 0.0
    %2456 = vmatprep.subr.mxu0 0.0
    %2457 = vmatpush1.msra.mxu0 0.0
    %2458 = vmatprep.subr.mxu0 0.0
    %2459 = vmatpush1.msra.mxu0 0.0
    %2460 = vmatprep.subr.mxu0 0.0
    %2461 = vmatpush1.msra.mxu0 0.0
    %2462 = vmatprep.subr.mxu0 0.0
    %2463 = vmatpush1.msra.mxu0 0.0
    %2464 = vmatprep.subr.mxu0 0.0
    %2465 = vmatpush1.msra.mxu0 0.0
    %2466 = vmatprep.subr.mxu0 0.0
    %2467 = vmatpush1.msra.mxu0 0.0
    %2468 = vmatprep.subr.mxu0 0.0
    %2469 = vmatpush1.msra.mxu0 0.0
    %2470 = vmatprep.subr.mxu0 0.0
    %2471 = vmatpush1.msra.mxu0 0.0
    %2472 = vmatprep.subr.mxu0 0.0
    %2473 = vmatpush1.msra.mxu0 0.0
    %2474 = vmatprep.subr.mxu0 0.0
    %2475 = vmatpush1.msra.mxu0 0.0
    %2476 = vmatprep.subr.mxu0 0.0
    %2477 = vmatpush1.msra.mxu0 0.0
    %2478 = vmatprep.subr.mxu0 0.0
    %2479 = vmatpush1.msra.mxu0 0.0
    %2480 = vmatprep.subr.mxu0 0.0
    %2481 = vmatpush1.msra.mxu0 0.0
    %2482 = vmatprep.subr.mxu0 0.0
    %2483 = vmatpush1.msra.mxu0 0.0
    %2484 = vmatprep.subr.mxu0 0.0
    %2485 = vmatpush1.msra.mxu0 0.0
    %2486 = vmatprep.mubr.f32.mxu0 0.0
    %2487 = vmatmul.mubr.f32.gmra.mrb[0].mxu0 %v2418
    %v2488 = vpop.f32.mrb[0].mxu0
    %v2489 = vadd.f32 %v370, %v2488
    %v2490 = vpop.f32.mrb[0].mxu0
    %v2491 = vadd.f32 %v374, %v2490
    %2492 = vdwg.mxu0
    %2493 = vmatprep.subr.mxu0 0.0
    %2494 = vmatpush1.msra.mxu0 %v317
    %2495 = vmatprep.subr.mxu0 0.0
    %2496 = vmatpush1.msra.mxu0 %v320
    %2497 = vmatprep.subr.mxu0 0.0
    %2498 = vmatpush1.msra.mxu0 %v323
    %2499 = vmatprep.subr.mxu0 0.0
    %2500 = vmatpush1.msra.mxu0 %v326
    %2501 = vmatprep.subr.mxu0 0.0
    %2502 = vmatpush1.msra.mxu0 %v329
    %2503 = vmatprep.subr.mxu0 0.0
    %2504 = vmatpush1.msra.mxu0 %v332
    %2505 = vmatprep.subr.mxu0 0.0
    %2506 = vmatpush1.msra.mxu0 %v335
    %2507 = vmatprep.subr.mxu0 0.0
    %2508 = vmatpush1.msra.mxu0 %v338
    %2509 = vmatprep.subr.mxu0 0.0
    %2510 = vmatpush1.msra.mxu0 %v341
    %2511 = vmatprep.subr.mxu0 0.0
    %2512 = vmatpush1.msra.mxu0 %v344
    %2513 = vmatprep.subr.mxu0 0.0
    %2514 = vmatpush1.msra.mxu0 %v347
    %2515 = vmatprep.subr.mxu0 0.0
    %2516 = vmatpush1.msra.mxu0 %v350
    %2517 = vmatprep.subr.mxu0 0.0
    %2518 = vmatpush1.msra.mxu0 %v353
    %2519 = vmatprep.subr.mxu0 0.0
    %2520 = vmatpush1.msra.mxu0 %v356
    %2521 = vmatprep.subr.mxu0 0.0
    %2522 = vmatpush1.msra.mxu0 %v359
    %2523 = vmatprep.subr.mxu0 0.0
    %2524 = vmatpush1.msra.mxu0 %v362
    %2525 = vmatprep.subr.mxu0 0.0
    %2526 = vmatpush1.msra.mxu0 0.0
    %2527 = vmatprep.subr.mxu0 0.0
    %2528 = vmatpush1.msra.mxu0 0.0
    %2529 = vmatprep.subr.mxu0 0.0
    %2530 = vmatpush1.msra.mxu0 0.0
    %2531 = vmatprep.subr.mxu0 0.0
    %2532 = vmatpush1.msra.mxu0 0.0
    %2533 = vmatprep.subr.mxu0 0.0
    %2534 = vmatpush1.msra.mxu0 0.0
    %2535 = vmatprep.subr.mxu0 0.0
    %2536 = vmatpush1.msra.mxu0 0.0
    %2537 = vmatprep.subr.mxu0 0.0
    %2538 = vmatpush1.msra.mxu0 0.0
    %2539 = vmatprep.subr.mxu0 0.0
    %2540 = vmatpush1.msra.mxu0 0.0
    %2541 = vmatprep.subr.mxu0 0.0
    %2542 = vmatpush1.msra.mxu0 0.0
    %2543 = vmatprep.subr.mxu0 0.0
    %2544 = vmatpush1.msra.mxu0 0.0
    %2545 = vmatprep.subr.mxu0 0.0
    %2546 = vmatpush1.msra.mxu0 0.0
    %2547 = vmatprep.subr.mxu0 0.0
    %2548 = vmatpush1.msra.mxu0 0.0
    %2549 = vmatprep.subr.mxu0 0.0
    %2550 = vmatpush1.msra.mxu0 0.0
    %2551 = vmatprep.subr.mxu0 0.0
    %2552 = vmatpush1.msra.mxu0 0.0
    %2553 = vmatprep.subr.mxu0 0.0
    %2554 = vmatpush1.msra.mxu0 0.0
    %2555 = vmatprep.subr.mxu0 0.0
    %2556 = vmatpush1.msra.mxu0 0.0
    %2557 = vmatprep.mubr.f32.mxu0 0.0
    %2558 = vmatmul.mubr.f32.gmra.mrb[0].mxu0 %v2418
    %v2559 = vpop.f32.mrb[0].mxu0
    %v2560 = vadd.f32 %v378, %v2559
    %v2561 = vpop.f32.mrb[0].mxu0
    %2562 = vdwg.mxu0
    %v2563 = vadd.f32 %v2421, %v2489
    %v2564 = vxor.u32 %v2563, 2147483648
    %v2565 = vmul.f32 %v2564, 1.442695
    %v2566 = vpow.pop %v2565
    %v2567 = vadd.f32 %v2566, 1.0
    %v2568 = vrcp.pop %v2567
    %v2569 = vmul.f32 1.0, %v2568
    %v2571 = vrot.slane %v2421, 1
    %v2573 = vadd.f32 %v2571, %v2491
    %v2574 = vxor.u32 %v2573, 2147483648
    %v2575 = vmul.f32 %v2574, 1.442695
    %v2576 = vpow.pop %v2575
    %v2577 = vadd.f32 %v2576, 1.0
    %v2578 = vrcp.pop %v2577
    %v2579 = vmul.f32 1.0, %v2578
    %v2580 = vmul.f32 %v2569, %v2560
    %v2581 = vrot.slane %v2421, 2
    %v2583 = vadd.f32 %v2581, %v2580
    %v2584 = vtanh.pop %v2583
    %v2585 = vsub.f32 1.0, %v2579
    %v2586 = vmul.f32 %v2585, %v2584
    %v2587 = vmul.f32 %v2579, %v2418
    %v2588 = vadd.f32 %v2586, %v2587
    %2589 = vst [vmem:[#allocation3 + $0xc] sm:$0x1] %v2588
    %s2590 = scalar_lea.vmem [#allocation2], 29
    %v2591 = vld [vmem:[%s2590] ss:$8 sm:$0x7]
    %2592 = vmatprep.subr.mxu0 %v316
    %2593 = vmatpush1.msra.mxu0 %v315
    %2594 = vmatprep.subr.mxu0 %v319
    %2595 = vmatpush1.msra.mxu0 %v318
    %2596 = vmatprep.subr.mxu0 %v322
    %2597 = vmatpush1.msra.mxu0 %v321
    %2598 = vmatprep.subr.mxu0 %v325
    %2599 = vmatpush1.msra.mxu0 %v324
    %2600 = vmatprep.subr.mxu0 %v328
    %2601 = vmatpush1.msra.mxu0 %v327
    %2602 = vmatprep.subr.mxu0 %v331
    %2603 = vmatpush1.msra.mxu0 %v330
    %2604 = vmatprep.subr.mxu0 %v334
    %2605 = vmatpush1.msra.mxu0 %v333
    %2606 = vmatprep.subr.mxu0 %v337
    %2607 = vmatpush1.msra.mxu0 %v336
    %2608 = vmatprep.subr.mxu0 %v340
    %2609 = vmatpush1.msra.mxu0 %v339
    %2610 = vmatprep.subr.mxu0 %v343
    %2611 = vmatpush1.msra.mxu0 %v342
    %2612 = vmatprep.subr.mxu0 %v346
    %2613 = vmatpush1.msra.mxu0 %v345
    %2614 = vmatprep.subr.mxu0 %v349
    %2615 = vmatpush1.msra.mxu0 %v348
    %2616 = vmatprep.subr.mxu0 %v352
    %2617 = vmatpush1.msra.mxu0 %v351
    %2618 = vmatprep.subr.mxu0 %v355
    %2619 = vmatpush1.msra.mxu0 %v354
    %2620 = vmatprep.subr.mxu0 %v358
    %2621 = vmatpush1.msra.mxu0 %v357
    %2622 = vmatprep.subr.mxu0 %v361
    %2623 = vmatpush1.msra.mxu0 %v360
    %2624 = vmatprep.subr.mxu0 0.0
    %2625 = vmatpush1.msra.mxu0 0.0
    %2626 = vmatprep.subr.mxu0 0.0
    %2627 = vmatpush1.msra.mxu0 0.0
    %2628 = vmatprep.subr.mxu0 0.0
    %2629 = vmatpush1.msra.mxu0 0.0
    %2630 = vmatprep.subr.mxu0 0.0
    %2631 = vmatpush1.msra.mxu0 0.0
    %2632 = vmatprep.subr.mxu0 0.0
    %2633 = vmatpush1.msra.mxu0 0.0
    %2634 = vmatprep.subr.mxu0 0.0
    %2635 = vmatpush1.msra.mxu0 0.0
    %2636 = vmatprep.subr.mxu0 0.0
    %2637 = vmatpush1.msra.mxu0 0.0
    %2638 = vmatprep.subr.mxu0 0.0
    %2639 = vmatpush1.msra.mxu0 0.0
    %2640 = vmatprep.subr.mxu0 0.0
    %2641 = vmatpush1.msra.mxu0 0.0
    %2642 = vmatprep.subr.mxu0 0.0
    %2643 = vmatpush1.msra.mxu0 0.0
    %2644 = vmatprep.subr.mxu0 0.0
    %2645 = vmatpush1.msra.mxu0 0.0
    %2646 = vmatprep.subr.mxu0 0.0
    %2647 = vmatpush1.msra.mxu0 0.0
    %2648 = vmatprep.subr.mxu0 0.0
    %2649 = vmatpush1.msra.mxu0 0.0
    %2650 = vmatprep.subr.mxu0 0.0
    %2651 = vmatpush1.msra.mxu0 0.0
    %2652 = vmatprep.subr.mxu0 0.0
    %2653 = vmatpush1.msra.mxu0 0.0
    %2654 = vmatprep.subr.mxu0 0.0
    %2655 = vmatpush1.msra.mxu0 0.0
    %2656 = vmatprep.mubr.f32.mxu0 0.0
    %2657 = vmatmul.mubr.f32.gmra.mrb[0].mxu0 %v2588
    %v2658 = vpop.f32.mrb[0].mxu0
    %v2659 = vadd.f32 %v370, %v2658
    %v2660 = vpop.f32.mrb[0].mxu0
    %v2661 = vadd.f32 %v374, %v2660
    %2662 = vdwg.mxu0
    %2663 = vmatprep.subr.mxu0 0.0
    %2664 = vmatpush1.msra.mxu0 %v317
    %2665 = vmatprep.subr.mxu0 0.0
    %2666 = vmatpush1.msra.mxu0 %v320
    %2667 = vmatprep.subr.mxu0 0.0
    %2668 = vmatpush1.msra.mxu0 %v323
    %2669 = vmatprep.subr.mxu0 0.0
    %2670 = vmatpush1.msra.mxu0 %v326
    %2671 = vmatprep.subr.mxu0 0.0
    %2672 = vmatpush1.msra.mxu0 %v329
    %2673 = vmatprep.subr.mxu0 0.0
    %2674 = vmatpush1.msra.mxu0 %v332
    %2675 = vmatprep.subr.mxu0 0.0
    %2676 = vmatpush1.msra.mxu0 %v335
    %2677 = vmatprep.subr.mxu0 0.0
    %2678 = vmatpush1.msra.mxu0 %v338
    %2679 = vmatprep.subr.mxu0 0.0
    %2680 = vmatpush1.msra.mxu0 %v341
    %2681 = vmatprep.subr.mxu0 0.0
    %2682 = vmatpush1.msra.mxu0 %v344
    %2683 = vmatprep.subr.mxu0 0.0
    %2684 = vmatpush1.msra.mxu0 %v347
    %2685 = vmatprep.subr.mxu0 0.0
    %2686 = vmatpush1.msra.mxu0 %v350
    %2687 = vmatprep.subr.mxu0 0.0
    %2688 = vmatpush1.msra.mxu0 %v353
    %2689 = vmatprep.subr.mxu0 0.0
    %2690 = vmatpush1.msra.mxu0 %v356
    %2691 = vmatprep.subr.mxu0 0.0
    %2692 = vmatpush1.msra.mxu0 %v359
    %2693 = vmatprep.subr.mxu0 0.0
    %2694 = vmatpush1.msra.mxu0 %v362
    %2695 = vmatprep.subr.mxu0 0.0
    %2696 = vmatpush1.msra.mxu0 0.0
    %2697 = vmatprep.subr.mxu0 0.0
    %2698 = vmatpush1.msra.mxu0 0.0
    %2699 = vmatprep.subr.mxu0 0.0
    %2700 = vmatpush1.msra.mxu0 0.0
    %2701 = vmatprep.subr.mxu0 0.0
    %2702 = vmatpush1.msra.mxu0 0.0
    %2703 = vmatprep.subr.mxu0 0.0
    %2704 = vmatpush1.msra.mxu0 0.0
    %2705 = vmatprep.subr.mxu0 0.0
    %2706 = vmatpush1.msra.mxu0 0.0
    %2707 = vmatprep.subr.mxu0 0.0
    %2708 = vmatpush1.msra.mxu0 0.0
    %2709 = vmatprep.subr.mxu0 0.0
    %2710 = vmatpush1.msra.mxu0 0.0
    %2711 = vmatprep.subr.mxu0 0.0
    %2712 = vmatpush1.msra.mxu0 0.0
    %2713 = vmatprep.subr.mxu0 0.0
    %2714 = vmatpush1.msra.mxu0 0.0
    %2715 = vmatprep.subr.mxu0 0.0
    %2716 = vmatpush1.msra.mxu0 0.0
    %2717 = vmatprep.subr.mxu0 0.0
    %2718 = vmatpush1.msra.mxu0 0.0
    %2719 = vmatprep.subr.mxu0 0.0
    %2720 = vmatpush1.msra.mxu0 0.0
    %2721 = vmatprep.subr.mxu0 0.0
    %2722 = vmatpush1.msra.mxu0 0.0
    %2723 = vmatprep.subr.mxu0 0.0
    %2724 = vmatpush1.msra.mxu0 0.0
    %2725 = vmatprep.subr.mxu0 0.0
    %2726 = vmatpush1.msra.mxu0 0.0
    %2727 = vmatprep.mubr.f32.mxu0 0.0
    %2728 = vmatmul.mubr.f32.gmra.mrb[0].mxu0 %v2588
    %v2729 = vpop.f32.mrb[0].mxu0
    %v2730 = vadd.f32 %v378, %v2729
    %v2731 = vpop.f32.mrb[0].mxu0
    %2732 = vdwg.mxu0
    %v2733 = vadd.f32 %v2591, %v2659
    %v2734 = vxor.u32 %v2733, 2147483648
    %v2735 = vmul.f32 %v2734, 1.442695
    %v2736 = vpow.pop %v2735
    %v2737 = vadd.f32 %v2736, 1.0
    %v2738 = vrcp.pop %v2737
    %v2739 = vmul.f32 1.0, %v2738
    %v2741 = vrot.slane %v2591, 1
    %v2743 = vadd.f32 %v2741, %v2661
    %v2744 = vxor.u32 %v2743, 2147483648
    %v2745 = vmul.f32 %v2744, 1.442695
    %v2746 = vpow.pop %v2745
    %v2747 = vadd.f32 %v2746, 1.0
    %v2748 = vrcp.pop %v2747
    %v2749 = vmul.f32 1.0, %v2748
    %v2750 = vmul.f32 %v2739, %v2730
    %v2751 = vrot.slane %v2591, 2
    %v2753 = vadd.f32 %v2751, %v2750
    %v2754 = vtanh.pop %v2753
    %v2755 = vsub.f32 1.0, %v2749
    %v2756 = vmul.f32 %v2755, %v2754
    %v2757 = vmul.f32 %v2749, %v2588
    %v2758 = vadd.f32 %v2756, %v2757
    %2759 = vst [vmem:[#allocation3 + $0xd] sm:$0x1] %v2758
    %s2760 = scalar_lea.vmem [#allocation2], 30
    %v2761 = vld [vmem:[%s2760] ss:$8 sm:$0x7]
    %2762 = vmatprep.subr.mxu0 %v316
    %2763 = vmatpush1.msra.mxu0 %v315
    %2764 = vmatprep.subr.mxu0 %v319
    %2765 = vmatpush1.msra.mxu0 %v318
    %2766 = vmatprep.subr.mxu0 %v322
    %2767 = vmatpush1.msra.mxu0 %v321
    %2768 = vmatprep.subr.mxu0 %v325
    %2769 = vmatpush1.msra.mxu0 %v324
    %2770 = vmatprep.subr.mxu0 %v328
    %2771 = vmatpush1.msra.mxu0 %v327
    %2772 = vmatprep.subr.mxu0 %v331
    %2773 = vmatpush1.msra.mxu0 %v330
    %2774 = vmatprep.subr.mxu0 %v334
    %2775 = vmatpush1.msra.mxu0 %v333
    %2776 = vmatprep.subr.mxu0 %v337
    %2777 = vmatpush1.msra.mxu0 %v336
    %2778 = vmatprep.subr.mxu0 %v340
    %2779 = vmatpush1.msra.mxu0 %v339
    %2780 = vmatprep.subr.mxu0 %v343
    %2781 = vmatpush1.msra.mxu0 %v342
    %2782 = vmatprep.subr.mxu0 %v346
    %2783 = vmatpush1.msra.mxu0 %v345
    %2784 = vmatprep.subr.mxu0 %v349
    %2785 = vmatpush1.msra.mxu0 %v348
    %2786 = vmatprep.subr.mxu0 %v352
    %2787 = vmatpush1.msra.mxu0 %v351
    %2788 = vmatprep.subr.mxu0 %v355
    %2789 = vmatpush1.msra.mxu0 %v354
    %2790 = vmatprep.subr.mxu0 %v358
    %2791 = vmatpush1.msra.mxu0 %v357
    %2792 = vmatprep.subr.mxu0 %v361
    %2793 = vmatpush1.msra.mxu0 %v360
    %2794 = vmatprep.subr.mxu0 0.0
    %2795 = vmatpush1.msra.mxu0 0.0
    %2796 = vmatprep.subr.mxu0 0.0
    %2797 = vmatpush1.msra.mxu0 0.0
    %2798 = vmatprep.subr.mxu0 0.0
    %2799 = vmatpush1.msra.mxu0 0.0
    %2800 = vmatprep.subr.mxu0 0.0
    %2801 = vmatpush1.msra.mxu0 0.0
    %2802 = vmatprep.subr.mxu0 0.0
    %2803 = vmatpush1.msra.mxu0 0.0
    %2804 = vmatprep.subr.mxu0 0.0
    %2805 = vmatpush1.msra.mxu0 0.0
    %2806 = vmatprep.subr.mxu0 0.0
    %2807 = vmatpush1.msra.mxu0 0.0
    %2808 = vmatprep.subr.mxu0 0.0
    %2809 = vmatpush1.msra.mxu0 0.0
    %2810 = vmatprep.subr.mxu0 0.0
    %2811 = vmatpush1.msra.mxu0 0.0
    %2812 = vmatprep.subr.mxu0 0.0
    %2813 = vmatpush1.msra.mxu0 0.0
    %2814 = vmatprep.subr.mxu0 0.0
    %2815 = vmatpush1.msra.mxu0 0.0
    %2816 = vmatprep.subr.mxu0 0.0
    %2817 = vmatpush1.msra.mxu0 0.0
    %2818 = vmatprep.subr.mxu0 0.0
    %2819 = vmatpush1.msra.mxu0 0.0
    %2820 = vmatprep.subr.mxu0 0.0
    %2821 = vmatpush1.msra.mxu0 0.0
    %2822 = vmatprep.subr.mxu0 0.0
    %2823 = vmatpush1.msra.mxu0 0.0
    %2824 = vmatprep.subr.mxu0 0.0
    %2825 = vmatpush1.msra.mxu0 0.0
    %2826 = vmatprep.mubr.f32.mxu0 0.0
    %2827 = vmatmul.mubr.f32.gmra.mrb[0].mxu0 %v2758
    %v2828 = vpop.f32.mrb[0].mxu0
    %v2829 = vadd.f32 %v370, %v2828
    %v2830 = vpop.f32.mrb[0].mxu0
    %v2831 = vadd.f32 %v374, %v2830
    %2832 = vdwg.mxu0
    %2833 = vmatprep.subr.mxu0 0.0
    %2834 = vmatpush1.msra.mxu0 %v317
    %2835 = vmatprep.subr.mxu0 0.0
    %2836 = vmatpush1.msra.mxu0 %v320
    %2837 = vmatprep.subr.mxu0 0.0
    %2838 = vmatpush1.msra.mxu0 %v323
    %2839 = vmatprep.subr.mxu0 0.0
    %2840 = vmatpush1.msra.mxu0 %v326
    %2841 = vmatprep.subr.mxu0 0.0
    %2842 = vmatpush1.msra.mxu0 %v329
    %2843 = vmatprep.subr.mxu0 0.0
    %2844 = vmatpush1.msra.mxu0 %v332
    %2845 = vmatprep.subr.mxu0 0.0
    %2846 = vmatpush1.msra.mxu0 %v335
    %2847 = vmatprep.subr.mxu0 0.0
    %2848 = vmatpush1.msra.mxu0 %v338
    %2849 = vmatprep.subr.mxu0 0.0
    %2850 = vmatpush1.msra.mxu0 %v341
    %2851 = vmatprep.subr.mxu0 0.0
    %2852 = vmatpush1.msra.mxu0 %v344
    %2853 = vmatprep.subr.mxu0 0.0
    %2854 = vmatpush1.msra.mxu0 %v347
    %2855 = vmatprep.subr.mxu0 0.0
    %2856 = vmatpush1.msra.mxu0 %v350
    %2857 = vmatprep.subr.mxu0 0.0
    %2858 = vmatpush1.msra.mxu0 %v353
    %2859 = vmatprep.subr.mxu0 0.0
    %2860 = vmatpush1.msra.mxu0 %v356
    %2861 = vmatprep.subr.mxu0 0.0
    %2862 = vmatpush1.msra.mxu0 %v359
    %2863 = vmatprep.subr.mxu0 0.0
    %2864 = vmatpush1.msra.mxu0 %v362
    %2865 = vmatprep.subr.mxu0 0.0
    %2866 = vmatpush1.msra.mxu0 0.0
    %2867 = vmatprep.subr.mxu0 0.0
    %2868 = vmatpush1.msra.mxu0 0.0
    %2869 = vmatprep.subr.mxu0 0.0
    %2870 = vmatpush1.msra.mxu0 0.0
    %2871 = vmatprep.subr.mxu0 0.0
    %2872 = vmatpush1.msra.mxu0 0.0
    %2873 = vmatprep.subr.mxu0 0.0
    %2874 = vmatpush1.msra.mxu0 0.0
    %2875 = vmatprep.subr.mxu0 0.0
    %2876 = vmatpush1.msra.mxu0 0.0
    %2877 = vmatprep.subr.mxu0 0.0
    %2878 = vmatpush1.msra.mxu0 0.0
    %2879 = vmatprep.subr.mxu0 0.0
    %2880 = vmatpush1.msra.mxu0 0.0
    %2881 = vmatprep.subr.mxu0 0.0
    %2882 = vmatpush1.msra.mxu0 0.0
    %2883 = vmatprep.subr.mxu0 0.0
    %2884 = vmatpush1.msra.mxu0 0.0
    %2885 = vmatprep.subr.mxu0 0.0
    %2886 = vmatpush1.msra.mxu0 0.0
    %2887 = vmatprep.subr.mxu0 0.0
    %2888 = vmatpush1.msra.mxu0 0.0
    %2889 = vmatprep.subr.mxu0 0.0
    %2890 = vmatpush1.msra.mxu0 0.0
    %2891 = vmatprep.subr.mxu0 0.0
    %2892 = vmatpush1.msra.mxu0 0.0
    %2893 = vmatprep.subr.mxu0 0.0
    %2894 = vmatpush1.msra.mxu0 0.0
    %2895 = vmatprep.subr.mxu0 0.0
    %2896 = vmatpush1.msra.mxu0 0.0
    %2897 = vmatprep.mubr.f32.mxu0 0.0
    %2898 = vmatmul.mubr.f32.gmra.mrb[0].mxu0 %v2758
    %v2899 = vpop.f32.mrb[0].mxu0
    %v2900 = vadd.f32 %v378, %v2899
    %v2901 = vpop.f32.mrb[0].mxu0
    %2902 = vdwg.mxu0
    %v2903 = vadd.f32 %v2761, %v2829
    %v2904 = vxor.u32 %v2903, 2147483648
    %v2905 = vmul.f32 %v2904, 1.442695
    %v2906 = vpow.pop %v2905
    %v2907 = vadd.f32 %v2906, 1.0
    %v2908 = vrcp.pop %v2907
    %v2909 = vmul.f32 1.0, %v2908
    %v2911 = vrot.slane %v2761, 1
    %v2913 = vadd.f32 %v2911, %v2831
    %v2914 = vxor.u32 %v2913, 2147483648
    %v2915 = vmul.f32 %v2914, 1.442695
    %v2916 = vpow.pop %v2915
    %v2917 = vadd.f32 %v2916, 1.0
    %v2918 = vrcp.pop %v2917
    %v2919 = vmul.f32 1.0, %v2918
    %v2920 = vmul.f32 %v2909, %v2900
    %v2921 = vrot.slane %v2761, 2
    %v2923 = vadd.f32 %v2921, %v2920
    %v2924 = vtanh.pop %v2923
    %v2925 = vsub.f32 1.0, %v2919
    %v2926 = vmul.f32 %v2925, %v2924
    %v2927 = vmul.f32 %v2919, %v2758
    %v2928 = vadd.f32 %v2926, %v2927
    %2929 = vst [vmem:[#allocation3 + $0xe] sm:$0x1] %v2928
    %s2930 = scalar_lea.vmem [#allocation2], 31
    %v2931 = vld [vmem:[%s2930] ss:$8 sm:$0x7]
    %2932 = vmatprep.subr.mxu0 %v316
    %2933 = vmatpush1.msra.mxu0 %v315
    %2934 = vmatprep.subr.mxu0 %v319
    %2935 = vmatpush1.msra.mxu0 %v318
    %2936 = vmatprep.subr.mxu0 %v322
    %2937 = vmatpush1.msra.mxu0 %v321
    %2938 = vmatprep.subr.mxu0 %v325
    %2939 = vmatpush1.msra.mxu0 %v324
    %2940 = vmatprep.subr.mxu0 %v328
    %2941 = vmatpush1.msra.mxu0 %v327
    %2942 = vmatprep.subr.mxu0 %v331
    %2943 = vmatpush1.msra.mxu0 %v330
    %2944 = vmatprep.subr.mxu0 %v334
    %2945 = vmatpush1.msra.mxu0 %v333
    %2946 = vmatprep.subr.mxu0 %v337
    %2947 = vmatpush1.msra.mxu0 %v336
    %2948 = vmatprep.subr.mxu0 %v340
    %2949 = vmatpush1.msra.mxu0 %v339
    %2950 = vmatprep.subr.mxu0 %v343
    %2951 = vmatpush1.msra.mxu0 %v342
    %2952 = vmatprep.subr.mxu0 %v346
    %2953 = vmatpush1.msra.mxu0 %v345
    %2954 = vmatprep.subr.mxu0 %v349
    %2955 = vmatpush1.msra.mxu0 %v348
    %2956 = vmatprep.subr.mxu0 %v352
    %2957 = vmatpush1.msra.mxu0 %v351
    %2958 = vmatprep.subr.mxu0 %v355
    %2959 = vmatpush1.msra.mxu0 %v354
    %2960 = vmatprep.subr.mxu0 %v358
    %2961 = vmatpush1.msra.mxu0 %v357
    %2962 = vmatprep.subr.mxu0 %v361
    %2963 = vmatpush1.msra.mxu0 %v360
    %2964 = vmatprep.subr.mxu0 0.0
    %2965 = vmatpush1.msra.mxu0 0.0
    %2966 = vmatprep.subr.mxu0 0.0
    %2967 = vmatpush1.msra.mxu0 0.0
    %2968 = vmatprep.subr.mxu0 0.0
    %2969 = vmatpush1.msra.mxu0 0.0
    %2970 = vmatprep.subr.mxu0 0.0
    %2971 = vmatpush1.msra.mxu0 0.0
    %2972 = vmatprep.subr.mxu0 0.0
    %2973 = vmatpush1.msra.mxu0 0.0
    %2974 = vmatprep.subr.mxu0 0.0
    %2975 = vmatpush1.msra.mxu0 0.0
    %2976 = vmatprep.subr.mxu0 0.0
    %2977 = vmatpush1.msra.mxu0 0.0
    %2978 = vmatprep.subr.mxu0 0.0
    %2979 = vmatpush1.msra.mxu0 0.0
    %2980 = vmatprep.subr.mxu0 0.0
    %2981 = vmatpush1.msra.mxu0 0.0
    %2982 = vmatprep.subr.mxu0 0.0
    %2983 = vmatpush1.msra.mxu0 0.0
    %2984 = vmatprep.subr.mxu0 0.0
    %2985 = vmatpush1.msra.mxu0 0.0
    %2986 = vmatprep.subr.mxu0 0.0
    %2987 = vmatpush1.msra.mxu0 0.0
    %2988 = vmatprep.subr.mxu0 0.0
    %2989 = vmatpush1.msra.mxu0 0.0
    %2990 = vmatprep.subr.mxu0 0.0
    %2991 = vmatpush1.msra.mxu0 0.0
    %2992 = vmatprep.subr.mxu0 0.0
    %2993 = vmatpush1.msra.mxu0 0.0
    %2994 = vmatprep.subr.mxu0 0.0
    %2995 = vmatpush1.msra.mxu0 0.0
    %2996 = vmatprep.mubr.f32.mxu0 0.0
    %2997 = vmatmul.mubr.f32.gmra.mrb[0].mxu0 %v2928
    %v2998 = vpop.f32.mrb[0].mxu0
    %v2999 = vadd.f32 %v370, %v2998
    %v3000 = vpop.f32.mrb[0].mxu0
    %v3001 = vadd.f32 %v374, %v3000
    %3002 = vdwg.mxu0
    %3003 = vmatprep.subr.mxu0 0.0
    %3004 = vmatpush1.msra.mxu0 %v317
    %3005 = vmatprep.subr.mxu0 0.0
    %3006 = vmatpush1.msra.mxu0 %v320
    %3007 = vmatprep.subr.mxu0 0.0
    %3008 = vmatpush1.msra.mxu0 %v323
    %3009 = vmatprep.subr.mxu0 0.0
    %3010 = vmatpush1.msra.mxu0 %v326
    %3011 = vmatprep.subr.mxu0 0.0
    %3012 = vmatpush1.msra.mxu0 %v329
    %3013 = vmatprep.subr.mxu0 0.0
    %3014 = vmatpush1.msra.mxu0 %v332
    %3015 = vmatprep.subr.mxu0 0.0
    %3016 = vmatpush1.msra.mxu0 %v335
    %3017 = vmatprep.subr.mxu0 0.0
    %3018 = vmatpush1.msra.mxu0 %v338
    %3019 = vmatprep.subr.mxu0 0.0
    %3020 = vmatpush1.msra.mxu0 %v341
    %3021 = vmatprep.subr.mxu0 0.0
    %3022 = vmatpush1.msra.mxu0 %v344
    %3023 = vmatprep.subr.mxu0 0.0
    %3024 = vmatpush1.msra.mxu0 %v347
    %3025 = vmatprep.subr.mxu0 0.0
    %3026 = vmatpush1.msra.mxu0 %v350
    %3027 = vmatprep.subr.mxu0 0.0
    %3028 = vmatpush1.msra.mxu0 %v353
    %3029 = vmatprep.subr.mxu0 0.0
    %3030 = vmatpush1.msra.mxu0 %v356
    %3031 = vmatprep.subr.mxu0 0.0
    %3032 = vmatpush1.msra.mxu0 %v359
    %3033 = vmatprep.subr.mxu0 0.0
    %3034 = vmatpush1.msra.mxu0 %v362
    %3035 = vmatprep.subr.mxu0 0.0
    %3036 = vmatpush1.msra.mxu0 0.0
    %3037 = vmatprep.subr.mxu0 0.0
    %3038 = vmatpush1.msra.mxu0 0.0
    %3039 = vmatprep.subr.mxu0 0.0
    %3040 = vmatpush1.msra.mxu0 0.0
    %3041 = vmatprep.subr.mxu0 0.0
    %3042 = vmatpush1.msra.mxu0 0.0
    %3043 = vmatprep.subr.mxu0 0.0
    %3044 = vmatpush1.msra.mxu0 0.0
    %3045 = vmatprep.subr.mxu0 0.0
    %3046 = vmatpush1.msra.mxu0 0.0
    %3047 = vmatprep.subr.mxu0 0.0
    %3048 = vmatpush1.msra.mxu0 0.0
    %3049 = vmatprep.subr.mxu0 0.0
    %3050 = vmatpush1.msra.mxu0 0.0
    %3051 = vmatprep.subr.mxu0 0.0
    %3052 = vmatpush1.msra.mxu0 0.0
    %3053 = vmatprep.subr.mxu0 0.0
    %3054 = vmatpush1.msra.mxu0 0.0
    %3055 = vmatprep.subr.mxu0 0.0
    %3056 = vmatpush1.msra.mxu0 0.0
    %3057 = vmatprep.subr.mxu0 0.0
    %3058 = vmatpush1.msra.mxu0 0.0
    %3059 = vmatprep.subr.mxu0 0.0
    %3060 = vmatpush1.msra.mxu0 0.0
    %3061 = vmatprep.subr.mxu0 0.0
    %3062 = vmatpush1.msra.mxu0 0.0
    %3063 = vmatprep.subr.mxu0 0.0
    %3064 = vmatpush1.msra.mxu0 0.0
    %3065 = vmatprep.subr.mxu0 0.0
    %3066 = vmatpush1.msra.mxu0 0.0
    %3067 = vmatprep.mubr.f32.mxu0 0.0
    %3068 = vmatmul.mubr.f32.gmra.mrb[0].mxu0 %v2928
    %v3069 = vpop.f32.mrb[0].mxu0
    %v3070 = vadd.f32 %v378, %v3069
    %v3071 = vpop.f32.mrb[0].mxu0
    %3072 = vdwg.mxu0
    %v3073 = vadd.f32 %v2931, %v2999
    %v3074 = vxor.u32 %v3073, 2147483648
    %v3075 = vmul.f32 %v3074, 1.442695
    %v3076 = vpow.pop %v3075
    %v3077 = vadd.f32 %v3076, 1.0
    %v3078 = vrcp.pop %v3077
    %v3079 = vmul.f32 1.0, %v3078
    %v3081 = vrot.slane %v2931, 1
    %v3083 = vadd.f32 %v3081, %v3001
    %v3084 = vxor.u32 %v3083, 2147483648
    %v3085 = vmul.f32 %v3084, 1.442695
    %v3086 = vpow.pop %v3085
    %v3087 = vadd.f32 %v3086, 1.0
    %v3088 = vrcp.pop %v3087
    %v3089 = vmul.f32 1.0, %v3088
    %v3090 = vmul.f32 %v3079, %v3070
    %v3091 = vrot.slane %v2931, 2
    %v3093 = vadd.f32 %v3091, %v3090
    %v3094 = vtanh.pop %v3093
    %v3095 = vsub.f32 1.0, %v3089
    %v3096 = vmul.f32 %v3095, %v3094
    %v3097 = vmul.f32 %v3089, %v2928
    %v3098 = vadd.f32 %v3096, %v3097
    %3099 = vst [vmem:[#allocation3 + $0xf] sm:$0x1] %v3098
    %3100 = vst [vmem:[#allocation13] sm:$0x1] %v3098
    %v3101 = vld [vmem:[#allocation3] sm:$0xff]
    %v3102 = vld [vmem:[#allocation3 + $0x8] sm:$0xff]
    %v3103 = vld [vmem:[#allocation10] sm:$0xff]
    %v3104 = vld [vmem:[#allocation10 + $0x8] sm:$0xff]
    %v3105 = vld [vmem:[#allocation10 + $0x10] sm:$0xff]
    %v3106 = vld [vmem:[#allocation10 + $0x18] sm:$0xff]
    %v3107 = vld [vmem:[#allocation10 + $0x20] sm:$0xff]
    %v3108 = vld [vmem:[#allocation10 + $0x28] sm:$0xff]
    %v3109 = vld [vmem:[#allocation10 + $0x30] sm:$0xff]
    %v3110 = vld [vmem:[#allocation10 + $0x38] sm:$0xff]
    %v3111 = vld [vmem:[#allocation10 + $0x40] sm:$0xff]
    %v3112 = vld [vmem:[#allocation10 + $0x48] sm:$0xff]
    %v3113 = vld [vmem:[#allocation10 + $0x50] sm:$0xff]
    %v3114 = vld [vmem:[#allocation10 + $0x58] sm:$0xff]
    %v3115 = vld [vmem:[#allocation10 + $0x60] sm:$0xff]
    %v3116 = vld [vmem:[#allocation10 + $0x68] sm:$0xff]
    %v3117 = vld [vmem:[#allocation10 + $0x70] sm:$0xff]
    %v3118 = vld [vmem:[#allocation10 + $0x78] sm:$0xff]
    %v3119 = vld [vmem:[%s7] sm:$0x1]
    %v3121 = vlaneseq
    %v3122 = vshrl.u32 %v3121, 7
    %v3123 = vsub.s32 0, %v3122
    %v3124 = vrot.slane %v3119, %v3123
    %3126 = vmatprep.subr.mxu0 0.0
    %3127 = vmatpush1.msra.mxu0 %v3103
    %3128 = vmatprep.subr.mxu0 0.0
    %3129 = vmatpush1.msra.mxu0 %v3104
    %3130 = vmatprep.subr.mxu0 0.0
    %3131 = vmatpush1.msra.mxu0 %v3105
    %3132 = vmatprep.subr.mxu0 0.0
    %3133 = vmatpush1.msra.mxu0 %v3106
    %3134 = vmatprep.subr.mxu0 0.0
    %3135 = vmatpush1.msra.mxu0 %v3107
    %3136 = vmatprep.subr.mxu0 0.0
    %3137 = vmatpush1.msra.mxu0 %v3108
    %3138 = vmatprep.subr.mxu0 0.0
    %3139 = vmatpush1.msra.mxu0 %v3109
    %3140 = vmatprep.subr.mxu0 0.0
    %3141 = vmatpush1.msra.mxu0 %v3110
    %3142 = vmatprep.subr.mxu0 0.0
    %3143 = vmatpush1.msra.mxu0 %v3111
    %3144 = vmatprep.subr.mxu0 0.0
    %3145 = vmatpush1.msra.mxu0 %v3112
    %3146 = vmatprep.subr.mxu0 0.0
    %3147 = vmatpush1.msra.mxu0 %v3113
    %3148 = vmatprep.subr.mxu0 0.0
    %3149 = vmatpush1.msra.mxu0 %v3114
    %3150 = vmatprep.subr.mxu0 0.0
    %3151 = vmatpush1.msra.mxu0 %v3115
    %3152 = vmatprep.subr.mxu0 0.0
    %3153 = vmatpush1.msra.mxu0 %v3116
    %3154 = vmatprep.subr.mxu0 0.0
    %3155 = vmatpush1.msra.mxu0 %v3117
    %3156 = vmatprep.subr.mxu0 0.0
    %3157 = vmatpush1.msra.mxu0 %v3118
    %3158 = vmatprep.subr.mxu0 0.0
    %3159 = vmatpush1.msra.mxu0 0.0
    %3160 = vmatprep.subr.mxu0 0.0
    %3161 = vmatpush1.msra.mxu0 0.0
    %3162 = vmatprep.subr.mxu0 0.0
    %3163 = vmatpush1.msra.mxu0 0.0
    %3164 = vmatprep.subr.mxu0 0.0
    %3165 = vmatpush1.msra.mxu0 0.0
    %3166 = vmatprep.subr.mxu0 0.0
    %3167 = vmatpush1.msra.mxu0 0.0
    %3168 = vmatprep.subr.mxu0 0.0
    %3169 = vmatpush1.msra.mxu0 0.0
    %3170 = vmatprep.subr.mxu0 0.0
    %3171 = vmatpush1.msra.mxu0 0.0
    %3172 = vmatprep.subr.mxu0 0.0
    %3173 = vmatpush1.msra.mxu0 0.0
    %3174 = vmatprep.subr.mxu0 0.0
    %3175 = vmatpush1.msra.mxu0 0.0
    %3176 = vmatprep.subr.mxu0 0.0
    %3177 = vmatpush1.msra.mxu0 0.0
    %3178 = vmatprep.subr.mxu0 0.0
    %3179 = vmatpush1.msra.mxu0 0.0
    %3180 = vmatprep.subr.mxu0 0.0
    %3181 = vmatpush1.msra.mxu0 0.0
    %3182 = vmatprep.subr.mxu0 0.0
    %3183 = vmatpush1.msra.mxu0 0.0
    %3184 = vmatprep.subr.mxu0 0.0
    %3185 = vmatpush1.msra.mxu0 0.0
    %3186 = vmatprep.subr.mxu0 0.0
    %3187 = vmatpush1.msra.mxu0 0.0
    %3188 = vmatprep.subr.mxu0 0.0
    %3189 = vmatpush1.msra.mxu0 0.0
    %3190 = vmatprep.mubr.f32.mxu0 0.0
    %3191 = vmatmul.mubr.f32.gmra.mrb[0].mxu0 %v3101
    %v3192 = vpop.f32.mrb[0].mxu0
    %v3193 = vadd.f32 %v3124, %v3192
    %v3194 = vpop.f32.mrb[0].mxu0
    %3195 = vmatprep.mubr.f32.mxu0 0.0
    %3196 = vmatmul.mubr.f32.gmra.mrb[0].mxu0 %v3102
    %v3197 = vpop.f32.mrb[0].mxu0
    %v3198 = vadd.f32 %v3124, %v3197
    %v3199 = vpop.f32.mrb[0].mxu0
    %3200 = vdwg.mxu0
    %3201 = vst [vmem:[#allocation12] sm:$0xff] %v3193
    %3202 = vst [vmem:[#allocation12 + $0x8] sm:$0xff] %v3198
    // Predicated region
    $region50: #{tpu_custom_call.1} parent=1 // pred_check
      _
    $region51: #{tpu_custom_call.1} parent=1 // pred_check_branch
      %3204 = sbr.rel (0) target = $region53
    $region52: #{tpu_custom_call.1} parent=1 // pred_region
      %s3206 = ssub.s32 256, 256
      %3207 = vsyncadd [#allocation6], %s3206
      %s3208 = sshll.u32 [#allocation12], 4
      %s3209 = int_to_ptr.vmem [resolvable:$true] %s3208
      %3214 = dma.vmem_to_hbm [thread:$0]  %s3209, 256, %s8, [#allocation6], 128, 128, 8
    $region53: #{tpu_custom_call.1} parent=1 // pred_fallthru
      _
    // Predicated region
    $region54: #{tpu_custom_call.1} parent=1 // pred_check
      _
    $region55: #{tpu_custom_call.1} parent=1 // pred_check_branch
      %3216 = sbr.rel (0) target = $region57
    $region56: #{tpu_custom_call.1} parent=1 // pred_region
      %s3218 = ssub.s32 16, 16
      %3219 = vsyncadd [#allocation14], %s3218
      %s3221 = sshll.u32 [#allocation13], 4
      %s3222 = int_to_ptr.vmem [resolvable:$true] %s3221
      %3224 = dma.vmem_to_hbm [thread:$0]  %s3222, 16, %s9, [#allocation14]
    $region57: #{tpu_custom_call.1} parent=1 // pred_fallthru
      _
    // Predicated region
    $region58: #{tpu_custom_call.1} parent=1 // pred_check
      _
    $region59: #{tpu_custom_call.1} parent=1 // pred_check_branch
      %3226 = sbr.rel (0) target = $region61
    $region60: #{tpu_custom_call.1} parent=1 // pred_region
      %3227 = dma.done [#allocation6], 256
    $region61: #{tpu_custom_call.1} parent=1 // pred_fallthru
      _
    // Predicated region
    $region62: #{tpu_custom_call.1} parent=1 // pred_check
      _
    $region63: #{tpu_custom_call.1} parent=1 // pred_check_branch
      %3229 = sbr.rel (0) target = $region65
    $region64: #{tpu_custom_call.1} parent=1 // pred_region
      %3230 = dma.done [#allocation14], 16
    $region65: #{tpu_custom_call.1} parent=1 // pred_fallthru
      _
    %3231 = vsyncpa [#allocation5], 1
    %3232 = vsyncpa [#allocation8], 1
    %3233 = vsyncpa [#allocation11], 1
    %3234 = vsyncpa [#allocation6], 1
    %3235 = vsyncpa [#allocation14], 1

</llo_original>
